<compile_context>
chip_gen: v7x
topology: tpu7x:2x2x1
jax: 0.10.0
libtpu: 0.0.40
codegen_flags: <defaults>
</compile_context>

<pallas_src>
import functools
import math

import jax
import jax.numpy as jnp
import numpy as np
from jax import lax
from jax.experimental import pallas as pl
from jax.experimental.pallas import tpu as pltpu

NEG_INF = -1e30


# ---------------------------------------------------------------------------
# 1) Fused QKV projection + RoPE epilogue
# ---------------------------------------------------------------------------
def qkv_rope_proj(x, w_qkv, cos_coef, sin_coef, rot_blocks, *,
                  block_s, block_n, block_k):
    """x: (B, S, K) @ w_qkv: (K, N) -> (B, S, N), RoPE applied to the Q/K cols."""
    B, S, K = x.shape
    N = w_qkv.shape[1]
    assert S % block_s == 0 and N % block_n == 0 and K % block_k == 0
    grid = (B, S // block_s, N // block_n, K // block_k)

    def kernel(x_ref, w_ref, cos_ref, sin_ref, rot_ref, o_ref, acc_ref):
        ki = pl.program_id(3)

        @pl.when(ki == 0)
        def _init():
            acc_ref[...] = jnp.zeros_like(acc_ref)

        acc_ref[...] += jnp.dot(x_ref[0], w_ref[...],
                                preferred_element_type=jnp.float32)

        @pl.when(ki == pl.num_programs(3) - 1)
        def _finalize():
            a = acc_ref[...]
            # Interleaved-pair rotation: (a @ R)[2i] = -a[2i+1], [2i+1] = a[2i].
            swapped = jnp.dot(a, rot_ref[0], preferred_element_type=jnp.float32)
            o_ref[0] = (a * cos_ref[...] + swapped * sin_ref[...]).astype(o_ref.dtype)

    return pl.pallas_call(
        kernel,
        out_shape=jax.ShapeDtypeStruct((B, S, N), x.dtype),
        grid=grid,
        in_specs=[
            pl.BlockSpec((1, block_s, block_k), lambda b, si, ni, ki: (b, si, ki)),
            pl.BlockSpec((block_k, block_n), lambda b, si, ni, ki: (ki, ni)),
            pl.BlockSpec((block_s, block_n), lambda b, si, ni, ki: (si, ni)),
            pl.BlockSpec((block_s, block_n), lambda b, si, ni, ki: (si, ni)),
            pl.BlockSpec((1, block_n, block_n), lambda b, si, ni, ki: (ni, 0, 0)),
        ],
        out_specs=pl.BlockSpec((1, block_s, block_n),
                               lambda b, si, ni, ki: (b, si, ni)),
        scratch_shapes=[pltpu.VMEM((block_s, block_n), jnp.float32)],
        compiler_params=pltpu.CompilerParams(
            dimension_semantics=("parallel", "parallel", "parallel", "arbitrary")),
    )(x, w_qkv, cos_coef, sin_coef, rot_blocks)


# ---------------------------------------------------------------------------
# 2) In-place KV cache update (aliased outputs, writes only the new slab)
# ---------------------------------------------------------------------------
def kv_cache_update(qkv, cache_k, cache_v, *, start_pos, hd, kvhd):
    B, S, n_total = qkv.shape
    t_max = cache_k.shape[1]
    assert start_pos + S <= t_max
    assert cache_k.dtype == qkv.dtype and cache_v.dtype == qkv.dtype

    def kernel(qkv_ref, ck_in, cv_in, ck_out, cv_out, kbuf, vbuf, sems):
        del ck_in, cv_in  # aliased: untouched rows keep their old contents
        b = pl.program_id(0)
        kv = qkv_ref[0]                               # (S, N) in VMEM
        kbuf[...] = kv[:, hd:hd + kvhd]
        vbuf[...] = kv[:, hd + kvhd:hd + 2 * kvhd]
        k_cp = pltpu.make_async_copy(
            kbuf, ck_out.at[b, pl.ds(start_pos, S), :], sems.at[0])
        v_cp = pltpu.make_async_copy(
            vbuf, cv_out.at[b, pl.ds(start_pos, S), :], sems.at[1])
        k_cp.start()
        v_cp.start()
        k_cp.wait()
        v_cp.wait()

    return pl.pallas_call(
        kernel,
        out_shape=(jax.ShapeDtypeStruct(cache_k.shape, cache_k.dtype),
                   jax.ShapeDtypeStruct(cache_v.shape, cache_v.dtype)),
        grid=(B,),
        in_specs=[
            pl.BlockSpec((1, S, n_total), lambda b: (b, 0, 0)),
            pl.BlockSpec(memory_space=pl.ANY),
            pl.BlockSpec(memory_space=pl.ANY),
        ],
        out_specs=(pl.BlockSpec(memory_space=pl.ANY),
                   pl.BlockSpec(memory_space=pl.ANY)),
        scratch_shapes=[
            pltpu.VMEM((S, kvhd), qkv.dtype),
            pltpu.VMEM((S, kvhd), qkv.dtype),
            pltpu.SemaphoreType.DMA((2,)),
        ],
        input_output_aliases={1: 0, 2: 1},
        compiler_params=pltpu.CompilerParams(dimension_semantics=("arbitrary",)),
    )(qkv, cache_k, cache_v)


# ---------------------------------------------------------------------------
# 3) Flash (online-softmax) attention with in-kernel causal mask and GQA
# ---------------------------------------------------------------------------
# TODO(synk): the module's optional user-supplied additive `mask` and the
# return_attn=True path are not plumbed; the kernel builds the standard
# causal + full-attention-to-cache mask in-kernel and never materializes scores.
def flash_attention(qkv, cache_k, cache_v, *, start_pos, n_heads, n_kv_heads,
                    head_dim, block_q, block_kv):
    B, S, n_total = qkv.shape
    t_max, kvhd = cache_k.shape[1], cache_k.shape[2]
    hd = n_heads * head_dim
    n_rep = n_heads // n_kv_heads
    T = start_pos + S
    num_kv_tiles = pl.cdiv(T, block_kv)
    assert S % block_q == 0 and t_max % block_kv == 0
    assert num_kv_tiles * block_kv <= t_max
    grid = (B, S // block_q, num_kv_tiles)

    def kernel(qkv_ref, k_ref, v_ref, o_ref, m_ref, l_ref, acc_ref):
        qi = pl.program_id(1)
        ti = pl.program_id(2)

        @pl.when(ti == 0)
        def _init():
            m_ref[...] = jnp.full_like(m_ref, NEG_INF)
            l_ref[...] = jnp.zeros_like(l_ref)
            acc_ref[...] = jnp.zeros_like(acc_ref)

        q_all = qkv_ref[0]          # (block_q, N): only the first hd cols are Q
        k_all = k_ref[0]            # (block_kv, kvhd)
        v_all = v_ref[0]

        # Causal + cache mask built from iota (no (S, T) mask in HBM).
        q_pos = (start_pos + qi * block_q
                 + lax.broadcasted_iota(jnp.int32, (block_q, block_kv), 0))
        k_pos = (ti * block_kv
                 + lax.broadcasted_iota(jnp.int32, (block_q, block_kv), 1))
        allowed = k_pos <= q_pos

        for h in range(n_heads):                        # static unroll over heads
            g = h // n_rep                              # GQA: kv head for head h
            qh = q_all[:, h * head_dim:(h + 1) * head_dim]   # pre-scaled by 1/sqrt(D)
            kh = k_all[:, g * head_dim:(g + 1) * head_dim]
            vh = v_all[:, g * head_dim:(g + 1) * head_dim]

            s = lax.dot_general(qh, kh, (((1,), (1,)), ((), ())),
                                preferred_element_type=jnp.float32)
            s = jnp.where(allowed, s, NEG_INF)

            m_prev = m_ref[h]                           # (block_q, 1)
            l_prev = l_ref[h]
            m_new = jnp.maximum(m_prev, jnp.max(s, axis=-1, keepdims=True))
            alpha = jnp.exp(m_prev - m_new)
            p = jnp.exp(s - m_new)
            l_ref[h] = alpha * l_prev + jnp.sum(p, axis=-1, keepdims=True)
            m_ref[h] = m_new
            acc_ref[h] = alpha * acc_ref[h] + jnp.dot(
                p.astype(vh.dtype), vh, preferred_element_type=jnp.float32)

        @pl.when(ti == pl.num_programs(2) - 1)
        def _finalize():
            pieces = []
            for h in range(n_heads):
                # approx=True is the perf option (EUP); exact keeps the f32 check tight.
                inv_l = pl.reciprocal(l_ref[h], approx=False)
                pieces.append((acc_ref[h] * inv_l).astype(o_ref.dtype))
            o_ref[0] = jnp.concatenate(pieces, axis=-1)   # lane-dense (block_q, H*D)

    return pl.pallas_call(
        kernel,
        out_shape=jax.ShapeDtypeStruct((B, S, hd), qkv.dtype),
        grid=grid,
        in_specs=[
            pl.BlockSpec((1, block_q, n_total), lambda b, qi, ti: (b, qi, 0)),
            pl.BlockSpec((1, block_kv, kvhd), lambda b, qi, ti: (b, ti, 0)),
            pl.BlockSpec((1, block_kv, kvhd), lambda b, qi, ti: (b, ti, 0)),
        ],
        out_specs=pl.BlockSpec((1, block_q, hd), lambda b, qi, ti: (b, qi, 0)),
        scratch_shapes=[
            pltpu.VMEM((n_heads, block_q, 1), jnp.float32),       # running max
            pltpu.VMEM((n_heads, block_q, 1), jnp.float32),       # running denom
            pltpu.VMEM((n_heads, block_q, head_dim), jnp.float32),  # output acc
        ],
        compiler_params=pltpu.CompilerParams(
            dimension_semantics=("parallel", "parallel", "arbitrary")),
    )(qkv, cache_k, cache_v)


# ---------------------------------------------------------------------------
# 4) Tiled K-accumulating matmul (output projection)
# ---------------------------------------------------------------------------
def matmul_pallas(x, w, *, tm=None, tn=None, tk=None):
    M, K = x.shape
    K2, N = w.shape
    assert K == K2
    tm = tm or (8 if M % 8 == 0 else M)
    tn = tn or (128 if N % 128 == 0 else N)
    tk = tk or (128 if K % 128 == 0 else K)
    assert M % tm == 0 and N % tn == 0 and K % tk == 0

    def kernel(x_ref, w_ref, o_ref, acc_ref):
        @pl.when(pl.program_id(2) == 0)
        def _init():
            acc_ref[...] = jnp.zeros_like(acc_ref)

        acc_ref[...] += jnp.dot(x_ref[...], w_ref[...],
                                preferred_element_type=jnp.float32)

        @pl.when(pl.program_id(2) == pl.num_programs(2) - 1)
        def _finalize():
            o_ref[...] = acc_ref[...].astype(o_ref.dtype)

    return pl.pallas_call(
        kernel,
        out_shape=jax.ShapeDtypeStruct((M, N), x.dtype),
        grid=(M // tm, N // tn, K // tk),
        in_specs=[pl.BlockSpec((tm, tk), lambda i, j, k: (i, k)),
                  pl.BlockSpec((tk, tn), lambda i, j, k: (k, j))],
        out_specs=pl.BlockSpec((tm, tn), lambda i, j, k: (i, j)),
        scratch_shapes=[pltpu.VMEM((tm, tn), jnp.float32)],
        compiler_params=pltpu.CompilerParams(
            dimension_semantics=("parallel", "parallel", "arbitrary")),
    )(x, w)


# ---------------------------------------------------------------------------
# Glue: full Attention.forward
# ---------------------------------------------------------------------------
def _rope_rotation_blocks(hd, kvhd, block_n):
    """Block-diagonal pair-swap matrix R with (a @ R)[2i] = -a[2i+1],
    (a @ R)[2i+1] = a[2i] on the Q/K columns and zero on the V columns.
    Stored as only its diagonal (block_n, block_n) tiles (off-diagonals are 0)."""
    n = hd + 2 * kvhd
    m = np.zeros((n, n), np.float32)
    for i in range((hd + kvhd) // 2):
        m[2 * i, 2 * i + 1] = 1.0
        m[2 * i + 1, 2 * i] = -1.0
    nt = n // block_n
    blocks = np.stack(
        [m[j * block_n:(j + 1) * block_n, j * block_n:(j + 1) * block_n]
         for j in range(nt)])
    return jnp.asarray(blocks)


def attention_forward_pallas(x, w_qkv, wo, cos, sin, cache_k, cache_v, *,
                             start_pos, n_heads, n_kv_heads, head_dim):
    B, S, dim = x.shape
    hd = n_heads * head_dim
    kvhd = n_kv_heads * head_dim
    n_total = hd + 2 * kvhd
    scale = 1.0 / math.sqrt(head_dim)

    # RoPE coefficients over the fused QKV columns.  Q columns are pre-scaled by
    # 1/sqrt(head_dim); V columns are identity (cos=1, sin=0).  Tiny (S, N) arrays.
    cos2 = jnp.repeat(cos.astype(x.dtype), 2, axis=1)      # (S, D): c0,c0,c1,c1,...
    sin2 = jnp.repeat(sin.astype(x.dtype), 2, axis=1)
    cos_coef = jnp.concatenate(
        [jnp.tile(cos2, (1, n_heads)) * scale,
         jnp.tile(cos2, (1, n_kv_heads)),
         jnp.ones((S, kvhd), x.dtype)], axis=1)
    sin_coef = jnp.concatenate(
        [jnp.tile(sin2, (1, n_heads)) * scale,
         jnp.tile(sin2, (1, n_kv_heads)),
         jnp.zeros((S, kvhd), x.dtype)], axis=1)

    # Toy-sized tiles.  At Llama scale keep 128/256 tiles, cast activations to
    # bf16, and re-derive against the v7x 64 MiB VMEM budget (roughly halve the
    # kv / N tiles vs a v6e config).
    block_s = S
    block_k = 128 if dim % 128 == 0 else dim
    block_n = 256 if n_total % 256 == 0 else n_total
    rot_blocks = _rope_rotation_blocks(hd, kvhd, block_n)

    qkv = qkv_rope_proj(x, w_qkv, cos_coef, sin_coef, rot_blocks,
                        block_s=block_s, block_n=block_n, block_k=block_k)

    # TODO(synk): for a real decode loop, also donate the cache args at the jit
    # boundary so the aliased in-place update never needs a defensive copy.
    cache_k, cache_v = kv_cache_update(qkv, cache_k, cache_v,
                                       start_pos=start_pos, hd=hd, kvhd=kvhd)

    t_max = cache_k.shape[1]
    block_kv = 128 if t_max % 128 == 0 else 8
    attn = flash_attention(qkv, cache_k, cache_v, start_pos=start_pos,
                           n_heads=n_heads, n_kv_heads=n_kv_heads,
                           head_dim=head_dim, block_q=S, block_kv=block_kv)

    out = matmul_pallas(attn.reshape(B * S, hd), wo)
    return out.reshape(B, S, dim), cache_k, cache_v


# ---------------------------------------------------------------------------
# Pure-JAX reference (mirrors the PyTorch forward exactly)
# ---------------------------------------------------------------------------
def attention_forward_ref(x, wq, wk, wv, wo, cos, sin, cache_k, cache_v,
                          start_pos, n_heads, n_kv_heads, head_dim):
    B, S, dim = x.shape
    T = start_pos + S
    n_rep = n_heads // n_kv_heads

    xq = (x @ wq).reshape(B, S, n_heads, head_dim)
    xk = (x @ wk).reshape(B, S, n_kv_heads, head_dim)
    xv = (x @ wv).reshape(B, S, n_kv_heads, head_dim)

    def rope(t):
        te = t[..., 0::2]
        to = t[..., 1::2]
        c = cos[None, :, None, :]
        s_ = sin[None, :, None, :]
        oe = te * c - to * s_
        oo = te * s_ + to * c
        return jnp.stack([oe, oo], axis=-1).reshape(t.shape)

    xq = rope(xq)
    xk = rope(xk)

    cache_k = jax.lax.dynamic_update_slice(cache_k, xk, (0, start_pos, 0, 0))
    cache_v = jax.lax.dynamic_update_slice(cache_v, xv, (0, start_pos, 0, 0))
    keys = jnp.repeat(cache_k[:, :T], n_rep, axis=2)
    values = jnp.repeat(cache_v[:, :T], n_rep, axis=2)

    q = xq.transpose(0, 2, 1, 3)
    k = keys.transpose(0, 2, 1, 3)
    v = values.transpose(0, 2, 1, 3)

    scores = jnp.einsum("bhsd,bhtd->bhst", q, k) / math.sqrt(head_dim)
    causal = jnp.triu(jnp.full((S, S), NEG_INF, dtype=jnp.float32), k=1)
    mask = jnp.concatenate([jnp.zeros((S, start_pos), jnp.float32), causal], axis=1)
    scores = scores + mask[None, None]
    scores = jax.nn.softmax(scores.astype(jnp.float32), axis=-1)
    out = jnp.einsum("bhst,bhtd->bhsd", scores, v)
    out = out.transpose(0, 2, 1, 3).reshape(B, S, -1)
    return out @ wo


# ---------------------------------------------------------------------------
if __name__ == "__main__":
    dim = 256
    n_heads = 4
    n_kv_heads = 2
    head_dim = dim // n_heads            # 64
    B, S = 2, 8
    start_pos = 4                        # some prior context already in the cache
    max_batch_size, max_seq_len = 2, 16
    rope_theta = 500000.0

    key = jax.random.PRNGKey(0)
    kx, kq, kk, kv, ko, kck, kcv = jax.random.split(key, 7)
    x = jax.random.normal(kx, (B, S, dim), dtype=jnp.float32)
    # weights stored as (in, out) == transpose of torch nn.Linear weight
    wq = 0.02 * jax.random.normal(kq, (dim, n_heads * head_dim), dtype=jnp.float32)
    wk = 0.02 * jax.random.normal(kk, (dim, n_kv_heads * head_dim), dtype=jnp.float32)
    wv = 0.02 * jax.random.normal(kv, (dim, n_kv_heads * head_dim), dtype=jnp.float32)
    wo = 0.02 * jax.random.normal(ko, (n_heads * head_dim, dim), dtype=jnp.float32)

    # rotary cos/sin for positions [start_pos, start_pos + S)
    inv_freq = 1.0 / (rope_theta ** (
        jnp.arange(0, head_dim, 2, dtype=jnp.float32) / head_dim))
    t = jnp.arange(start_pos, start_pos + S, dtype=jnp.float32)
    angles = jnp.outer(t, inv_freq)                      # (S, head_dim // 2)
    cos = jnp.cos(angles)
    sin = jnp.sin(angles)

    # persistent caches, with pre-existing context in rows [0, start_pos)
    cache_k4 = 0.5 * jax.random.normal(
        kck, (max_batch_size, max_seq_len, n_kv_heads, head_dim), dtype=jnp.float32)
    cache_v4 = 0.5 * jax.random.normal(
        kcv, (max_batch_size, max_seq_len, n_kv_heads, head_dim), dtype=jnp.float32)

    ref = attention_forward_ref(
        x, wq, wk, wv, wo, cos, sin, cache_k4, cache_v4,
        start_pos, n_heads, n_kv_heads, head_dim)

    w_qkv = jnp.concatenate([wq, wk, wv], axis=1)
    cache_k = cache_k4.reshape(max_batch_size, max_seq_len, n_kv_heads * head_dim)
    cache_v = cache_v4.reshape(max_batch_size, max_seq_len, n_kv_heads * head_dim)

    fwd = jax.jit(functools.partial(
        attention_forward_pallas, start_pos=start_pos, n_heads=n_heads,
        n_kv_heads=n_kv_heads, head_dim=head_dim))
    out, cache_k, cache_v = fwd(x, w_qkv, wo, cos, sin, cache_k, cache_v)
    out = jax.block_until_ready(out)

    np.testing.assert_allclose(np.asarray(out), np.asarray(ref),
                               rtol=5e-5, atol=5e-5)
    print("KERNEL_OK")
</pallas_src>

<mosaic_0001>
module attributes {stable_mosaic.version = 11 : i64} {
  func.func @kernel(%arg0: i32, %arg1: i32, %arg2: i32, %arg3: i32, %arg4: memref<1x8x128xf32, #tpu.memory_space<vmem>>, %arg5: memref<128x256xf32, #tpu.memory_space<vmem>>, %arg6: memref<8x256xf32, #tpu.memory_space<vmem>>, %arg7: memref<8x256xf32, #tpu.memory_space<vmem>>, %arg8: memref<1x256x256xf32, #tpu.memory_space<vmem>>, %arg9: memref<1x8x256xf32, #tpu.memory_space<vmem>>, %arg10: memref<8x256xf32, #tpu.memory_space<vmem>>) attributes {dimension_semantics = [#tpu.dimension_semantics<parallel>, #tpu.dimension_semantics<parallel>, #tpu.dimension_semantics<parallel>, #tpu.dimension_semantics<arbitrary>], iteration_bounds = array<i64: 2, 1, 2, 2>, scalar_prefetch = 0 : i64, scratch_operands = 1 : i64, tpu.core_type = #tpu.core_type<tc>, window_params = [{transform_indices = @transform_0, window_bounds = array<i64: 1, 8, 128>}, {transform_indices = @transform_1, window_bounds = array<i64: 128, 256>}, {transform_indices = @transform_2, window_bounds = array<i64: 8, 256>}, {transform_indices = @transform_3, window_bounds = array<i64: 8, 256>}, {transform_indices = @transform_4, window_bounds = array<i64: 1, 256, 256>}, {transform_indices = @transform_5, window_bounds = array<i64: 1, 8, 256>}]} {
    %c0_i32 = arith.constant 0 : i32
    %0 = arith.cmpi eq, %arg3, %c0_i32 : i32
    %1 = arith.extui %0 : i1 to i32
    %c0_i32_0 = arith.constant 0 : i32
    %2 = arith.cmpi ne, %1, %c0_i32_0 : i32
    scf.if %2 {
      %cst_10 = arith.constant 0.000000e+00 : f32
      %13 = vector.broadcast %cst_10 : f32 to vector<8x256xf32>
      %c0_11 = arith.constant 0 : index
      %c0_12 = arith.constant 0 : index
      %14 = vector.load %arg10[%c0_11, %c0_12] : memref<8x256xf32, #tpu.memory_space<vmem>>, vector<8x256xf32>
      tpu.vector_store %arg10[%c0_11, %c0_12], %13 {strides = array<i32>} : memref<8x256xf32, #tpu.memory_space<vmem>>, vector<8x256xf32>,
    } else {
    }
    %c0 = arith.constant 0 : index
    %c0_1 = arith.constant 0 : index
    %3 = vector.load %arg10[%c0, %c0_1] : memref<8x256xf32, #tpu.memory_space<vmem>>, vector<8x256xf32>
    %c0_2 = arith.constant 0 : index
    %c0_3 = arith.constant 0 : index
    %c0_4 = arith.constant 0 : index
    %4 = vector.load %arg4[%c0_2, %c0_3, %c0_4] : memref<1x8x128xf32, #tpu.memory_space<vmem>>, vector<1x8x128xf32>
    %5 = vector.shape_cast %4 : vector<1x8x128xf32> to vector<8x128xf32>
    %c0_5 = arith.constant 0 : index
    %c0_6 = arith.constant 0 : index
    %6 = vector.load %arg5[%c0_5, %c0_6] : memref<128x256xf32, #tpu.memory_space<vmem>>, vector<128x256xf32>
    %cst = arith.constant dense<0.000000e+00> : vector<8x256xf32>
    %7 = tpu.matmul %5, %6, %cst {dimension_numbers = #tpu.dot_dimension_numbers<[1], [0], [0], [1], [0, 0, 1, 1], [], []>} : vector<8x128xf32>, vector<128x256xf32>, vector<8x256xf32> -> vector<8x256xf32>
    %8 = arith.addf %3, %7 : vector<8x256xf32>
    %c0_7 = arith.constant 0 : index
    %c0_8 = arith.constant 0 : index
    %9 = vector.load %arg10[%c0_7, %c0_8] : memref<8x256xf32, #tpu.memory_space<vmem>>, vector<8x256xf32>
    tpu.vector_store %arg10[%c0_7, %c0_8], %8 {strides = array<i32>} : memref<8x256xf32, #tpu.memory_space<vmem>>, vector<8x256xf32>,
    %c1_i32 = arith.constant 1 : i32
    %10 = arith.cmpi eq, %arg3, %c1_i32 : i32
    %11 = arith.extui %10 : i1 to i32
    %c0_i32_9 = arith.constant 0 : i32
    %12 = arith.cmpi ne, %11, %c0_i32_9 : i32
    scf.if %12 {
      %c0_10 = arith.constant 0 : index
      %c0_11 = arith.constant 0 : index
      %13 = vector.load %arg10[%c0_10, %c0_11] : memref<8x256xf32, #tpu.memory_space<vmem>>, vector<8x256xf32>
      %c0_12 = arith.constant 0 : index
      %c0_13 = arith.constant 0 : index
      %c0_14 = arith.constant 0 : index
      %14 = vector.load %arg8[%c0_12, %c0_13, %c0_14] : memref<1x256x256xf32, #tpu.memory_space<vmem>>, vector<1x256x256xf32>
      %15 = vector.shape_cast %14 : vector<1x256x256xf32> to vector<256x256xf32>
      %cst_15 = arith.constant dense<0.000000e+00> : vector<8x256xf32>
      %16 = tpu.matmul %13, %15, %cst_15 {dimension_numbers = #tpu.dot_dimension_numbers<[1], [0], [0], [1], [0, 0, 1, 1], [], []>} : vector<8x256xf32>, vector<256x256xf32>, vector<8x256xf32> -> vector<8x256xf32>
      %c0_16 = arith.constant 0 : index
      %c0_17 = arith.constant 0 : index
      %17 = vector.load %arg6[%c0_16, %c0_17] : memref<8x256xf32, #tpu.memory_space<vmem>>, vector<8x256xf32>
      %18 = arith.mulf %13, %17 : vector<8x256xf32>
      %c0_18 = arith.constant 0 : index
      %c0_19 = arith.constant 0 : index
      %19 = vector.load %arg7[%c0_18, %c0_19] : memref<8x256xf32, #tpu.memory_space<vmem>>, vector<8x256xf32>
      %20 = arith.mulf %16, %19 : vector<8x256xf32>
      %21 = arith.addf %18, %20 : vector<8x256xf32>
      %c0_20 = arith.constant 0 : index
      %c0_21 = arith.constant 0 : index
      %c0_22 = arith.constant 0 : index
      %22 = vector.load %arg9[%c0_20, %c0_21, %c0_22] : memref<1x8x256xf32, #tpu.memory_space<vmem>>, vector<1x8x256xf32>
      %23 = vector.shape_cast %22 : vector<1x8x256xf32> to vector<8x256xf32>
      %24 = vector.shape_cast %21 : vector<8x256xf32> to vector<1x8x256xf32>
      tpu.vector_store %arg9[%c0_20, %c0_21, %c0_22], %24 {strides = array<i32>} : memref<1x8x256xf32, #tpu.memory_space<vmem>>, vector<1x8x256xf32>,
    } else {
    }
    return
  }
  func.func @transform_0(%arg0: i32, %arg1: i32, %arg2: i32, %arg3: i32) -> (i32, i32, i32) {
    %c0_i32 = arith.constant 0 : i32
    return %arg0, %arg1, %arg3 : i32, i32, i32
  }
  func.func @transform_1(%arg0: i32, %arg1: i32, %arg2: i32, %arg3: i32) -> (i32, i32) {
    %c0_i32 = arith.constant 0 : i32
    return %arg3, %arg2 : i32, i32
  }
  func.func @transform_2(%arg0: i32, %arg1: i32, %arg2: i32, %arg3: i32) -> (i32, i32) {
    %c0_i32 = arith.constant 0 : i32
    return %arg1, %arg2 : i32, i32
  }
  func.func @transform_3(%arg0: i32, %arg1: i32, %arg2: i32, %arg3: i32) -> (i32, i32) {
    %c0_i32 = arith.constant 0 : i32
    return %arg1, %arg2 : i32, i32
  }
  func.func @transform_4(%arg0: i32, %arg1: i32, %arg2: i32, %arg3: i32) -> (i32, i32, i32) {
    %c0_i32 = arith.constant 0 : i32
    %c0_i32_0 = arith.constant 0 : i32
    %c0_i32_1 = arith.constant 0 : i32
    return %arg2, %c0_i32, %c0_i32_0 : i32, i32, i32
  }
  func.func @transform_5(%arg0: i32, %arg1: i32, %arg2: i32, %arg3: i32) -> (i32, i32, i32) {
    %c0_i32 = arith.constant 0 : i32
    return %arg0, %arg1, %arg2 : i32, i32, i32
  }
}

module attributes {stable_mosaic.version = 11 : i64} {
  func.func @kernel(%arg0: i32, %arg1: i32, %arg2: i32, %arg3: memref<8x128xf32, #tpu.memory_space<vmem>>, %arg4: memref<128x128xf32, #tpu.memory_space<vmem>>, %arg5: memref<8x128xf32, #tpu.memory_space<vmem>>, %arg6: memref<8x128xf32, #tpu.memory_space<vmem>>) attributes {dimension_semantics = [#tpu.dimension_semantics<parallel>, #tpu.dimension_semantics<parallel>, #tpu.dimension_semantics<arbitrary>], iteration_bounds = array<i64: 2, 2, 2>, scalar_prefetch = 0 : i64, scratch_operands = 1 : i64, tpu.core_type = #tpu.core_type<tc>, window_params = [{transform_indices = @transform_0, window_bounds = array<i64: 8, 128>}, {transform_indices = @transform_1, window_bounds = array<i64: 128, 128>}, {transform_indices = @transform_2, window_bounds = array<i64: 8, 128>}]} {
    %c0_i32 = arith.constant 0 : i32
    %0 = arith.cmpi eq, %arg2, %c0_i32 : i32
    %1 = arith.extui %0 : i1 to i32
    %c0_i32_0 = arith.constant 0 : i32
    %2 = arith.cmpi ne, %1, %c0_i32_0 : i32
    scf.if %2 {
      %cst_9 = arith.constant 0.000000e+00 : f32
      %12 = vector.broadcast %cst_9 : f32 to vector<8x128xf32>
      %c0_10 = arith.constant 0 : index
      %c0_11 = arith.constant 0 : index
      %13 = vector.load %arg6[%c0_10, %c0_11] : memref<8x128xf32, #tpu.memory_space<vmem>>, vector<8x128xf32>
      tpu.vector_store %arg6[%c0_10, %c0_11], %12 {strides = array<i32>} : memref<8x128xf32, #tpu.memory_space<vmem>>, vector<8x128xf32>,
    } else {
    }
    %c0 = arith.constant 0 : index
    %c0_1 = arith.constant 0 : index
    %3 = vector.load %arg6[%c0, %c0_1] : memref<8x128xf32, #tpu.memory_space<vmem>>, vector<8x128xf32>
    %c0_2 = arith.constant 0 : index
    %c0_3 = arith.constant 0 : index
    %4 = vector.load %arg3[%c0_2, %c0_3] : memref<8x128xf32, #tpu.memory_space<vmem>>, vector<8x128xf32>
    %c0_4 = arith.constant 0 : index
    %c0_5 = arith.constant 0 : index
    %5 = vector.load %arg4[%c0_4, %c0_5] : memref<128x128xf32, #tpu.memory_space<vmem>>, vector<128x128xf32>
    %cst = arith.constant dense<0.000000e+00> : vector<8x128xf32>
    %6 = tpu.matmul %4, %5, %cst {dimension_numbers = #tpu.dot_dimension_numbers<[1], [0], [0], [1], [0, 0, 1, 1], [], []>} : vector<8x128xf32>, vector<128x128xf32>, vector<8x128xf32> -> vector<8x128xf32>
    %7 = arith.addf %3, %6 : vector<8x128xf32>
    %c0_6 = arith.constant 0 : index
    %c0_7 = arith.constant 0 : index
    %8 = vector.load %arg6[%c0_6, %c0_7] : memref<8x128xf32, #tpu.memory_space<vmem>>, vector<8x128xf32>
    tpu.vector_store %arg6[%c0_6, %c0_7], %7 {strides = array<i32>} : memref<8x128xf32, #tpu.memory_space<vmem>>, vector<8x128xf32>,
    %c1_i32 = arith.constant 1 : i32
    %9 = arith.cmpi eq, %arg2, %c1_i32 : i32
    %10 = arith.extui %9 : i1 to i32
    %c0_i32_8 = arith.constant 0 : i32
    %11 = arith.cmpi ne, %10, %c0_i32_8 : i32
    scf.if %11 {
      %c0_9 = arith.constant 0 : index
      %c0_10 = arith.constant 0 : index
      %12 = vector.load %arg6[%c0_9, %c0_10] : memref<8x128xf32, #tpu.memory_space<vmem>>, vector<8x128xf32>
      %c0_11 = arith.constant 0 : index
      %c0_12 = arith.constant 0 : index
      %13 = vector.load %arg5[%c0_11, %c0_12] : memref<8x128xf32, #tpu.memory_space<vmem>>, vector<8x128xf32>
      tpu.vector_store %arg5[%c0_11, %c0_12], %12 {strides = array<i32>} : memref<8x128xf32, #tpu.memory_space<vmem>>, vector<8x128xf32>,
    } else {
    }
    return
  }
  func.func @transform_0(%arg0: i32, %arg1: i32, %arg2: i32) -> (i32, i32) {
    %c0_i32 = arith.constant 0 : i32
    return %arg0, %arg2 : i32, i32
  }
  func.func @transform_1(%arg0: i32, %arg1: i32, %arg2: i32) -> (i32, i32) {
    %c0_i32 = arith.constant 0 : i32
    return %arg2, %arg1 : i32, i32
  }
  func.func @transform_2(%arg0: i32, %arg1: i32, %arg2: i32) -> (i32, i32) {
    %c0_i32 = arith.constant 0 : i32
    return %arg0, %arg1 : i32, i32
  }
}

module attributes {stable_mosaic.version = 11 : i64} {
  func.func @kernel(%arg0: i32, %arg1: memref<1x8x512xf32, #tpu.memory_space<vmem>>, %arg2: memref<2x16x128xf32, #tpu.memory_space<any>>, %arg3: memref<2x16x128xf32, #tpu.memory_space<any>>, %arg4: memref<2x16x128xf32, #tpu.memory_space<any>>, %arg5: memref<2x16x128xf32, #tpu.memory_space<any>>, %arg6: memref<8x128xf32, #tpu.memory_space<vmem>>, %arg7: memref<8x128xf32, #tpu.memory_space<vmem>>, %arg8: memref<2x!tpu.dma_semaphore, #tpu.memory_space<semaphore_mem>>) attributes {dimension_semantics = [#tpu.dimension_semantics<arbitrary>], iteration_bounds = array<i64: 2>, scalar_prefetch = 0 : i64, scratch_operands = 3 : i64, tpu.core_type = #tpu.core_type<tc>, window_params = [{transform_indices = @transform_0, window_bounds = array<i64: 1, 8, 512>}, {}, {}, {}, {}]} {
    %c0 = arith.constant 0 : index
    %c0_0 = arith.constant 0 : index
    %c0_1 = arith.constant 0 : index
    %0 = vector.load %arg1[%c0, %c0_0, %c0_1] : memref<1x8x512xf32, #tpu.memory_space<vmem>>, vector<1x8x512xf32>
    %1 = vector.shape_cast %0 : vector<1x8x512xf32> to vector<8x512xf32>
    %2 = vector.extract_strided_slice %1 {offsets = [0, 256], sizes = [8, 128], strides = [1, 1]} : vector<8x512xf32> to vector<8x128xf32>
    %c0_2 = arith.constant 0 : index
    %c0_3 = arith.constant 0 : index
    %3 = vector.load %arg6[%c0_2, %c0_3] : memref<8x128xf32, #tpu.memory_space<vmem>>, vector<8x128xf32>
    tpu.vector_store %arg6[%c0_2, %c0_3], %2 {strides = array<i32>} : memref<8x128xf32, #tpu.memory_space<vmem>>, vector<8x128xf32>,
    %4 = vector.extract_strided_slice %1 {offsets = [0, 384], sizes = [8, 128], strides = [1, 1]} : vector<8x512xf32> to vector<8x128xf32>
    %c0_4 = arith.constant 0 : index
    %c0_5 = arith.constant 0 : index
    %5 = vector.load %arg7[%c0_4, %c0_5] : memref<8x128xf32, #tpu.memory_space<vmem>>, vector<8x128xf32>
    tpu.vector_store %arg7[%c0_4, %c0_5], %4 {strides = array<i32>} : memref<8x128xf32, #tpu.memory_space<vmem>>, vector<8x128xf32>,
    %c0_i32 = arith.constant 0 : i32
    %c4_i32 = arith.constant 4 : i32
    %c0_i32_6 = arith.constant 0 : i32
    %6 = tpu.memref_slice %arg4[%arg0, %c4_i32, %c0_i32_6] : memref<2x16x128xf32, #tpu.memory_space<any>> -> memref<1x8x128xf32, #tpu.memory_space<any>>
    %7 = tpu.memref_squeeze %6 : memref<1x8x128xf32, #tpu.memory_space<any>> -> memref<8x128xf32, #tpu.memory_space<any>>
    %8 = tpu.memref_slice %arg8[%c0_i32] : memref<2x!tpu.dma_semaphore, #tpu.memory_space<semaphore_mem>> -> memref<1x!tpu.dma_semaphore, #tpu.memory_space<semaphore_mem>>
    %9 = tpu.memref_squeeze %8 : memref<1x!tpu.dma_semaphore, #tpu.memory_space<semaphore_mem>> -> memref<!tpu.dma_semaphore, #tpu.memory_space<semaphore_mem>>
    tpu.enqueue_dma source(%arg6 : memref<8x128xf32, #tpu.memory_space<vmem>>) target(%7 : memref<8x128xf32, #tpu.memory_space<any>>) target_semaphore(%9 : memref<!tpu.dma_semaphore, #tpu.memory_space<semaphore_mem>>)
    %c1_i32 = arith.constant 1 : i32
    %c4_i32_7 = arith.constant 4 : i32
    %c0_i32_8 = arith.constant 0 : i32
    %10 = tpu.memref_slice %arg5[%arg0, %c4_i32_7, %c0_i32_8] : memref<2x16x128xf32, #tpu.memory_space<any>> -> memref<1x8x128xf32, #tpu.memory_space<any>>
    %11 = tpu.memref_squeeze %10 : memref<1x8x128xf32, #tpu.memory_space<any>> -> memref<8x128xf32, #tpu.memory_space<any>>
    %12 = tpu.memref_slice %arg8[%c1_i32] : memref<2x!tpu.dma_semaphore, #tpu.memory_space<semaphore_mem>> -> memref<1x!tpu.dma_semaphore, #tpu.memory_space<semaphore_mem>>
    %13 = tpu.memref_squeeze %12 : memref<1x!tpu.dma_semaphore, #tpu.memory_space<semaphore_mem>> -> memref<!tpu.dma_semaphore, #tpu.memory_space<semaphore_mem>>
    tpu.enqueue_dma source(%arg7 : memref<8x128xf32, #tpu.memory_space<vmem>>) target(%11 : memref<8x128xf32, #tpu.memory_space<any>>) target_semaphore(%13 : memref<!tpu.dma_semaphore, #tpu.memory_space<semaphore_mem>>)
    %c0_i32_9 = arith.constant 0 : i32
    %c4_i32_10 = arith.constant 4 : i32
    %c0_i32_11 = arith.constant 0 : i32
    %14 = tpu.memref_slice %arg4[%arg0, %c4_i32_10, %c0_i32_11] : memref<2x16x128xf32, #tpu.memory_space<any>> -> memref<1x8x128xf32, #tpu.memory_space<any>>
    %15 = tpu.memref_squeeze %14 : memref<1x8x128xf32, #tpu.memory_space<any>> -> memref<8x128xf32, #tpu.memory_space<any>>
    %16 = tpu.memref_slice %arg8[%c0_i32_9] : memref<2x!tpu.dma_semaphore, #tpu.memory_space<semaphore_mem>> -> memref<1x!tpu.dma_semaphore, #tpu.memory_space<semaphore_mem>>
    %17 = tpu.memref_squeeze %16 : memref<1x!tpu.dma_semaphore, #tpu.memory_space<semaphore_mem>> -> memref<!tpu.dma_semaphore, #tpu.memory_space<semaphore_mem>>
    tpu.wait_dma2 semaphore(%17 : memref<!tpu.dma_semaphore, #tpu.memory_space<semaphore_mem>>) src(%arg6 : memref<8x128xf32, #tpu.memory_space<vmem>>) dst(%15 : memref<8x128xf32, #tpu.memory_space<any>>)
    %c1_i32_12 = arith.constant 1 : i32
    %c4_i32_13 = arith.constant 4 : i32
    %c0_i32_14 = arith.constant 0 : i32
    %18 = tpu.memref_slice %arg5[%arg0, %c4_i32_13, %c0_i32_14] : memref<2x16x128xf32, #tpu.memory_space<any>> -> memref<1x8x128xf32, #tpu.memory_space<any>>
    %19 = tpu.memref_squeeze %18 : memref<1x8x128xf32, #tpu.memory_space<any>> -> memref<8x128xf32, #tpu.memory_space<any>>
    %20 = tpu.memref_slice %arg8[%c1_i32_12] : memref<2x!tpu.dma_semaphore, #tpu.memory_space<semaphore_mem>> -> memref<1x!tpu.dma_semaphore, #tpu.memory_space<semaphore_mem>>
    %21 = tpu.memref_squeeze %20 : memref<1x!tpu.dma_semaphore, #tpu.memory_space<semaphore_mem>> -> memref<!tpu.dma_semaphore, #tpu.memory_space<semaphore_mem>>
    tpu.wait_dma2 semaphore(%21 : memref<!tpu.dma_semaphore, #tpu.memory_space<semaphore_mem>>) src(%arg7 : memref<8x128xf32, #tpu.memory_space<vmem>>) dst(%19 : memref<8x128xf32, #tpu.memory_space<any>>)
    return
  }
  func.func @transform_0(%arg0: i32) -> (i32, i32, i32) {
    %c0_i32 = arith.constant 0 : i32
    %c0_i32_0 = arith.constant 0 : i32
    %c0_i32_1 = arith.constant 0 : i32
    return %arg0, %c0_i32, %c0_i32_0 : i32, i32, i32
  }
}

module attributes {stable_mosaic.version = 11 : i64} {
  func.func @kernel(%arg0: i32, %arg1: i32, %arg2: i32, %arg3: memref<1x8x512xf32, #tpu.memory_space<vmem>>, %arg4: memref<1x8x128xf32, #tpu.memory_space<vmem>>, %arg5: memref<1x8x128xf32, #tpu.memory_space<vmem>>, %arg6: memref<1x8x256xf32, #tpu.memory_space<vmem>>, %arg7: memref<4x8x1xf32, #tpu.memory_space<vmem>>, %arg8: memref<4x8x1xf32, #tpu.memory_space<vmem>>, %arg9: memref<4x8x64xf32, #tpu.memory_space<vmem>>) attributes {dimension_semantics = [#tpu.dimension_semantics<parallel>, #tpu.dimension_semantics<parallel>, #tpu.dimension_semantics<arbitrary>], iteration_bounds = array<i64: 2, 1, 2>, scalar_prefetch = 0 : i64, scratch_operands = 3 : i64, tpu.core_type = #tpu.core_type<tc>, window_params = [{transform_indices = @transform_0, window_bounds = array<i64: 1, 8, 512>}, {transform_indices = @transform_1, window_bounds = array<i64: 1, 8, 128>}, {transform_indices = @transform_2, window_bounds = array<i64: 1, 8, 128>}, {transform_indices = @transform_3, window_bounds = array<i64: 1, 8, 256>}]} {
    %c0_i32 = arith.constant 0 : i32
    %0 = arith.cmpi eq, %arg2, %c0_i32 : i32
    %1 = arith.extui %0 : i1 to i32
    %c0_i32_0 = arith.constant 0 : i32
    %2 = arith.cmpi ne, %1, %c0_i32_0 : i32
    scf.if %2 {
      %cst_99 = arith.constant -1.000000e+30 : f32
      %170 = vector.broadcast %cst_99 : f32 to vector<4x8x1xf32>
      %c0_100 = arith.constant 0 : index
      %c0_101 = arith.constant 0 : index
      %c0_102 = arith.constant 0 : index
      %171 = vector.load %arg7[%c0_100, %c0_101, %c0_102] : memref<4x8x1xf32, #tpu.memory_space<vmem>>, vector<4x8x1xf32>
      tpu.vector_store %arg7[%c0_100, %c0_101, %c0_102], %170 {strides = array<i32>} : memref<4x8x1xf32, #tpu.memory_space<vmem>>, vector<4x8x1xf32>,
      %cst_103 = arith.constant 0.000000e+00 : f32
      %172 = vector.broadcast %cst_103 : f32 to vector<4x8x1xf32>
      %c0_104 = arith.constant 0 : index
      %c0_105 = arith.constant 0 : index
      %c0_106 = arith.constant 0 : index
      %173 = vector.load %arg8[%c0_104, %c0_105, %c0_106] : memref<4x8x1xf32, #tpu.memory_space<vmem>>, vector<4x8x1xf32>
      tpu.vector_store %arg8[%c0_104, %c0_105, %c0_106], %172 {strides = array<i32>} : memref<4x8x1xf32, #tpu.memory_space<vmem>>, vector<4x8x1xf32>,
      %cst_107 = arith.constant 0.000000e+00 : f32
      %174 = vector.broadcast %cst_107 : f32 to vector<4x8x64xf32>
      %c0_108 = arith.constant 0 : index
      %c0_109 = arith.constant 0 : index
      %c0_110 = arith.constant 0 : index
      %175 = vector.load %arg9[%c0_108, %c0_109, %c0_110] : memref<4x8x64xf32, #tpu.memory_space<vmem>>, vector<4x8x64xf32>
      tpu.vector_store %arg9[%c0_108, %c0_109, %c0_110], %174 {strides = array<i32>} : memref<4x8x64xf32, #tpu.memory_space<vmem>>, vector<4x8x64xf32>,
    } else {
    }
    %c0 = arith.constant 0 : index
    %c0_1 = arith.constant 0 : index
    %c0_2 = arith.constant 0 : index
    %3 = vector.load %arg3[%c0, %c0_1, %c0_2] : memref<1x8x512xf32, #tpu.memory_space<vmem>>, vector<1x8x512xf32>
    %4 = vector.shape_cast %3 : vector<1x8x512xf32> to vector<8x512xf32>
    %c0_3 = arith.constant 0 : index
    %c0_4 = arith.constant 0 : index
    %c0_5 = arith.constant 0 : index
    %5 = vector.load %arg4[%c0_3, %c0_4, %c0_5] : memref<1x8x128xf32, #tpu.memory_space<vmem>>, vector<1x8x128xf32>
    %6 = vector.shape_cast %5 : vector<1x8x128xf32> to vector<8x128xf32>
    %c0_6 = arith.constant 0 : index
    %c0_7 = arith.constant 0 : index
    %c0_8 = arith.constant 0 : index
    %7 = vector.load %arg5[%c0_6, %c0_7, %c0_8] : memref<1x8x128xf32, #tpu.memory_space<vmem>>, vector<1x8x128xf32>
    %8 = vector.shape_cast %7 : vector<1x8x128xf32> to vector<8x128xf32>
    %c8_i32 = arith.constant 8 : i32
    %9 = arith.muli %arg1, %c8_i32 : i32
    %c4_i32 = arith.constant 4 : i32
    %10 = arith.addi %c4_i32, %9 : i32
    %11 = tpu.iota {dimensions = array<i32: 0>} : vector<8x8xi32>
    %12 = vector.broadcast %10 : i32 to vector<8x8xi32>
    %13 = arith.addi %12, %11 : vector<8x8xi32>
    %c8_i32_9 = arith.constant 8 : i32
    %14 = arith.muli %arg2, %c8_i32_9 : i32
    %15 = tpu.iota {dimensions = array<i32: 1>} : vector<8x8xi32>
    %16 = vector.broadcast %14 : i32 to vector<8x8xi32>
    %17 = arith.addi %16, %15 : vector<8x8xi32>
    %18 = arith.cmpi sle, %17, %13 : vector<8x8xi32>
    %19 = vector.extract_strided_slice %4 {offsets = [0, 0], sizes = [8, 64], strides = [1, 1]} : vector<8x512xf32> to vector<8x64xf32>
    %20 = vector.extract_strided_slice %6 {offsets = [0, 0], sizes = [8, 64], strides = [1, 1]} : vector<8x128xf32> to vector<8x64xf32>
    %21 = vector.extract_strided_slice %8 {offsets = [0, 0], sizes = [8, 64], strides = [1, 1]} : vector<8x128xf32> to vector<8x64xf32>
    %cst = arith.constant dense<0.000000e+00> : vector<8x8xf32>
    %22 = tpu.matmul %19, %20, %cst {dimension_numbers = #tpu.dot_dimension_numbers<[1], [1], [0], [0], [0, 0, 1, 0], [], []>} : vector<8x64xf32>, vector<8x64xf32>, vector<8x8xf32> -> vector<8x8xf32>
    %cst_10 = arith.constant -1.000000e+30 : f32
    %23 = vector.broadcast %cst_10 : f32 to vector<8x8xf32>
    %24 = arith.select %18, %22, %23 : vector<8x8xi1>, vector<8x8xf32>
    %c0_11 = arith.constant 0 : index
    %c0_12 = arith.constant 0 : index
    %c0_13 = arith.constant 0 : index
    %25 = vector.load %arg7[%c0_11, %c0_12, %c0_13] : memref<4x8x1xf32, #tpu.memory_space<vmem>>, vector<1x8x1xf32>
    %26 = vector.shape_cast %25 : vector<1x8x1xf32> to vector<8x1xf32>
    %c0_14 = arith.constant 0 : index
    %c0_15 = arith.constant 0 : index
    %c0_16 = arith.constant 0 : index
    %27 = vector.load %arg8[%c0_14, %c0_15, %c0_16] : memref<4x8x1xf32, #tpu.memory_space<vmem>>, vector<1x8x1xf32>
    %28 = vector.shape_cast %27 : vector<1x8x1xf32> to vector<8x1xf32>
    %cst_17 = arith.constant dense<0xFF800000> : vector<8xf32>
    %29 = vector.multi_reduction <maximumf>, %24, %cst_17 [1] : vector<8x8xf32> to vector<8xf32>
    %30 = vector.shape_cast %29 : vector<8xf32> to vector<8x1xf32>
    %31 = arith.maximumf %26, %30 : vector<8x1xf32>
    %32 = arith.subf %26, %31 : vector<8x1xf32>
    %33 = math.exp %32 : vector<8x1xf32>
    %34 = vector.broadcast %31 : vector<8x1xf32> to vector<8x8xf32>
    %35 = arith.subf %24, %34 : vector<8x8xf32>
    %36 = math.exp %35 : vector<8x8xf32>
    %37 = arith.mulf %33, %28 : vector<8x1xf32>
    %cst_18 = arith.constant dense<0.000000e+00> : vector<8xf32>
    %38 = vector.multi_reduction <add>, %36, %cst_18 [1] : vector<8x8xf32> to vector<8xf32>
    %39 = vector.shape_cast %38 : vector<8xf32> to vector<8x1xf32>
    %40 = arith.addf %37, %39 : vector<8x1xf32>
    %c0_19 = arith.constant 0 : index
    %c0_20 = arith.constant 0 : index
    %c0_21 = arith.constant 0 : index
    %41 = vector.load %arg8[%c0_19, %c0_20, %c0_21] : memref<4x8x1xf32, #tpu.memory_space<vmem>>, vector<1x8x1xf32>
    %42 = vector.shape_cast %41 : vector<1x8x1xf32> to vector<8x1xf32>
    %43 = vector.shape_cast %40 : vector<8x1xf32> to vector<1x8x1xf32>
    tpu.vector_store %arg8[%c0_19, %c0_20, %c0_21], %43 {strides = array<i32>} : memref<4x8x1xf32, #tpu.memory_space<vmem>>, vector<1x8x1xf32>,
    %c0_22 = arith.constant 0 : index
    %c0_23 = arith.constant 0 : index
    %c0_24 = arith.constant 0 : index
    %44 = vector.load %arg7[%c0_22, %c0_23, %c0_24] : memref<4x8x1xf32, #tpu.memory_space<vmem>>, vector<1x8x1xf32>
    %45 = vector.shape_cast %44 : vector<1x8x1xf32> to vector<8x1xf32>
    %46 = vector.shape_cast %31 : vector<8x1xf32> to vector<1x8x1xf32>
    tpu.vector_store %arg7[%c0_22, %c0_23, %c0_24], %46 {strides = array<i32>} : memref<4x8x1xf32, #tpu.memory_space<vmem>>, vector<1x8x1xf32>,
    %c0_25 = arith.constant 0 : index
    %c0_26 = arith.constant 0 : index
    %c0_27 = arith.constant 0 : index
    %47 = vector.load %arg9[%c0_25, %c0_26, %c0_27] : memref<4x8x64xf32, #tpu.memory_space<vmem>>, vector<1x8x64xf32>
    %48 = vector.shape_cast %47 : vector<1x8x64xf32> to vector<8x64xf32>
    %49 = vector.broadcast %33 : vector<8x1xf32> to vector<8x64xf32>
    %50 = arith.mulf %49, %48 : vector<8x64xf32>
    %cst_28 = arith.constant dense<0.000000e+00> : vector<8x64xf32>
    %51 = tpu.matmul %36, %21, %cst_28 {dimension_numbers = #tpu.dot_dimension_numbers<[1], [0], [0], [1], [0, 0, 1, 1], [], []>} : vector<8x8xf32>, vector<8x64xf32>, vector<8x64xf32> -> vector<8x64xf32>
    %52 = arith.addf %50, %51 : vector<8x64xf32>
    %c0_29 = arith.constant 0 : index
    %c0_30 = arith.constant 0 : index
    %c0_31 = arith.constant 0 : index
    %53 = vector.load %arg9[%c0_29, %c0_30, %c0_31] : memref<4x8x64xf32, #tpu.memory_space<vmem>>, vector<1x8x64xf32>
    %54 = vector.shape_cast %53 : vector<1x8x64xf32> to vector<8x64xf32>
    %55 = vector.shape_cast %52 : vector<8x64xf32> to vector<1x8x64xf32>
    tpu.vector_store %arg9[%c0_29, %c0_30, %c0_31], %55 {strides = array<i32>} : memref<4x8x64xf32, #tpu.memory_space<vmem>>, vector<1x8x64xf32>,
    %56 = vector.extract_strided_slice %4 {offsets = [0, 64], sizes = [8, 64], strides = [1, 1]} : vector<8x512xf32> to vector<8x64xf32>
    %57 = vector.extract_strided_slice %6 {offsets = [0, 0], sizes = [8, 64], strides = [1, 1]} : vector<8x128xf32> to vector<8x64xf32>
    %58 = vector.extract_strided_slice %8 {offsets = [0, 0], sizes = [8, 64], strides = [1, 1]} : vector<8x128xf32> to vector<8x64xf32>
    %cst_32 = arith.constant dense<0.000000e+00> : vector<8x8xf32>
    %59 = tpu.matmul %56, %57, %cst_32 {dimension_numbers = #tpu.dot_dimension_numbers<[1], [1], [0], [0], [0, 0, 1, 0], [], []>} : vector<8x64xf32>, vector<8x64xf32>, vector<8x8xf32> -> vector<8x8xf32>
    %cst_33 = arith.constant -1.000000e+30 : f32
    %60 = vector.broadcast %cst_33 : f32 to vector<8x8xf32>
    %61 = arith.select %18, %59, %60 : vector<8x8xi1>, vector<8x8xf32>
    %c1 = arith.constant 1 : index
    %c0_34 = arith.constant 0 : index
    %c0_35 = arith.constant 0 : index
    %62 = vector.load %arg7[%c1, %c0_34, %c0_35] : memref<4x8x1xf32, #tpu.memory_space<vmem>>, vector<1x8x1xf32>
    %63 = vector.shape_cast %62 : vector<1x8x1xf32> to vector<8x1xf32>
    %c1_36 = arith.constant 1 : index
    %c0_37 = arith.constant 0 : index
    %c0_38 = arith.constant 0 : index
    %64 = vector.load %arg8[%c1_36, %c0_37, %c0_38] : memref<4x8x1xf32, #tpu.memory_space<vmem>>, vector<1x8x1xf32>
    %65 = vector.shape_cast %64 : vector<1x8x1xf32> to vector<8x1xf32>
    %cst_39 = arith.constant dense<0xFF800000> : vector<8xf32>
    %66 = vector.multi_reduction <maximumf>, %61, %cst_39 [1] : vector<8x8xf32> to vector<8xf32>
    %67 = vector.shape_cast %66 : vector<8xf32> to vector<8x1xf32>
    %68 = arith.maximumf %63, %67 : vector<8x1xf32>
    %69 = arith.subf %63, %68 : vector<8x1xf32>
    %70 = math.exp %69 : vector<8x1xf32>
    %71 = vector.broadcast %68 : vector<8x1xf32> to vector<8x8xf32>
    %72 = arith.subf %61, %71 : vector<8x8xf32>
    %73 = math.exp %72 : vector<8x8xf32>
    %74 = arith.mulf %70, %65 : vector<8x1xf32>
    %cst_40 = arith.constant dense<0.000000e+00> : vector<8xf32>
    %75 = vector.multi_reduction <add>, %73, %cst_40 [1] : vector<8x8xf32> to vector<8xf32>
    %76 = vector.shape_cast %75 : vector<8xf32> to vector<8x1xf32>
    %77 = arith.addf %74, %76 : vector<8x1xf32>
    %c1_41 = arith.constant 1 : index
    %c0_42 = arith.constant 0 : index
    %c0_43 = arith.constant 0 : index
    %78 = vector.load %arg8[%c1_41, %c0_42, %c0_43] : memref<4x8x1xf32, #tpu.memory_space<vmem>>, vector<1x8x1xf32>
    %79 = vector.shape_cast %78 : vector<1x8x1xf32> to vector<8x1xf32>
    %80 = vector.shape_cast %77 : vector<8x1xf32> to vector<1x8x1xf32>
    tpu.vector_store %arg8[%c1_41, %c0_42, %c0_43], %80 {strides = array<i32>} : memref<4x8x1xf32, #tpu.memory_space<vmem>>, vector<1x8x1xf32>,
    %c1_44 = arith.constant 1 : index
    %c0_45 = arith.constant 0 : index
    %c0_46 = arith.constant 0 : index
    %81 = vector.load %arg7[%c1_44, %c0_45, %c0_46] : memref<4x8x1xf32, #tpu.memory_space<vmem>>, vector<1x8x1xf32>
    %82 = vector.shape_cast %81 : vector<1x8x1xf32> to vector<8x1xf32>
    %83 = vector.shape_cast %68 : vector<8x1xf32> to vector<1x8x1xf32>
    tpu.vector_store %arg7[%c1_44, %c0_45, %c0_46], %83 {strides = array<i32>} : memref<4x8x1xf32, #tpu.memory_space<vmem>>, vector<1x8x1xf32>,
    %c1_47 = arith.constant 1 : index
    %c0_48 = arith.constant 0 : index
    %c0_49 = arith.constant 0 : index
    %84 = vector.load %arg9[%c1_47, %c0_48, %c0_49] : memref<4x8x64xf32, #tpu.memory_space<vmem>>, vector<1x8x64xf32>
    %85 = vector.shape_cast %84 : vector<1x8x64xf32> to vector<8x64xf32>
    %86 = vector.broadcast %70 : vector<8x1xf32> to vector<8x64xf32>
    %87 = arith.mulf %86, %85 : vector<8x64xf32>
    %cst_50 = arith.constant dense<0.000000e+00> : vector<8x64xf32>
    %88 = tpu.matmul %73, %58, %cst_50 {dimension_numbers = #tpu.dot_dimension_numbers<[1], [0], [0], [1], [0, 0, 1, 1], [], []>} : vector<8x8xf32>, vector<8x64xf32>, vector<8x64xf32> -> vector<8x64xf32>
    %89 = arith.addf %87, %88 : vector<8x64xf32>
    %c1_51 = arith.constant 1 : index
    %c0_52 = arith.constant 0 : index
    %c0_53 = arith.constant 0 : index
    %90 = vector.load %arg9[%c1_51, %c0_52, %c0_53] : memref<4x8x64xf32, #tpu.memory_space<vmem>>, vector<1x8x64xf32>
    %91 = vector.shape_cast %90 : vector<1x8x64xf32> to vector<8x64xf32>
    %92 = vector.shape_cast %89 : vector<8x64xf32> to vector<1x8x64xf32>
    tpu.vector_store %arg9[%c1_51, %c0_52, %c0_53], %92 {strides = array<i32>} : memref<4x8x64xf32, #tpu.memory_space<vmem>>, vector<1x8x64xf32>,
    %93 = vector.extract_strided_slice %4 {offsets = [0, 128], sizes = [8, 64], strides = [1, 1]} : vector<8x512xf32> to vector<8x64xf32>
    %94 = vector.extract_strided_slice %6 {offsets = [0, 64], sizes = [8, 64], strides = [1, 1]} : vector<8x128xf32> to vector<8x64xf32>
    %95 = vector.extract_strided_slice %8 {offsets = [0, 64], sizes = [8, 64], strides = [1, 1]} : vector<8x128xf32> to vector<8x64xf32>
    %cst_54 = arith.constant dense<0.000000e+00> : vector<8x8xf32>
    %96 = tpu.matmul %93, %94, %cst_54 {dimension_numbers = #tpu.dot_dimension_numbers<[1], [1], [0], [0], [0, 0, 1, 0], [], []>} : vector<8x64xf32>, vector<8x64xf32>, vector<8x8xf32> -> vector<8x8xf32>
    %cst_55 = arith.constant -1.000000e+30 : f32
    %97 = vector.broadcast %cst_55 : f32 to vector<8x8xf32>
    %98 = arith.select %18, %96, %97 : vector<8x8xi1>, vector<8x8xf32>
    %c2 = arith.constant 2 : index
    %c0_56 = arith.constant 0 : index
    %c0_57 = arith.constant 0 : index
    %99 = vector.load %arg7[%c2, %c0_56, %c0_57] : memref<4x8x1xf32, #tpu.memory_space<vmem>>, vector<1x8x1xf32>
    %100 = vector.shape_cast %99 : vector<1x8x1xf32> to vector<8x1xf32>
    %c2_58 = arith.constant 2 : index
    %c0_59 = arith.constant 0 : index
    %c0_60 = arith.constant 0 : index
    %101 = vector.load %arg8[%c2_58, %c0_59, %c0_60] : memref<4x8x1xf32, #tpu.memory_space<vmem>>, vector<1x8x1xf32>
    %102 = vector.shape_cast %101 : vector<1x8x1xf32> to vector<8x1xf32>
    %cst_61 = arith.constant dense<0xFF800000> : vector<8xf32>
    %103 = vector.multi_reduction <maximumf>, %98, %cst_61 [1] : vector<8x8xf32> to vector<8xf32>
    %104 = vector.shape_cast %103 : vector<8xf32> to vector<8x1xf32>
    %105 = arith.maximumf %100, %104 : vector<8x1xf32>
    %106 = arith.subf %100, %105 : vector<8x1xf32>
    %107 = math.exp %106 : vector<8x1xf32>
    %108 = vector.broadcast %105 : vector<8x1xf32> to vector<8x8xf32>
    %109 = arith.subf %98, %108 : vector<8x8xf32>
    %110 = math.exp %109 : vector<8x8xf32>
    %111 = arith.mulf %107, %102 : vector<8x1xf32>
    %cst_62 = arith.constant dense<0.000000e+00> : vector<8xf32>
    %112 = vector.multi_reduction <add>, %110, %cst_62 [1] : vector<8x8xf32> to vector<8xf32>
    %113 = vector.shape_cast %112 : vector<8xf32> to vector<8x1xf32>
    %114 = arith.addf %111, %113 : vector<8x1xf32>
    %c2_63 = arith.constant 2 : index
    %c0_64 = arith.constant 0 : index
    %c0_65 = arith.constant 0 : index
    %115 = vector.load %arg8[%c2_63, %c0_64, %c0_65] : memref<4x8x1xf32, #tpu.memory_space<vmem>>, vector<1x8x1xf32>
    %116 = vector.shape_cast %115 : vector<1x8x1xf32> to vector<8x1xf32>
    %117 = vector.shape_cast %114 : vector<8x1xf32> to vector<1x8x1xf32>
    tpu.vector_store %arg8[%c2_63, %c0_64, %c0_65], %117 {strides = array<i32>} : memref<4x8x1xf32, #tpu.memory_space<vmem>>, vector<1x8x1xf32>,
    %c2_66 = arith.constant 2 : index
    %c0_67 = arith.constant 0 : index
    %c0_68 = arith.constant 0 : index
    %118 = vector.load %arg7[%c2_66, %c0_67, %c0_68] : memref<4x8x1xf32, #tpu.memory_space<vmem>>, vector<1x8x1xf32>
    %119 = vector.shape_cast %118 : vector<1x8x1xf32> to vector<8x1xf32>
    %120 = vector.shape_cast %105 : vector<8x1xf32> to vector<1x8x1xf32>
    tpu.vector_store %arg7[%c2_66, %c0_67, %c0_68], %120 {strides = array<i32>} : memref<4x8x1xf32, #tpu.memory_space<vmem>>, vector<1x8x1xf32>,
    %c2_69 = arith.constant 2 : index
    %c0_70 = arith.constant 0 : index
    %c0_71 = arith.constant 0 : index
    %121 = vector.load %arg9[%c2_69, %c0_70, %c0_71] : memref<4x8x64xf32, #tpu.memory_space<vmem>>, vector<1x8x64xf32>
    %122 = vector.shape_cast %121 : vector<1x8x64xf32> to vector<8x64xf32>
    %123 = vector.broadcast %107 : vector<8x1xf32> to vector<8x64xf32>
    %124 = arith.mulf %123, %122 : vector<8x64xf32>
    %cst_72 = arith.constant dense<0.000000e+00> : vector<8x64xf32>
    %125 = tpu.matmul %110, %95, %cst_72 {dimension_numbers = #tpu.dot_dimension_numbers<[1], [0], [0], [1], [0, 0, 1, 1], [], []>} : vector<8x8xf32>, vector<8x64xf32>, vector<8x64xf32> -> vector<8x64xf32>
    %126 = arith.addf %124, %125 : vector<8x64xf32>
    %c2_73 = arith.constant 2 : index
    %c0_74 = arith.constant 0 : index
    %c0_75 = arith.constant 0 : index
    %127 = vector.load %arg9[%c2_73, %c0_74, %c0_75] : memref<4x8x64xf32, #tpu.memory_space<vmem>>, vector<1x8x64xf32>
    %128 = vector.shape_cast %127 : vector<1x8x64xf32> to vector<8x64xf32>
    %129 = vector.shape_cast %126 : vector<8x64xf32> to vector<1x8x64xf32>
    tpu.vector_store %arg9[%c2_73, %c0_74, %c0_75], %129 {strides = array<i32>} : memref<4x8x64xf32, #tpu.memory_space<vmem>>, vector<1x8x64xf32>,
    %130 = vector.extract_strided_slice %4 {offsets = [0, 192], sizes = [8, 64], strides = [1, 1]} : vector<8x512xf32> to vector<8x64xf32>
    %131 = vector.extract_strided_slice %6 {offsets = [0, 64], sizes = [8, 64], strides = [1, 1]} : vector<8x128xf32> to vector<8x64xf32>
    %132 = vector.extract_strided_slice %8 {offsets = [0, 64], sizes = [8, 64], strides = [1, 1]} : vector<8x128xf32> to vector<8x64xf32>
    %cst_76 = arith.constant dense<0.000000e+00> : vector<8x8xf32>
    %133 = tpu.matmul %130, %131, %cst_76 {dimension_numbers = #tpu.dot_dimension_numbers<[1], [1], [0], [0], [0, 0, 1, 0], [], []>} : vector<8x64xf32>, vector<8x64xf32>, vector<8x8xf32> -> vector<8x8xf32>
    %cst_77 = arith.constant -1.000000e+30 : f32
    %134 = vector.broadcast %cst_77 : f32 to vector<8x8xf32>
    %135 = arith.select %18, %133, %134 : vector<8x8xi1>, vector<8x8xf32>
    %c3 = arith.constant 3 : index
    %c0_78 = arith.constant 0 : index
    %c0_79 = arith.constant 0 : index
    %136 = vector.load %arg7[%c3, %c0_78, %c0_79] : memref<4x8x1xf32, #tpu.memory_space<vmem>>, vector<1x8x1xf32>
    %137 = vector.shape_cast %136 : vector<1x8x1xf32> to vector<8x1xf32>
    %c3_80 = arith.constant 3 : index
    %c0_81 = arith.constant 0 : index
    %c0_82 = arith.constant 0 : index
    %138 = vector.load %arg8[%c3_80, %c0_81, %c0_82] : memref<4x8x1xf32, #tpu.memory_space<vmem>>, vector<1x8x1xf32>
    %139 = vector.shape_cast %138 : vector<1x8x1xf32> to vector<8x1xf32>
    %cst_83 = arith.constant dense<0xFF800000> : vector<8xf32>
    %140 = vector.multi_reduction <maximumf>, %135, %cst_83 [1] : vector<8x8xf32> to vector<8xf32>
    %141 = vector.shape_cast %140 : vector<8xf32> to vector<8x1xf32>
    %142 = arith.maximumf %137, %141 : vector<8x1xf32>
    %143 = arith.subf %137, %142 : vector<8x1xf32>
    %144 = math.exp %143 : vector<8x1xf32>
    %145 = vector.broadcast %142 : vector<8x1xf32> to vector<8x8xf32>
    %146 = arith.subf %135, %145 : vector<8x8xf32>
    %147 = math.exp %146 : vector<8x8xf32>
    %148 = arith.mulf %144, %139 : vector<8x1xf32>
    %cst_84 = arith.constant dense<0.000000e+00> : vector<8xf32>
    %149 = vector.multi_reduction <add>, %147, %cst_84 [1] : vector<8x8xf32> to vector<8xf32>
    %150 = vector.shape_cast %149 : vector<8xf32> to vector<8x1xf32>
    %151 = arith.addf %148, %150 : vector<8x1xf32>
    %c3_85 = arith.constant 3 : index
    %c0_86 = arith.constant 0 : index
    %c0_87 = arith.constant 0 : index
    %152 = vector.load %arg8[%c3_85, %c0_86, %c0_87] : memref<4x8x1xf32, #tpu.memory_space<vmem>>, vector<1x8x1xf32>
    %153 = vector.shape_cast %152 : vector<1x8x1xf32> to vector<8x1xf32>
    %154 = vector.shape_cast %151 : vector<8x1xf32> to vector<1x8x1xf32>
    tpu.vector_store %arg8[%c3_85, %c0_86, %c0_87], %154 {strides = array<i32>} : memref<4x8x1xf32, #tpu.memory_space<vmem>>, vector<1x8x1xf32>,
    %c3_88 = arith.constant 3 : index
    %c0_89 = arith.constant 0 : index
    %c0_90 = arith.constant 0 : index
    %155 = vector.load %arg7[%c3_88, %c0_89, %c0_90] : memref<4x8x1xf32, #tpu.memory_space<vmem>>, vector<1x8x1xf32>
    %156 = vector.shape_cast %155 : vector<1x8x1xf32> to vector<8x1xf32>
    %157 = vector.shape_cast %142 : vector<8x1xf32> to vector<1x8x1xf32>
    tpu.vector_store %arg7[%c3_88, %c0_89, %c0_90], %157 {strides = array<i32>} : memref<4x8x1xf32, #tpu.memory_space<vmem>>, vector<1x8x1xf32>,
    %c3_91 = arith.constant 3 : index
    %c0_92 = arith.constant 0 : index
    %c0_93 = arith.constant 0 : index
    %158 = vector.load %arg9[%c3_91, %c0_92, %c0_93] : memref<4x8x64xf32, #tpu.memory_space<vmem>>, vector<1x8x64xf32>
    %159 = vector.shape_cast %158 : vector<1x8x64xf32> to vector<8x64xf32>
    %160 = vector.broadcast %144 : vector<8x1xf32> to vector<8x64xf32>
    %161 = arith.mulf %160, %159 : vector<8x64xf32>
    %cst_94 = arith.constant dense<0.000000e+00> : vector<8x64xf32>
    %162 = tpu.matmul %147, %132, %cst_94 {dimension_numbers = #tpu.dot_dimension_numbers<[1], [0], [0], [1], [0, 0, 1, 1], [], []>} : vector<8x8xf32>, vector<8x64xf32>, vector<8x64xf32> -> vector<8x64xf32>
    %163 = arith.addf %161, %162 : vector<8x64xf32>
    %c3_95 = arith.constant 3 : index
    %c0_96 = arith.constant 0 : index
    %c0_97 = arith.constant 0 : index
    %164 = vector.load %arg9[%c3_95, %c0_96, %c0_97] : memref<4x8x64xf32, #tpu.memory_space<vmem>>, vector<1x8x64xf32>
    %165 = vector.shape_cast %164 : vector<1x8x64xf32> to vector<8x64xf32>
    %166 = vector.shape_cast %163 : vector<8x64xf32> to vector<1x8x64xf32>
    tpu.vector_store %arg9[%c3_95, %c0_96, %c0_97], %166 {strides = array<i32>} : memref<4x8x64xf32, #tpu.memory_space<vmem>>, vector<1x8x64xf32>,
    %c1_i32 = arith.constant 1 : i32
    %167 = arith.cmpi eq, %arg2, %c1_i32 : i32
    %168 = arith.extui %167 : i1 to i32
    %c0_i32_98 = arith.constant 0 : i32
    %169 = arith.cmpi ne, %168, %c0_i32_98 : i32
    scf.if %169 {
      %c0_99 = arith.constant 0 : index
      %c0_100 = arith.constant 0 : index
      %c0_101 = arith.constant 0 : index
      %170 = vector.load %arg8[%c0_99, %c0_100, %c0_101] : memref<4x8x1xf32, #tpu.memory_space<vmem>>, vector<1x8x1xf32>
      %171 = vector.shape_cast %170 : vector<1x8x1xf32> to vector<8x1xf32>
      %172 = tpu.reciprocal %171 : vector<8x1xf32> -> vector<8x1xf32>
      %c0_102 = arith.constant 0 : index
      %c0_103 = arith.constant 0 : index
      %c0_104 = arith.constant 0 : index
      %173 = vector.load %arg9[%c0_102, %c0_103, %c0_104] : memref<4x8x64xf32, #tpu.memory_space<vmem>>, vector<1x8x64xf32>
      %174 = vector.shape_cast %173 : vector<1x8x64xf32> to vector<8x64xf32>
      %175 = vector.broadcast %172 : vector<8x1xf32> to vector<8x64xf32>
      %176 = arith.mulf %174, %175 : vector<8x64xf32>
      %c1_105 = arith.constant 1 : index
      %c0_106 = arith.constant 0 : index
      %c0_107 = arith.constant 0 : index
      %177 = vector.load %arg8[%c1_105, %c0_106, %c0_107] : memref<4x8x1xf32, #tpu.memory_space<vmem>>, vector<1x8x1xf32>
      %178 = vector.shape_cast %177 : vector<1x8x1xf32> to vector<8x1xf32>
      %179 = tpu.reciprocal %178 : vector<8x1xf32> -> vector<8x1xf32>
      %c1_108 = arith.constant 1 : index
      %c0_109 = arith.constant 0 : index
      %c0_110 = arith.constant 0 : index
      %180 = vector.load %arg9[%c1_108, %c0_109, %c0_110] : memref<4x8x64xf32, #tpu.memory_space<vmem>>, vector<1x8x64xf32>
      %181 = vector.shape_cast %180 : vector<1x8x64xf32> to vector<8x64xf32>
      %182 = vector.broadcast %179 : vector<8x1xf32> to vector<8x64xf32>
      %183 = arith.mulf %181, %182 : vector<8x64xf32>
      %c2_111 = arith.constant 2 : index
      %c0_112 = arith.constant 0 : index
      %c0_113 = arith.constant 0 : index
      %184 = vector.load %arg8[%c2_111, %c0_112, %c0_113] : memref<4x8x1xf32, #tpu.memory_space<vmem>>, vector<1x8x1xf32>
      %185 = vector.shape_cast %184 : vector<1x8x1xf32> to vector<8x1xf32>
      %186 = tpu.reciprocal %185 : vector<8x1xf32> -> vector<8x1xf32>
      %c2_114 = arith.constant 2 : index
      %c0_115 = arith.constant 0 : index
      %c0_116 = arith.constant 0 : index
      %187 = vector.load %arg9[%c2_114, %c0_115, %c0_116] : memref<4x8x64xf32, #tpu.memory_space<vmem>>, vector<1x8x64xf32>
      %188 = vector.shape_cast %187 : vector<1x8x64xf32> to vector<8x64xf32>
      %189 = vector.broadcast %186 : vector<8x1xf32> to vector<8x64xf32>
      %190 = arith.mulf %188, %189 : vector<8x64xf32>
      %c3_117 = arith.constant 3 : index
      %c0_118 = arith.constant 0 : index
      %c0_119 = arith.constant 0 : index
      %191 = vector.load %arg8[%c3_117, %c0_118, %c0_119] : memref<4x8x1xf32, #tpu.memory_space<vmem>>, vector<1x8x1xf32>
      %192 = vector.shape_cast %191 : vector<1x8x1xf32> to vector<8x1xf32>
      %193 = tpu.reciprocal %192 : vector<8x1xf32> -> vector<8x1xf32>
      %c3_120 = arith.constant 3 : index
      %c0_121 = arith.constant 0 : index
      %c0_122 = arith.constant 0 : index
      %194 = vector.load %arg9[%c3_120, %c0_121, %c0_122] : memref<4x8x64xf32, #tpu.memory_space<vmem>>, vector<1x8x64xf32>
      %195 = vector.shape_cast %194 : vector<1x8x64xf32> to vector<8x64xf32>
      %196 = vector.broadcast %193 : vector<8x1xf32> to vector<8x64xf32>
      %197 = arith.mulf %195, %196 : vector<8x64xf32>
      %198 = tpu.concatenate %176, %183, %190, %197 in 1 : vector<8x64xf32>, vector<8x64xf32>, vector<8x64xf32>, vector<8x64xf32> -> vector<8x256xf32>
      %c0_123 = arith.constant 0 : index
      %c0_124 = arith.constant 0 : index
      %c0_125 = arith.constant 0 : index
      %199 = vector.load %arg6[%c0_123, %c0_124, %c0_125] : memref<1x8x256xf32, #tpu.memory_space<vmem>>, vector<1x8x256xf32>
      %200 = vector.shape_cast %199 : vector<1x8x256xf32> to vector<8x256xf32>
      %201 = vector.shape_cast %198 : vector<8x256xf32> to vector<1x8x256xf32>
      tpu.vector_store %arg6[%c0_123, %c0_124, %c0_125], %201 {strides = array<i32>} : memref<1x8x256xf32, #tpu.memory_space<vmem>>, vector<1x8x256xf32>,
    } else {
    }
    return
  }
  func.func @transform_0(%arg0: i32, %arg1: i32, %arg2: i32) -> (i32, i32, i32) {
    %c0_i32 = arith.constant 0 : i32
    %c0_i32_0 = arith.constant 0 : i32
    return %arg0, %arg1, %c0_i32 : i32, i32, i32
  }
  func.func @transform_1(%arg0: i32, %arg1: i32, %arg2: i32) -> (i32, i32, i32) {
    %c0_i32 = arith.constant 0 : i32
    %c0_i32_0 = arith.constant 0 : i32
    return %arg0, %arg2, %c0_i32 : i32, i32, i32
  }
  func.func @transform_2(%arg0: i32, %arg1: i32, %arg2: i32) -> (i32, i32, i32) {
    %c0_i32 = arith.constant 0 : i32
    %c0_i32_0 = arith.constant 0 : i32
    return %arg0, %arg2, %c0_i32 : i32, i32, i32
  }
  func.func @transform_3(%arg0: i32, %arg1: i32, %arg2: i32) -> (i32, i32, i32) {
    %c0_i32 = arith.constant 0 : i32
    %c0_i32_0 = arith.constant 0 : i32
    return %arg0, %arg1, %c0_i32 : i32, i32, i32
  }
}

</mosaic_0001>

<llo_original>
// kernel: tile.23
$region0: #{tile.23}
  %s0 = inlined_call_operand.vmem [shape: f32[8,2,64], index: 0, kind: input, shape index: {}]
  %s1 = inlined_call_operand.vmem [shape: f32[8,128], index: 1, kind: output, shape index: {}]
  $region1: #{tile.23} parent=0
    #allocation0 [shape = 'u8[32768]{0}', space=vmem, size = 0x8000, scoped, tag = 'scoped mem for input reshape']
    %s3 = sshllo.u32 0, 2
    %s4 = smul.addr 2, 7
    %s5 = scalar_lea.vmem %s0, %s4
    %v6 = vld [vmem:[%s5] sm:%s3]
    %s7 = scalar_lea.vmem [#allocation0], 56
    %8 = vst [vmem:[%s7] sm:%s3] %v6
    %s9 = smul.addr 2, 6
    %s10 = scalar_lea.vmem %s0, %s9
    %v11 = vld [vmem:[%s10] sm:%s3]
    %s12 = scalar_lea.vmem [#allocation0], 48
    %13 = vst [vmem:[%s12] sm:%s3] %v11
    %s14 = smul.addr 2, 5
    %s15 = scalar_lea.vmem %s0, %s14
    %v16 = vld [vmem:[%s15] sm:%s3]
    %s17 = scalar_lea.vmem [#allocation0], 40
    %18 = vst [vmem:[%s17] sm:%s3] %v16
    %s19 = smul.addr 2, 4
    %s20 = scalar_lea.vmem %s0, %s19
    %v21 = vld [vmem:[%s20] sm:%s3]
    %s22 = scalar_lea.vmem [#allocation0], 32
    %23 = vst [vmem:[%s22] sm:%s3] %v21
    %s24 = smul.addr 2, 3
    %s25 = scalar_lea.vmem %s0, %s24
    %v26 = vld [vmem:[%s25] sm:%s3]
    %s27 = scalar_lea.vmem [#allocation0], 24
    %28 = vst [vmem:[%s27] sm:%s3] %v26
    %s29 = smul.addr 2, 2
    %s30 = scalar_lea.vmem %s0, %s29
    %v31 = vld [vmem:[%s30] sm:%s3]
    %s32 = scalar_lea.vmem [#allocation0], 16
    %33 = vst [vmem:[%s32] sm:%s3] %v31
    %s34 = scalar_lea.vmem %s0, 2
    %v35 = vld [vmem:[%s34] sm:%s3]
    %s36 = scalar_lea.vmem [#allocation0], 8
    %37 = vst [vmem:[%s36] sm:%s3] %v35
    %v38 = vld [vmem:[%s0] sm:%s3]
    %39 = vst [vmem:[#allocation0] sm:%s3] %v38
    %v40 = vld [vmem:[#allocation0] ss:$8 sm:$0xf]
    %v41 = vld [vmem:[#allocation0] ss:$8 sm:$0xf0]
    %vm42 = vcmask 1047556
    %v43 = vsel %vm42, %v41, %v40
    %vm44 = vcmask 523264
    %45 = vst.msk [vmem:[%s1] sm:$0xff] %vm44, %v43
    %s46 = scalar_lea.vmem [#allocation0], 1
    %v47 = vld [vmem:[%s46] ss:$8 sm:$0xf]
    %s48 = scalar_lea.vmem [#allocation0], 1
    %v49 = vld [vmem:[%s48] ss:$8 sm:$0xf0]
    %vm50 = vcmask 1047556
    %v51 = vsel %vm50, %v49, %v47
    %52 = vrot.lane.b32.xlu0 %v51, 64
    %v53 = vpop.permute.xlu0 %52
    %vm54 = vcmask 1048064
    %55 = vst.msk [vmem:[%s1] sm:$0xff] %vm54, %v53

// kernel: attention_forward_pallas.7
$region0: #{attention_forward_pallas.7}
  #allocation0 [shape = 'u32[]', space=smem, size = 0x4, offset = 0x4, fixed_abs, tag = 'smem constant byte address 0x4 - core index']
  #allocation1 [shape = 'u32[144,128]{1,0:T(1,128)}', space=vmem, size = 0x12000, scoped, tag = 'internal scratch']
  #allocation2 [shape = 'f32[8,128]{1,0:T(8,128)}', space=vmem, size = 0x1000, scoped, tag = 'scratch operand']
  %s0 = inlined_call_operand.vmem [shape: f32[16,256], index: 0, kind: input, shape index: {}]
  %s1 = inlined_call_operand.vmem [shape: f32[256,256], index: 1, kind: input, shape index: {}]
  %s2 = inlined_call_operand.hbm [shape: f32[16,256], index: 2, kind: output, shape index: {}]
  %s3 = sld [smem:[#allocation0]]
  $region87: #{attention_forward_pallas.7} parent=0
    _
  %s5 = ssub.s32 1, %s3
  %s6 = scalar_select 0, %s5, %s3
  $region1: #{attention_forward_pallas.7} parent=0
    #allocation3 [shape = 'u8[131072]{0}', space=vmem, size = 0x20000, scoped, tag = 'input window, operand 1']
    #allocation4 [shape = 'u8[8192]{0}', space=vmem, size = 0x2000, scoped, tag = 'output window, operand 0']
    #allocation5 [shape = 's32[2]{0}', space=sflag, size = 0x8, scoped, tag = 'scoped memory for attention_forward_pallas.7']
    %7 = vsyncpa [#allocation5], 0
    %s8 = scalar_lea.sflag [#allocation5], 1
    %9 = vsyncpa %s8, 0
    loop: start=0, step=1, limit=10
    $region2: #{attention_forward_pallas.7} parent=1 // loop_pre_header
      _
    $region3: #{attention_forward_pallas.7} parent=1 // loop_header
      %s11 = sphi 0, %s15
      %p12 = scmp.ge.s32.totalorder %s11, 10
      %s18 = sphi 0, %s37
      %s19 = sphi 0, %s33
      %s20 = sphi 0, %s29
      %s21 = sphi 0, %s18
      %s22 = sphi 0, %s19
      %s23 = sphi 0, %s20
      %s24 = sphi 0, %s21
      %s25 = sphi 0, %s22
      %s26 = sphi 0, %s23
      %s42 = sphi 0, %s44
      %s45 = sphi 0, %s42
      %s46 = sphi 0, %s45
      %s62 = sphi 0, %s46
      %s70 = sphi 0, %s72
      %s73 = sphi 0, %s70
      %s74 = sphi 0, %s73
      %s90 = sphi 0, %s74
      %s98 = sphi 0, %s100
      %s101 = sphi 0, %s98
      %s102 = sphi 0, %s101
      %s118 = sphi 0, %s102
    $region4: #{attention_forward_pallas.7} parent=1 // loop_header_branch
      %14 = sbr.rel (%p12) target = $region8
    $region5: #{attention_forward_pallas.7} parent=1 // loop_body
      %s16 = ssub.s32 %s11, 1
      %s17 = ssub.s32 %s11, 2
      %s27 = sadd.s32 1, %s20
      %p28 = scmp.ge.s32.totalorder %s27, 2
      %s29 = scalar_select %p28, 0, %s27
      %s30 = sadd.s32 1, %s19
      %s31 = scalar_select %p28, %s30, %s19
      %p32 = scmp.ge.s32.totalorder %s31, 2
      %s33 = scalar_select %p32, 0, %s31
      %s34 = sadd.s32 1, %s18
      %s35 = scalar_select %p32, %s34, %s18
      %p36 = scmp.ge.s32.totalorder %s35, 2
      %s37 = scalar_select %p36, 0, %s35
      %s38 = ssub.s32 %s18, %s37
      %s39 = ssub.s32 %s20, %s29
      %s40 = sor.u32 %s38, %s39
      %p41 = scmp.eq.s32.totalorder %s40, 0
      %s43 = sadd.s32 %s42, 1
      %s44 = scalar_select %p41, %s42, %s43
      %p47 = pneg %p41
      %p48 = scmp.eq.s32.totalorder %s11, 7
      %p49 = por %p47, %p48
      %p50 = scmp.ne.s32.totalorder %s42, %s45
      %p51 = scmp.eq.s32.totalorder %s11, 0
      %p52 = por %p50, %p51
      %p53 = scmp.ne.s32.totalorder %s42, %s45
      %p54 = scmp.eq.s32.totalorder %s16, 7
      %p55 = por %p53, %p54
      %p56 = scmp.ne.s32.totalorder %s45, %s46
      %p57 = scmp.eq.s32.totalorder %s16, 0
      %p58 = por %p56, %p57
      %p59 = scmp.ne.s32.totalorder %s45, %s46
      %p60 = scmp.eq.s32.totalorder %s17, 7
      %p61 = por %p59, %p60
      %p63 = scmp.ne.s32.totalorder %s46, %s62
      %p64 = scmp.eq.s32.totalorder %s17, 0
      %p65 = por %p63, %p64
      %s66 = ssub.s32 %s20, %s29
      %s67 = ssub.s32 %s19, %s33
      %s68 = sor.u32 %s66, %s67
      %p69 = scmp.eq.s32.totalorder %s68, 0
      %s71 = sadd.s32 %s70, 1
      %s72 = scalar_select %p69, %s70, %s71
      %p75 = pneg %p69
      %p76 = scmp.eq.s32.totalorder %s11, 7
      %p77 = por %p75, %p76
      %p78 = scmp.ne.s32.totalorder %s70, %s73
      %p79 = scmp.eq.s32.totalorder %s11, 0
      %p80 = por %p78, %p79
      %p81 = scmp.ne.s32.totalorder %s70, %s73
      %p82 = scmp.eq.s32.totalorder %s16, 7
      %p83 = por %p81, %p82
      %p84 = scmp.ne.s32.totalorder %s73, %s74
      %p85 = scmp.eq.s32.totalorder %s16, 0
      %p86 = por %p84, %p85
      %p87 = scmp.ne.s32.totalorder %s73, %s74
      %p88 = scmp.eq.s32.totalorder %s17, 7
      %p89 = por %p87, %p88
      %p91 = scmp.ne.s32.totalorder %s74, %s90
      %p92 = scmp.eq.s32.totalorder %s17, 0
      %p93 = por %p91, %p92
      %s94 = ssub.s32 %s18, %s37
      %s95 = ssub.s32 %s19, %s33
      %s96 = sor.u32 %s94, %s95
      %p97 = scmp.eq.s32.totalorder %s96, 0
      %s99 = sadd.s32 %s98, 1
      %s100 = scalar_select %p97, %s98, %s99
      %p103 = pneg %p97
      %p104 = scmp.eq.s32.totalorder %s11, 7
      %p105 = por %p103, %p104
      %p106 = scmp.ne.s32.totalorder %s98, %s101
      %p107 = scmp.eq.s32.totalorder %s11, 0
      %p108 = por %p106, %p107
      %p109 = scmp.ne.s32.totalorder %s98, %s101
      %p110 = scmp.eq.s32.totalorder %s16, 7
      %p111 = por %p109, %p110
      %p112 = scmp.ne.s32.totalorder %s101, %s102
      %p113 = scmp.eq.s32.totalorder %s16, 0
      %p114 = por %p112, %p113
      %p115 = scmp.ne.s32.totalorder %s101, %s102
      %p116 = scmp.eq.s32.totalorder %s17, 7
      %p117 = por %p115, %p116
      %p119 = scmp.ne.s32.totalorder %s102, %s118
      %p120 = scmp.eq.s32.totalorder %s17, 0
      %p121 = por %p119, %p120
      %p122 = scmp.le.s32.totalorder 1, %s11
      %p123 = scmp.lt.s32.totalorder %s11, 9
      %p124 = pnand %p122, %p123
      %p125 = pneg %p124
      // Predicated region
      $region9: #{attention_forward_pallas.7} parent=5 // pred_check
        _
      $region10: #{attention_forward_pallas.7} parent=5 // pred_check_branch
        %127 = sbr.rel (%p124) target = $region12
      $region11: #{attention_forward_pallas.7} parent=5 // pred_region
        %s128 = ssub.s32 %s11, 1
      $region12: #{attention_forward_pallas.7} parent=5 // pred_fallthru
        _
      %p129 = scmp.lt.s32.totalorder %s11, 8
      // Predicated region
      $region13: #{attention_forward_pallas.7} parent=5 // pred_check
        %p130 = pneg %p129
      $region14: #{attention_forward_pallas.7} parent=5 // pred_check_branch
        %132 = sbr.rel (%p130) target = $region16
      $region15: #{attention_forward_pallas.7} parent=5 // pred_region
        // Predicated region
        $region17: #{attention_forward_pallas.7} parent=15 // pred_check
          %p133 = pneg %p52
        $region18: #{attention_forward_pallas.7} parent=15 // pred_check_branch
          %135 = sbr.rel (%p133) target = $region20
        $region19: #{attention_forward_pallas.7} parent=15 // pred_region
          %p136 = scmp.lt.s32.totalorder %s18, 1
          %s137 = scalar_select %p136, %s18, 1
          %p138 = scmp.lt.s32.totalorder %s20, 1
          %s139 = scalar_select %p138, %s20, 1
          %s140 = smul.addr %s137, 2
          %s141 = sadd.s32 %s139, %s140
          %s142 = smul.addr %s141, 8
          %s143 = scalar_lea.vmem %s0, %s142
        $region20: #{attention_forward_pallas.7} parent=15 // pred_fallthru
          _
        // Predicated region
        $region21: #{attention_forward_pallas.7} parent=15 // pred_check
          %p144 = pneg %p80
        $region22: #{attention_forward_pallas.7} parent=15 // pred_check_branch
          %146 = sbr.rel (%p144) target = $region24
        $region23: #{attention_forward_pallas.7} parent=15 // pred_region
          %s147 = sand.u32 %s70, 1
          %s148 = sand.u32 %s70, 1
          %s149 = smul.addr %s148, 128
          %s150 = scalar_lea.vmem [#allocation3], %s149
          %s151 = smul.u32 16, %s20
          %s152 = smul.addr %s151, 2
          %s153 = sadd.s32 %s19, %s152
          %s154 = smul.addr %s153, 8
          %s155 = scalar_lea.vmem %s1, %s154
          // Predicated region
          $region25: #{attention_forward_pallas.7} parent=23 // pred_check
            _
          $region26: #{attention_forward_pallas.7} parent=23 // pred_check_branch
            %157 = sbr.rel (0) target = $region28
          $region27: #{attention_forward_pallas.7} parent=23 // pred_region
            // Predicated region
            $region29: #{attention_forward_pallas.7} parent=27 // pred_check
              _
            $region30: #{attention_forward_pallas.7} parent=27 // pred_check_branch
              %159 = sbr.rel (0) target = $region32
            $region31: #{attention_forward_pallas.7} parent=27 // pred_region
              // Predicated region
              $region44: #{attention_forward_pallas.7} parent=31 // pred_check
                _
              $region45: #{attention_forward_pallas.7} parent=31 // pred_check_branch
                %204 = sbr.rel (0) target = $region47
              $region46: #{attention_forward_pallas.7} parent=31 // pred_region
                loop: start=0, step=1, limit=1
                $region48: #{attention_forward_pallas.7} parent=46 // loop_pre_header
                  _
                $region49: #{attention_forward_pallas.7} parent=46 // loop_header
                  %s206 = sphi 0, %s210
                  %p207 = scmp.ge.s32.totalorder %s206, 1
                  %s211 = sphi %s155, %s155
                  %s212 = sphi %s150, %s150
                $region50: #{attention_forward_pallas.7} parent=46 // loop_header_branch
                  %209 = sbr.rel (%p207) target = $region54
                $region51: #{attention_forward_pallas.7} parent=46 // loop_body
                  %v213 = vld [vmem:[%s211] sm:$0xff]
                  %214 = vst [vmem:[%s212] sm:$0xff] %v213
                  %v215 = vld [vmem:[%s211 + $0x10] sm:$0xff]
                  %216 = vst [vmem:[%s212 + $0x8] sm:$0xff] %v215
                  %v217 = vld [vmem:[%s211 + $0x20] sm:$0xff]
                  %218 = vst [vmem:[%s212 + $0x10] sm:$0xff] %v217
                  %v219 = vld [vmem:[%s211 + $0x30] sm:$0xff]
                  %220 = vst [vmem:[%s212 + $0x18] sm:$0xff] %v219
                  %v221 = vld [vmem:[%s211 + $0x40] sm:$0xff]
                  %222 = vst [vmem:[%s212 + $0x20] sm:$0xff] %v221
                  %v223 = vld [vmem:[%s211 + $0x50] sm:$0xff]
                  %224 = vst [vmem:[%s212 + $0x28] sm:$0xff] %v223
                  %v225 = vld [vmem:[%s211 + $0x60] sm:$0xff]
                  %226 = vst [vmem:[%s212 + $0x30] sm:$0xff] %v225
                  %v227 = vld [vmem:[%s211 + $0x70] sm:$0xff]
                  %228 = vst [vmem:[%s212 + $0x38] sm:$0xff] %v227
                  %v229 = vld [vmem:[%s211 + $0x80] sm:$0xff]
                  %230 = vst [vmem:[%s212 + $0x40] sm:$0xff] %v229
                  %v231 = vld [vmem:[%s211 + $0x90] sm:$0xff]
                  %232 = vst [vmem:[%s212 + $0x48] sm:$0xff] %v231
                  %v233 = vld [vmem:[%s211 + $0xa0] sm:$0xff]
                  %234 = vst [vmem:[%s212 + $0x50] sm:$0xff] %v233
                  %v235 = vld [vmem:[%s211 + $0xb0] sm:$0xff]
                  %236 = vst [vmem:[%s212 + $0x58] sm:$0xff] %v235
                  %v237 = vld [vmem:[%s211 + $0xc0] sm:$0xff]
                  %238 = vst [vmem:[%s212 + $0x60] sm:$0xff] %v237
                  %v239 = vld [vmem:[%s211 + $0xd0] sm:$0xff]
                  %240 = vst [vmem:[%s212 + $0x68] sm:$0xff] %v239
                  %v241 = vld [vmem:[%s211 + $0xe0] sm:$0xff]
                  %242 = vst [vmem:[%s212 + $0x70] sm:$0xff] %v241
                  %v243 = vld [vmem:[%s211 + $0xf0] sm:$0xff]
                  %244 = vst [vmem:[%s212 + $0x78] sm:$0xff] %v243
                $region52: #{attention_forward_pallas.7} parent=46 // loop_footer
                  %s210 = sadd.s32 1, %s206
                $region53: #{attention_forward_pallas.7} parent=46 // loop_footer_branch
                  %205 = sbr.rel target = $region49
                $region54: #{attention_forward_pallas.7} parent=46 // loop_exit
                  _
              $region47: #{attention_forward_pallas.7} parent=31 // pred_fallthru
                _
              // Predicated region
              $region55: #{attention_forward_pallas.7} parent=31 // pred_check
                _
              $region56: #{attention_forward_pallas.7} parent=31 // pred_check_branch
                %246 = sbr.rel target = $region58
              $region57: #{attention_forward_pallas.7} parent=31 // pred_region
                _
              $region58: #{attention_forward_pallas.7} parent=31 // pred_fallthru
                _
            $region32: #{attention_forward_pallas.7} parent=27 // pred_fallthru
              _
            // Predicated region
            $region33: #{attention_forward_pallas.7} parent=27 // pred_check
              _
            $region34: #{attention_forward_pallas.7} parent=27 // pred_check_branch
              %161 = sbr.rel target = $region36
            $region35: #{attention_forward_pallas.7} parent=27 // pred_region
              loop: start=0, step=1, limit=1
              $region37: #{attention_forward_pallas.7} parent=35 // loop_pre_header
                _
              $region38: #{attention_forward_pallas.7} parent=35 // loop_header
                %s164 = sphi 0, %s168
                %p165 = scmp.ge.s32.totalorder %s164, 1
                %s169 = sphi %s155, %s155
                %s170 = sphi %s150, %s150
              $region39: #{attention_forward_pallas.7} parent=35 // loop_header_branch
                %167 = sbr.rel (%p165) target = $region43
              $region40: #{attention_forward_pallas.7} parent=35 // loop_body
                %v171 = vld [vmem:[%s169] sm:$0xff]
                %172 = vst [vmem:[%s170] sm:$0xff] %v171
                %v173 = vld [vmem:[%s169 + $0x10] sm:$0xff]
                %174 = vst [vmem:[%s170 + $0x8] sm:$0xff] %v173
                %v175 = vld [vmem:[%s169 + $0x20] sm:$0xff]
                %176 = vst [vmem:[%s170 + $0x10] sm:$0xff] %v175
                %v177 = vld [vmem:[%s169 + $0x30] sm:$0xff]
                %178 = vst [vmem:[%s170 + $0x18] sm:$0xff] %v177
                %v179 = vld [vmem:[%s169 + $0x40] sm:$0xff]
                %180 = vst [vmem:[%s170 + $0x20] sm:$0xff] %v179
                %v181 = vld [vmem:[%s169 + $0x50] sm:$0xff]
                %182 = vst [vmem:[%s170 + $0x28] sm:$0xff] %v181
                %v183 = vld [vmem:[%s169 + $0x60] sm:$0xff]
                %184 = vst [vmem:[%s170 + $0x30] sm:$0xff] %v183
                %v185 = vld [vmem:[%s169 + $0x70] sm:$0xff]
                %186 = vst [vmem:[%s170 + $0x38] sm:$0xff] %v185
                %v187 = vld [vmem:[%s169 + $0x80] sm:$0xff]
                %188 = vst [vmem:[%s170 + $0x40] sm:$0xff] %v187
                %v189 = vld [vmem:[%s169 + $0x90] sm:$0xff]
                %190 = vst [vmem:[%s170 + $0x48] sm:$0xff] %v189
                %v191 = vld [vmem:[%s169 + $0xa0] sm:$0xff]
                %192 = vst [vmem:[%s170 + $0x50] sm:$0xff] %v191
                %v193 = vld [vmem:[%s169 + $0xb0] sm:$0xff]
                %194 = vst [vmem:[%s170 + $0x58] sm:$0xff] %v193
                %v195 = vld [vmem:[%s169 + $0xc0] sm:$0xff]
                %196 = vst [vmem:[%s170 + $0x60] sm:$0xff] %v195
                %v197 = vld [vmem:[%s169 + $0xd0] sm:$0xff]
                %198 = vst [vmem:[%s170 + $0x68] sm:$0xff] %v197
                %v199 = vld [vmem:[%s169 + $0xe0] sm:$0xff]
                %200 = vst [vmem:[%s170 + $0x70] sm:$0xff] %v199
                %v201 = vld [vmem:[%s169 + $0xf0] sm:$0xff]
                %202 = vst [vmem:[%s170 + $0x78] sm:$0xff] %v201
              $region41: #{attention_forward_pallas.7} parent=35 // loop_footer
                %s168 = sadd.s32 1, %s164
              $region42: #{attention_forward_pallas.7} parent=35 // loop_footer_branch
                %163 = sbr.rel target = $region38
              $region43: #{attention_forward_pallas.7} parent=35 // loop_exit
                _
            $region36: #{attention_forward_pallas.7} parent=27 // pred_fallthru
              _
          $region28: #{attention_forward_pallas.7} parent=23 // pred_fallthru
            _
          %247 = vnop
        $region24: #{attention_forward_pallas.7} parent=15 // pred_fallthru
          _
      $region16: #{attention_forward_pallas.7} parent=5 // pred_fallthru
        _
      %p248 = scmp.le.s32.totalorder 1, %s11
      %p249 = scmp.lt.s32.totalorder %s11, 9
      %p250 = pnand %p248, %p249
      %p251 = pneg %p250
      // Predicated region
      $region59: #{attention_forward_pallas.7} parent=5 // pred_check
        _
      $region60: #{attention_forward_pallas.7} parent=5 // pred_check_branch
        %253 = sbr.rel (%p250) target = $region62
      $region61: #{attention_forward_pallas.7} parent=5 // pred_region
        %s254 = ssub.s32 %s11, 1
        %s255 = sand.u32 %s73, 1
        %s256 = sand.u32 %s73, 1
        %s257 = smul.addr %s256, 128
        %s258 = scalar_lea.vmem [#allocation3], %s257
        // Predicated region
        $region63: #{attention_forward_pallas.7} parent=61 // pred_check
          %p259 = pneg %p86
        $region64: #{attention_forward_pallas.7} parent=61 // pred_check_branch
          %261 = sbr.rel (%p259) target = $region66
        $region65: #{attention_forward_pallas.7} parent=61 // pred_region
          _
        $region66: #{attention_forward_pallas.7} parent=61 // pred_fallthru
          _
        %p262 = scmp.lt.s32.totalorder %s21, 1
        %s263 = scalar_select %p262, %s21, 1
        %p264 = scmp.lt.s32.totalorder %s23, 1
        %s265 = scalar_select %p264, %s23, 1
        %s266 = smul.addr %s263, 2
        %s267 = sadd.s32 %s265, %s266
        %s268 = smul.addr %s267, 8
        %s269 = scalar_lea.vmem %s0, %s268
        %p270 = pneg %p58
        %p271 = pneg %p55
        %s272 = sand.u32 %s73, 1
        %s273 = sand.u32 %s73, 1
        %s274 = smul.addr %s273, 128
        %s275 = scalar_lea.vmem [#allocation3], %s274
        %p276 = pneg %p86
        %p277 = pneg %p83
        %p278 = pneg %p114
        %p279 = pneg %p111
        %s280 = sand.u32 %s101, 1
        %s281 = scalar_lea.sflag [#allocation5], %s280
        %s282 = sand.u32 %s101, 1
        %s283 = smul.addr %s282, 8
        %s284 = scalar_lea.vmem [#allocation4], %s283
        %p285 = scmp.lt.s32.totalorder %s21, 1
        %s286 = scalar_select %p285, %s21, 1
        %p287 = scmp.lt.s32.totalorder %s23, 1
        %s288 = scalar_select %p287, %s23, 1
        %s289 = smul.addr %s286, 2
        %s290 = sadd.s32 %s288, %s289
        %s291 = smul.addr %s290, 8
        %s292 = scalar_lea.vmem %s0, %s291
        %s293 = smul.u32 16, %s23
        %p294 = scmp.eq.s32.totalorder %s23, 0
        // Predicated region
        $region67: #{attention_forward_pallas.7} parent=61 // pred_check
          %p295 = pneg %p294
        $region68: #{attention_forward_pallas.7} parent=61 // pred_check_branch
          %297 = sbr.rel (%p295) target = $region70
        $region69: #{attention_forward_pallas.7} parent=61 // pred_region
          %298 = vst [vmem:[#allocation2] sm:$0xff] 0.0
        $region70: #{attention_forward_pallas.7} parent=61 // pred_fallthru
          _
        %v299 = vld [vmem:[#allocation2] sm:$0xff]
        %v300 = vld [vmem:[%s292] sm:$0xff]
        %v301 = vld [vmem:[%s258] sm:$0xff]
        %v302 = vld [vmem:[%s258 + $0x8] sm:$0xff]
        %v303 = vld [vmem:[%s258 + $0x10] sm:$0xff]
        %v304 = vld [vmem:[%s258 + $0x18] sm:$0xff]
        %v305 = vld [vmem:[%s258 + $0x20] sm:$0xff]
        %v306 = vld [vmem:[%s258 + $0x28] sm:$0xff]
        %v307 = vld [vmem:[%s258 + $0x30] sm:$0xff]
        %v308 = vld [vmem:[%s258 + $0x38] sm:$0xff]
        %v309 = vld [vmem:[%s258 + $0x40] sm:$0xff]
        %v310 = vld [vmem:[%s258 + $0x48] sm:$0xff]
        %v311 = vld [vmem:[%s258 + $0x50] sm:$0xff]
        %v312 = vld [vmem:[%s258 + $0x58] sm:$0xff]
        %v313 = vld [vmem:[%s258 + $0x60] sm:$0xff]
        %v314 = vld [vmem:[%s258 + $0x68] sm:$0xff]
        %v315 = vld [vmem:[%s258 + $0x70] sm:$0xff]
        %v316 = vld [vmem:[%s258 + $0x78] sm:$0xff]
        %317 = vmatprep.subr.mxu0 0.0
        %318 = vmatpush1.msra.mxu0 %v301
        %319 = vmatprep.subr.mxu0 0.0
        %320 = vmatpush1.msra.mxu0 %v302
        %321 = vmatprep.subr.mxu0 0.0
        %322 = vmatpush1.msra.mxu0 %v303
        %323 = vmatprep.subr.mxu0 0.0
        %324 = vmatpush1.msra.mxu0 %v304
        %325 = vmatprep.subr.mxu0 0.0
        %326 = vmatpush1.msra.mxu0 %v305
        %327 = vmatprep.subr.mxu0 0.0
        %328 = vmatpush1.msra.mxu0 %v306
        %329 = vmatprep.subr.mxu0 0.0
        %330 = vmatpush1.msra.mxu0 %v307
        %331 = vmatprep.subr.mxu0 0.0
        %332 = vmatpush1.msra.mxu0 %v308
        %333 = vmatprep.subr.mxu0 0.0
        %334 = vmatpush1.msra.mxu0 %v309
        %335 = vmatprep.subr.mxu0 0.0
        %336 = vmatpush1.msra.mxu0 %v310
        %337 = vmatprep.subr.mxu0 0.0
        %338 = vmatpush1.msra.mxu0 %v311
        %339 = vmatprep.subr.mxu0 0.0
        %340 = vmatpush1.msra.mxu0 %v312
        %341 = vmatprep.subr.mxu0 0.0
        %342 = vmatpush1.msra.mxu0 %v313
        %343 = vmatprep.subr.mxu0 0.0
        %344 = vmatpush1.msra.mxu0 %v314
        %345 = vmatprep.subr.mxu0 0.0
        %346 = vmatpush1.msra.mxu0 %v315
        %347 = vmatprep.subr.mxu0 0.0
        %348 = vmatpush1.msra.mxu0 %v316
        %349 = vmatprep.subr.mxu0 0.0
        %350 = vmatpush1.msra.mxu0 0.0
        %351 = vmatprep.subr.mxu0 0.0
        %352 = vmatpush1.msra.mxu0 0.0
        %353 = vmatprep.subr.mxu0 0.0
        %354 = vmatpush1.msra.mxu0 0.0
        %355 = vmatprep.subr.mxu0 0.0
        %356 = vmatpush1.msra.mxu0 0.0
        %357 = vmatprep.subr.mxu0 0.0
        %358 = vmatpush1.msra.mxu0 0.0
        %359 = vmatprep.subr.mxu0 0.0
        %360 = vmatpush1.msra.mxu0 0.0
        %361 = vmatprep.subr.mxu0 0.0
        %362 = vmatpush1.msra.mxu0 0.0
        %363 = vmatprep.subr.mxu0 0.0
        %364 = vmatpush1.msra.mxu0 0.0
        %365 = vmatprep.subr.mxu0 0.0
        %366 = vmatpush1.msra.mxu0 0.0
        %367 = vmatprep.subr.mxu0 0.0
        %368 = vmatpush1.msra.mxu0 0.0
        %369 = vmatprep.subr.mxu0 0.0
        %370 = vmatpush1.msra.mxu0 0.0
        %371 = vmatprep.subr.mxu0 0.0
        %372 = vmatpush1.msra.mxu0 0.0
        %373 = vmatprep.subr.mxu0 0.0
        %374 = vmatpush1.msra.mxu0 0.0
        %375 = vmatprep.subr.mxu0 0.0
        %376 = vmatpush1.msra.mxu0 0.0
        %377 = vmatprep.subr.mxu0 0.0
        %378 = vmatpush1.msra.mxu0 0.0
        %379 = vmatprep.subr.mxu0 0.0
        %380 = vmatpush1.msra.mxu0 0.0
        %381 = vmatprep.mubr.f32.mxu0 0.0
        %382 = vmatmul.mubr.f32.gmra.mrb[0].mxu0 %v300
        %v383 = vpop.f32.mrb[0].mxu0
        %v384 = vadd.f32 0.0, %v383
        %v385 = vpop.f32.mrb[0].mxu0
        %386 = vdwg.mxu0
        %v387 = vadd.f32 %v299, %v384
        %388 = vst [vmem:[#allocation2] sm:$0xff] %v387
        %p389 = scmp.eq.s32.totalorder %s23, 1
        // Predicated region
        $region71: #{attention_forward_pallas.7} parent=61 // pred_check
          %p390 = pneg %p389
        $region72: #{attention_forward_pallas.7} parent=61 // pred_check_branch
          %392 = sbr.rel (%p390) target = $region74
        $region73: #{attention_forward_pallas.7} parent=61 // pred_region
          %v393 = vld [vmem:[#allocation2] sm:$0xff]
          %394 = vst [vmem:[%s284] sm:$0xff] %v393
        $region74: #{attention_forward_pallas.7} parent=61 // pred_fallthru
          _
        %s395 = sand.u32 %s101, 1
        %s396 = scalar_lea.sflag [#allocation5], %s395
        %s397 = sand.u32 %s101, 1
        %s398 = smul.addr %s397, 8
        %s399 = scalar_lea.vmem [#allocation4], %s398
        // Predicated region
        $region75: #{attention_forward_pallas.7} parent=61 // pred_check
          %p400 = pneg %p111
        $region76: #{attention_forward_pallas.7} parent=61 // pred_check_branch
          %402 = sbr.rel (%p400) target = $region78
        $region77: #{attention_forward_pallas.7} parent=61 // pred_region
          %s404 = ssub.s32 128, 128
          %405 = vsyncadd %s396, %s404
          %s406 = smul.addr %s21, 2
          %s407 = sadd.s32 %s22, %s406
          %s408 = smul.addr %s407, 128
          %s409 = scalar_lea.hbm %s2, %s408
          %s411 = sshll.u32 %s399, 4
          %s412 = int_to_ptr.vmem [resolvable:$true] %s411
          %414 = dma.vmem_to_hbm [thread:$0]  %s412, 128, %s409, %s396
        $region78: #{attention_forward_pallas.7} parent=61 // pred_fallthru
          _
      $region62: #{attention_forward_pallas.7} parent=5 // pred_fallthru
        _
      %p415 = scmp.le.s32.totalorder 2, %s11
      // Predicated region
      $region79: #{attention_forward_pallas.7} parent=5 // pred_check
        %p416 = pneg %p415
      $region80: #{attention_forward_pallas.7} parent=5 // pred_check_branch
        %418 = sbr.rel (%p416) target = $region82
      $region81: #{attention_forward_pallas.7} parent=5 // pred_region
        %s419 = ssub.s32 %s11, 2
        // Predicated region
        $region83: #{attention_forward_pallas.7} parent=81 // pred_check
          %p420 = pneg %p117
        $region84: #{attention_forward_pallas.7} parent=81 // pred_check_branch
          %422 = sbr.rel (%p420) target = $region86
        $region85: #{attention_forward_pallas.7} parent=81 // pred_region
          %s423 = sand.u32 %s102, 1
          %s424 = scalar_lea.sflag [#allocation5], %s423
          %s425 = sand.u32 %s102, 1
          %s426 = smul.addr %s425, 8
          %s427 = scalar_lea.vmem [#allocation4], %s426
          %428 = dma.done %s424, 128
        $region86: #{attention_forward_pallas.7} parent=81 // pred_fallthru
          _
      $region82: #{attention_forward_pallas.7} parent=5 // pred_fallthru
        _
    $region6: #{attention_forward_pallas.7} parent=1 // loop_footer
      %s15 = sadd.s32 1, %s11
    $region7: #{attention_forward_pallas.7} parent=1 // loop_footer_branch
      %10 = sbr.rel target = $region3
    $region8: #{attention_forward_pallas.7} parent=1 // loop_exit
      _
    %429 = vsyncpa [#allocation5], 1
    %s430 = scalar_lea.sflag [#allocation5], 1
    %431 = vsyncpa %s430, 1

// kernel: attention_forward_pallas.5
$region0: #{attention_forward_pallas.5}
  #allocation0 [shape = 'u32[]', space=smem, size = 0x4, offset = 0x4, fixed_abs, tag = 'smem constant byte address 0x4 - core index']
  #allocation1 [shape = 'u32[144,128]{1,0:T(1,128)}', space=vmem, size = 0x12000, scoped, tag = 'internal scratch']
  #allocation2 [shape = 'f32[8,128]{1,0:T(8,128)}', space=vmem, size = 0x1000, scoped, tag = 'scratch operand']
  #allocation3 [shape = 'f32[8,128]{1,0:T(8,128)}', space=vmem, size = 0x1000, scoped, tag = 'scratch operand']
  #allocation4 [shape = 's32[2]{0}', space=sflag, size = 0x8, scoped, tag = 'scratch operand']
  #allocation5 [shape = 's32[]', space=sflag, size = 0x4, offset = 0, fixed_abs, tag = 'sflag constant byte address 0x0 - dummy sync flag']
  #allocation6 [shape = 's32[]', space=sflag, size = 0x4, offset = 0, fixed_abs, tag = 'sflag constant byte address 0x0 - dummy sync flag']
  %s0 = inlined_call_operand.vmem [shape: f32[2,8,512], index: 0, kind: input, shape index: {}]
  %s1 = inlined_call_operand.vmem [shape: f32[2,16,128], index: 1, kind: input, shape index: {}, may-alias: {1,3}]
  %s2 = inlined_call_operand.vmem [shape: f32[2,16,128], index: 2, kind: input, shape index: {}, may-alias: {2,4}]
  %s3 = inlined_call_operand.vmem [shape: f32[2,16,128], index: 3, kind: output, shape index: {0}, may-alias: {1,3}]
  %s4 = inlined_call_operand.vmem [shape: f32[2,16,128], index: 4, kind: output, shape index: {1}, may-alias: {2,4}]
  %5 = xla_tuple %s3, %s4
  %s6 = sld [smem:[#allocation0]]
  $region93: #{attention_forward_pallas.5} parent=0
    _
  %s8 = ssub.s32 1, %s6
  %s9 = scalar_select 0, %s8, %s6
  loop: start=0, step=1, limit=3
  $region2: #{attention_forward_pallas.5} parent=0 // loop_pre_header
    _
  $region3: #{attention_forward_pallas.5} parent=0 // loop_header
    %s11 = sphi 0, %s15
    %p12 = scmp.ge.s32.totalorder %s11, 3
    %s20 = sphi 0, %s22
    %s23 = sphi 0, %s20
    %s33 = sphi 0, %s23
  $region4: #{attention_forward_pallas.5} parent=0 // loop_header_branch
    %14 = sbr.rel (%p12) target = $region8
  $region5: #{attention_forward_pallas.5} parent=0 // loop_body
    %s16 = ssub.s32 %s11, 1
    %s17 = sadd.s32 %s11, 1
    %s18 = ssub.s32 %s11, %s17
    %p19 = scmp.eq.s32.totalorder %s18, 0
    %s21 = sadd.s32 %s20, 1
    %s22 = scalar_select %p19, %s20, %s21
    %p24 = pneg %p19
    %p25 = scmp.eq.s32.totalorder %s11, 1
    %p26 = por %p24, %p25
    %p27 = scmp.ne.s32.totalorder %s20, %s23
    %p28 = scmp.eq.s32.totalorder %s11, 0
    %p29 = por %p27, %p28
    %p30 = scmp.ne.s32.totalorder %s20, %s23
    %p31 = scmp.eq.s32.totalorder %s16, 1
    %p32 = por %p30, %p31
    %p34 = scmp.ne.s32.totalorder %s23, %s33
    %p35 = scmp.eq.s32.totalorder %s16, 0
    %p36 = por %p34, %p35
    %p37 = scmp.le.s32.totalorder 1, %s11
    // Predicated region
    $region9: #{attention_forward_pallas.5} parent=5 // pred_check
      %p38 = pneg %p37
    $region10: #{attention_forward_pallas.5} parent=5 // pred_check_branch
      %40 = sbr.rel (%p38) target = $region12
    $region11: #{attention_forward_pallas.5} parent=5 // pred_region
      %s41 = ssub.s32 %s11, 1
    $region12: #{attention_forward_pallas.5} parent=5 // pred_fallthru
      _
    %p42 = scmp.lt.s32.totalorder %s11, 2
    // Predicated region
    $region13: #{attention_forward_pallas.5} parent=5 // pred_check
      %p43 = pneg %p42
    $region14: #{attention_forward_pallas.5} parent=5 // pred_check_branch
      %45 = sbr.rel (%p43) target = $region16
    $region15: #{attention_forward_pallas.5} parent=5 // pred_region
      // Predicated region
      $region17: #{attention_forward_pallas.5} parent=15 // pred_check
        %p46 = pneg %p29
      $region18: #{attention_forward_pallas.5} parent=15 // pred_check_branch
        %48 = sbr.rel (%p46) target = $region20
      $region19: #{attention_forward_pallas.5} parent=15 // pred_region
        %p49 = scmp.lt.s32.totalorder %s11, 1
        %s50 = scalar_select %p49, %s11, 1
        %s51 = smul.addr %s50, 4
        %s52 = smul.addr %s51, 8
        %s53 = scalar_lea.vmem %s0, %s52
      $region20: #{attention_forward_pallas.5} parent=15 // pred_fallthru
        _
    $region16: #{attention_forward_pallas.5} parent=5 // pred_fallthru
      _
    %p54 = scmp.le.s32.totalorder 1, %s11
    // Predicated region
    $region21: #{attention_forward_pallas.5} parent=5 // pred_check
      %p55 = pneg %p54
    $region22: #{attention_forward_pallas.5} parent=5 // pred_check_branch
      %57 = sbr.rel (%p55) target = $region24
    $region23: #{attention_forward_pallas.5} parent=5 // pred_region
      %s58 = ssub.s32 %s11, 1
      %p59 = scmp.lt.s32.totalorder %s16, 1
      %s60 = scalar_select %p59, %s16, 1
      %s61 = smul.addr %s60, 4
      %s62 = smul.addr %s61, 8
      %s63 = scalar_lea.vmem %s0, %s62
      %p64 = pneg %p36
      %p65 = pneg %p32
      %p66 = scmp.lt.s32.totalorder %s16, 1
      %s67 = scalar_select %p66, %s16, 1
      %s68 = smul.addr %s67, 4
      %s69 = smul.addr %s68, 8
      %s70 = scalar_lea.vmem %s0, %s69
      %v71 = vld [vmem:[%s70 + $0x10] sm:$0xff]
      %v72 = vld [vmem:[%s70 + $0x18] sm:$0xff]
      %73 = vst [vmem:[#allocation2] sm:$0xff] %v71
      %74 = vst [vmem:[#allocation3] sm:$0xff] %v72
      %s75 = smul.u32 %s16, 16
      %s76 = sadd.s32 4, %s75
      %s77 = scalar_lea.vmem %s3, %s76
      %p79 = scmp.lt.u32.totalorder 8, 8
      %p80 = pneg %p79
      // Predicated region
      $region25: #{attention_forward_pallas.5} parent=23 // pred_check
        _
      $region26: #{attention_forward_pallas.5} parent=23 // pred_check_branch
        %82 = sbr.rel (%p79) target = $region28
      $region27: #{attention_forward_pallas.5} parent=23 // pred_region
        %s97 = sand.u32 8, 7
        %p98 = scmp.eq.s32.totalorder %s97, 0
        // Predicated region
        $region40: #{attention_forward_pallas.5} parent=27 // pred_check
          %p99 = pneg %p98
        $region41: #{attention_forward_pallas.5} parent=27 // pred_check_branch
          %101 = sbr.rel (%p99) target = $region43
        $region42: #{attention_forward_pallas.5} parent=27 // pred_region
          loop: start=0, step=1, limit=1
          $region44: #{attention_forward_pallas.5} parent=42 // loop_pre_header
            _
          $region45: #{attention_forward_pallas.5} parent=42 // loop_header
            %s103 = sphi 0, %s107
            %p104 = scmp.ge.s32.totalorder %s103, 1
            %s108 = sphi [#allocation2], [#allocation2]
            %s109 = sphi %s77, %s77
          $region46: #{attention_forward_pallas.5} parent=42 // loop_header_branch
            %106 = sbr.rel (%p104) target = $region50
          $region47: #{attention_forward_pallas.5} parent=42 // loop_body
            %v110 = vld [vmem:[%s108] sm:$0xff]
            %111 = vst [vmem:[%s109] sm:$0xff] %v110
          $region48: #{attention_forward_pallas.5} parent=42 // loop_footer
            %s107 = sadd.s32 1, %s103
          $region49: #{attention_forward_pallas.5} parent=42 // loop_footer_branch
            %102 = sbr.rel target = $region45
          $region50: #{attention_forward_pallas.5} parent=42 // loop_exit
            _
        $region43: #{attention_forward_pallas.5} parent=27 // pred_fallthru
          _
        %p112 = pneg %p98
        // Predicated region
        $region51: #{attention_forward_pallas.5} parent=27 // pred_check
          _
        $region52: #{attention_forward_pallas.5} parent=27 // pred_check_branch
          %114 = sbr.rel (%p98) target = $region54
        $region53: #{attention_forward_pallas.5} parent=27 // pred_region
          %s115 = sand.u32 8, 7
        $region54: #{attention_forward_pallas.5} parent=27 // pred_fallthru
          _
      $region28: #{attention_forward_pallas.5} parent=23 // pred_fallthru
        _
      // Predicated region
      $region29: #{attention_forward_pallas.5} parent=23 // pred_check
        %p83 = pneg %p79
      $region30: #{attention_forward_pallas.5} parent=23 // pred_check_branch
        %85 = sbr.rel (%p83) target = $region32
      $region31: #{attention_forward_pallas.5} parent=23 // pred_region
        %s86 = sshllo.u32 0, 8
        loop: start=0, step=1, limit=1
        $region33: #{attention_forward_pallas.5} parent=31 // loop_pre_header
          _
        $region34: #{attention_forward_pallas.5} parent=31 // loop_header
          %s88 = sphi 0, %s92
          %p89 = scmp.ge.s32.totalorder %s88, 1
          %s93 = sphi [#allocation2], [#allocation2]
          %s94 = sphi %s77, %s77
        $region35: #{attention_forward_pallas.5} parent=31 // loop_header_branch
          %91 = sbr.rel (%p89) target = $region39
        $region36: #{attention_forward_pallas.5} parent=31 // loop_body
          %v95 = vld [vmem:[%s93] sm:%s86]
          %96 = vst [vmem:[%s94] sm:%s86] %v95
        $region37: #{attention_forward_pallas.5} parent=31 // loop_footer
          %s92 = sadd.s32 1, %s88
        $region38: #{attention_forward_pallas.5} parent=31 // loop_footer_branch
          %87 = sbr.rel target = $region34
        $region39: #{attention_forward_pallas.5} parent=31 // loop_exit
          _
      $region32: #{attention_forward_pallas.5} parent=23 // pred_fallthru
        _
      // Predicated region
      $region55: #{attention_forward_pallas.5} parent=23 // pred_check
        _
      $region56: #{attention_forward_pallas.5} parent=23 // pred_check_branch
        %118 = sbr.rel (0) target = $region58
      $region57: #{attention_forward_pallas.5} parent=23 // pred_region
        %119 = vsyncadd [#allocation4], 128
      $region58: #{attention_forward_pallas.5} parent=23 // pred_fallthru
        _
      %s120 = scalar_lea.vmem %s4, %s76
      %s121 = scalar_lea.sflag [#allocation4], 1
      %p123 = scmp.lt.u32.totalorder 8, 8
      %p124 = pneg %p123
      // Predicated region
      $region59: #{attention_forward_pallas.5} parent=23 // pred_check
        _
      $region60: #{attention_forward_pallas.5} parent=23 // pred_check_branch
        %126 = sbr.rel (%p123) target = $region62
      $region61: #{attention_forward_pallas.5} parent=23 // pred_region
        %s141 = sand.u32 8, 7
        %p142 = scmp.eq.s32.totalorder %s141, 0
        // Predicated region
        $region74: #{attention_forward_pallas.5} parent=61 // pred_check
          %p143 = pneg %p142
        $region75: #{attention_forward_pallas.5} parent=61 // pred_check_branch
          %145 = sbr.rel (%p143) target = $region77
        $region76: #{attention_forward_pallas.5} parent=61 // pred_region
          loop: start=0, step=1, limit=1
          $region78: #{attention_forward_pallas.5} parent=76 // loop_pre_header
            _
          $region79: #{attention_forward_pallas.5} parent=76 // loop_header
            %s147 = sphi 0, %s151
            %p148 = scmp.ge.s32.totalorder %s147, 1
            %s152 = sphi [#allocation3], [#allocation3]
            %s153 = sphi %s120, %s120
          $region80: #{attention_forward_pallas.5} parent=76 // loop_header_branch
            %150 = sbr.rel (%p148) target = $region84
          $region81: #{attention_forward_pallas.5} parent=76 // loop_body
            %v154 = vld [vmem:[%s152] sm:$0xff]
            %155 = vst [vmem:[%s153] sm:$0xff] %v154
          $region82: #{attention_forward_pallas.5} parent=76 // loop_footer
            %s151 = sadd.s32 1, %s147
          $region83: #{attention_forward_pallas.5} parent=76 // loop_footer_branch
            %146 = sbr.rel target = $region79
          $region84: #{attention_forward_pallas.5} parent=76 // loop_exit
            _
        $region77: #{attention_forward_pallas.5} parent=61 // pred_fallthru
          _
        %p156 = pneg %p142
        // Predicated region
        $region85: #{attention_forward_pallas.5} parent=61 // pred_check
          _
        $region86: #{attention_forward_pallas.5} parent=61 // pred_check_branch
          %158 = sbr.rel (%p142) target = $region88
        $region87: #{attention_forward_pallas.5} parent=61 // pred_region
          %s159 = sand.u32 8, 7
        $region88: #{attention_forward_pallas.5} parent=61 // pred_fallthru
          _
      $region62: #{attention_forward_pallas.5} parent=23 // pred_fallthru
        _
      // Predicated region
      $region63: #{attention_forward_pallas.5} parent=23 // pred_check
        %p127 = pneg %p123
      $region64: #{attention_forward_pallas.5} parent=23 // pred_check_branch
        %129 = sbr.rel (%p127) target = $region66
      $region65: #{attention_forward_pallas.5} parent=23 // pred_region
        %s130 = sshllo.u32 0, 8
        loop: start=0, step=1, limit=1
        $region67: #{attention_forward_pallas.5} parent=65 // loop_pre_header
          _
        $region68: #{attention_forward_pallas.5} parent=65 // loop_header
          %s132 = sphi 0, %s136
          %p133 = scmp.ge.s32.totalorder %s132, 1
          %s137 = sphi [#allocation3], [#allocation3]
          %s138 = sphi %s120, %s120
        $region69: #{attention_forward_pallas.5} parent=65 // loop_header_branch
          %135 = sbr.rel (%p133) target = $region73
        $region70: #{attention_forward_pallas.5} parent=65 // loop_body
          %v139 = vld [vmem:[%s137] sm:%s130]
          %140 = vst [vmem:[%s138] sm:%s130] %v139
        $region71: #{attention_forward_pallas.5} parent=65 // loop_footer
          %s136 = sadd.s32 1, %s132
        $region72: #{attention_forward_pallas.5} parent=65 // loop_footer_branch
          %131 = sbr.rel target = $region68
        $region73: #{attention_forward_pallas.5} parent=65 // loop_exit
          _
      $region66: #{attention_forward_pallas.5} parent=23 // pred_fallthru
        _
      // Predicated region
      $region89: #{attention_forward_pallas.5} parent=23 // pred_check
        _
      $region90: #{attention_forward_pallas.5} parent=23 // pred_check_branch
        %162 = sbr.rel (0) target = $region92
      $region91: #{attention_forward_pallas.5} parent=23 // pred_region
        %163 = vsyncadd %s121, 128
      $region92: #{attention_forward_pallas.5} parent=23 // pred_fallthru
        _
      %s164 = smul.u32 8, 1
      %s165 = sshll.u32 %s164, 4
      %166 = dma.done [#allocation4], %s165
      %s167 = sshll.u32 %s164, 4
      %168 = dma.done %s121, %s167
    $region24: #{attention_forward_pallas.5} parent=5 // pred_fallthru
      _
  $region6: #{attention_forward_pallas.5} parent=0 // loop_footer
    %s15 = sadd.s32 1, %s11
  $region7: #{attention_forward_pallas.5} parent=0 // loop_footer_branch
    %10 = sbr.rel target = $region3
  $region8: #{attention_forward_pallas.5} parent=0 // loop_exit
    _
  %169 = vsyncmov [#allocation4]
  %s170 = vpop.sfrf %169
  %p171 = scmp.eq.s32.totalorder %s170, 0
  %p172 = pneg %p171
  %174 = shalt.err (%p172)
  %s175 = scalar_lea.sflag [#allocation4], 1
  %176 = vsyncmov %s175
  %s177 = vpop.sfrf %176
  %p178 = scmp.eq.s32.totalorder %s177, 0
  %p179 = pneg %p178
  %181 = shalt.err (%p179)

// kernel: attention_forward_pallas.4
$region0: #{attention_forward_pallas.4}
  #allocation0 [shape = 'u32[]', space=smem, size = 0x4, offset = 0x4, fixed_abs, tag = 'smem constant byte address 0x4 - core index']
  #allocation1 [shape = 'u32[144,128]{1,0:T(1,128)}', space=vmem, size = 0x12000, scoped, tag = 'internal scratch']
  #allocation2 [shape = 'f32[8,256]{1,0:T(8,128)}', space=vmem, size = 0x2000, scoped, tag = 'scratch operand']
  %s0 = inlined_call_operand.vmem [shape: f32[2,8,256], index: 0, kind: input, shape index: {}]
  %s1 = inlined_call_operand.vmem [shape: f32[256,512], index: 1, kind: input, shape index: {}]
  %s2 = inlined_call_operand.vmem [shape: f32[8,512], index: 2, kind: input, shape index: {}]
  %s3 = inlined_call_operand.vmem [shape: f32[8,512], index: 3, kind: input, shape index: {}]
  %s4 = inlined_call_operand.hbm [shape: f32[2,256,256], index: 4, kind: input, shape index: {}]
  %s5 = inlined_call_operand.vmem [shape: f32[2,8,512], index: 5, kind: output, shape index: {}]
  %s6 = sld [smem:[#allocation0]]
  $region88: #{attention_forward_pallas.4} parent=0
    _
  %s8 = ssub.s32 1, %s6
  %s9 = scalar_select 0, %s8, %s6
  $region1: #{attention_forward_pallas.4} parent=0
    #allocation3 [shape = 'u8[262144]{0}', space=vmem, size = 0x40000, scoped, tag = 'input window, operand 1']
    #allocation4 [shape = 'u8[524288]{0}', space=vmem, size = 0x80000, scoped, tag = 'input window, operand 4']
    #allocation5 [shape = 's32[2]{0}', space=sflag, size = 0x8, scoped, tag = 'scoped memory for attention_forward_pallas.4']
    %10 = vsyncpa [#allocation5], 0
    %s11 = scalar_lea.sflag [#allocation5], 1
    %12 = vsyncpa %s11, 0
    loop: start=0, step=1, limit=10
    $region2: #{attention_forward_pallas.4} parent=1 // loop_pre_header
      _
    $region3: #{attention_forward_pallas.4} parent=1 // loop_header
      %s14 = sphi 0, %s18
      %p15 = scmp.ge.s32.totalorder %s14, 10
      %s21 = sphi 0, %s47
      %s22 = sphi 0, %s43
      %s23 = sphi 0, %s39
      %s24 = sphi 0, %s35
      %s25 = sphi 0, %s21
      %s26 = sphi 0, %s22
      %s27 = sphi 0, %s23
      %s28 = sphi 0, %s24
      %s29 = sphi 0, %s25
      %s30 = sphi 0, %s26
      %s31 = sphi 0, %s27
      %s32 = sphi 0, %s28
      %s54 = sphi 0, %s56
      %s57 = sphi 0, %s54
      %s58 = sphi 0, %s57
      %s74 = sphi 0, %s58
      %s82 = sphi 0, %s84
      %s85 = sphi 0, %s82
      %s86 = sphi 0, %s85
      %s102 = sphi 0, %s86
      %s110 = sphi 0, %s112
      %s113 = sphi 0, %s110
      %s114 = sphi 0, %s113
      %s130 = sphi 0, %s114
      %s138 = sphi 0, %s140
      %s141 = sphi 0, %s138
      %s142 = sphi 0, %s141
      %s158 = sphi 0, %s142
      %s164 = sphi 0, %s166
      %s167 = sphi 0, %s164
      %s168 = sphi 0, %s167
      %s184 = sphi 0, %s168
      %s194 = sphi 0, %s196
      %s197 = sphi 0, %s194
      %s198 = sphi 0, %s197
      %s214 = sphi 0, %s198
    $region4: #{attention_forward_pallas.4} parent=1 // loop_header_branch
      %17 = sbr.rel (%p15) target = $region8
    $region5: #{attention_forward_pallas.4} parent=1 // loop_body
      %s19 = ssub.s32 %s14, 1
      %s20 = ssub.s32 %s14, 2
      %s33 = sadd.s32 1, %s24
      %p34 = scmp.ge.s32.totalorder %s33, 2
      %s35 = scalar_select %p34, 0, %s33
      %s36 = sadd.s32 1, %s23
      %s37 = scalar_select %p34, %s36, %s23
      %p38 = scmp.ge.s32.totalorder %s37, 2
      %s39 = scalar_select %p38, 0, %s37
      %s40 = sadd.s32 1, %s22
      %s41 = scalar_select %p38, %s40, %s22
      %p42 = scmp.ge.s32.totalorder %s41, 1
      %s43 = scalar_select %p42, 0, %s41
      %s44 = sadd.s32 1, %s21
      %s45 = scalar_select %p42, %s44, %s21
      %p46 = scmp.ge.s32.totalorder %s45, 2
      %s47 = scalar_select %p46, 0, %s45
      %s48 = ssub.s32 %s21, %s47
      %s49 = ssub.s32 %s22, %s43
      %s50 = sor.u32 %s48, %s49
      %s51 = ssub.s32 %s24, %s35
      %s52 = sor.u32 %s50, %s51
      %p53 = scmp.eq.s32.totalorder %s52, 0
      %s55 = sadd.s32 %s54, 1
      %s56 = scalar_select %p53, %s54, %s55
      %p59 = pneg %p53
      %p60 = scmp.eq.s32.totalorder %s14, 7
      %p61 = por %p59, %p60
      %p62 = scmp.ne.s32.totalorder %s54, %s57
      %p63 = scmp.eq.s32.totalorder %s14, 0
      %p64 = por %p62, %p63
      %p65 = scmp.ne.s32.totalorder %s54, %s57
      %p66 = scmp.eq.s32.totalorder %s19, 7
      %p67 = por %p65, %p66
      %p68 = scmp.ne.s32.totalorder %s57, %s58
      %p69 = scmp.eq.s32.totalorder %s19, 0
      %p70 = por %p68, %p69
      %p71 = scmp.ne.s32.totalorder %s57, %s58
      %p72 = scmp.eq.s32.totalorder %s20, 7
      %p73 = por %p71, %p72
      %p75 = scmp.ne.s32.totalorder %s58, %s74
      %p76 = scmp.eq.s32.totalorder %s20, 0
      %p77 = por %p75, %p76
      %s78 = ssub.s32 %s24, %s35
      %s79 = ssub.s32 %s23, %s39
      %s80 = sor.u32 %s78, %s79
      %p81 = scmp.eq.s32.totalorder %s80, 0
      %s83 = sadd.s32 %s82, 1
      %s84 = scalar_select %p81, %s82, %s83
      %p87 = pneg %p81
      %p88 = scmp.eq.s32.totalorder %s14, 7
      %p89 = por %p87, %p88
      %p90 = scmp.ne.s32.totalorder %s82, %s85
      %p91 = scmp.eq.s32.totalorder %s14, 0
      %p92 = por %p90, %p91
      %p93 = scmp.ne.s32.totalorder %s82, %s85
      %p94 = scmp.eq.s32.totalorder %s19, 7
      %p95 = por %p93, %p94
      %p96 = scmp.ne.s32.totalorder %s85, %s86
      %p97 = scmp.eq.s32.totalorder %s19, 0
      %p98 = por %p96, %p97
      %p99 = scmp.ne.s32.totalorder %s85, %s86
      %p100 = scmp.eq.s32.totalorder %s20, 7
      %p101 = por %p99, %p100
      %p103 = scmp.ne.s32.totalorder %s86, %s102
      %p104 = scmp.eq.s32.totalorder %s20, 0
      %p105 = por %p103, %p104
      %s106 = ssub.s32 %s22, %s43
      %s107 = ssub.s32 %s23, %s39
      %s108 = sor.u32 %s106, %s107
      %p109 = scmp.eq.s32.totalorder %s108, 0
      %s111 = sadd.s32 %s110, 1
      %s112 = scalar_select %p109, %s110, %s111
      %p115 = pneg %p109
      %p116 = scmp.eq.s32.totalorder %s14, 7
      %p117 = por %p115, %p116
      %p118 = scmp.ne.s32.totalorder %s110, %s113
      %p119 = scmp.eq.s32.totalorder %s14, 0
      %p120 = por %p118, %p119
      %p121 = scmp.ne.s32.totalorder %s110, %s113
      %p122 = scmp.eq.s32.totalorder %s19, 7
      %p123 = por %p121, %p122
      %p124 = scmp.ne.s32.totalorder %s113, %s114
      %p125 = scmp.eq.s32.totalorder %s19, 0
      %p126 = por %p124, %p125
      %p127 = scmp.ne.s32.totalorder %s113, %s114
      %p128 = scmp.eq.s32.totalorder %s20, 7
      %p129 = por %p127, %p128
      %p131 = scmp.ne.s32.totalorder %s114, %s130
      %p132 = scmp.eq.s32.totalorder %s20, 0
      %p133 = por %p131, %p132
      %s134 = ssub.s32 %s22, %s43
      %s135 = ssub.s32 %s23, %s39
      %s136 = sor.u32 %s134, %s135
      %p137 = scmp.eq.s32.totalorder %s136, 0
      %s139 = sadd.s32 %s138, 1
      %s140 = scalar_select %p137, %s138, %s139
      %p143 = pneg %p137
      %p144 = scmp.eq.s32.totalorder %s14, 7
      %p145 = por %p143, %p144
      %p146 = scmp.ne.s32.totalorder %s138, %s141
      %p147 = scmp.eq.s32.totalorder %s14, 0
      %p148 = por %p146, %p147
      %p149 = scmp.ne.s32.totalorder %s138, %s141
      %p150 = scmp.eq.s32.totalorder %s19, 7
      %p151 = por %p149, %p150
      %p152 = scmp.ne.s32.totalorder %s141, %s142
      %p153 = scmp.eq.s32.totalorder %s19, 0
      %p154 = por %p152, %p153
      %p155 = scmp.ne.s32.totalorder %s141, %s142
      %p156 = scmp.eq.s32.totalorder %s20, 7
      %p157 = por %p155, %p156
      %p159 = scmp.ne.s32.totalorder %s142, %s158
      %p160 = scmp.eq.s32.totalorder %s20, 0
      %p161 = por %p159, %p160
      %s162 = ssub.s32 %s23, %s39
      %p163 = scmp.eq.s32.totalorder %s162, 0
      %s165 = sadd.s32 %s164, 1
      %s166 = scalar_select %p163, %s164, %s165
      %p169 = pneg %p163
      %p170 = scmp.eq.s32.totalorder %s14, 7
      %p171 = por %p169, %p170
      %p172 = scmp.ne.s32.totalorder %s164, %s167
      %p173 = scmp.eq.s32.totalorder %s14, 0
      %p174 = por %p172, %p173
      %p175 = scmp.ne.s32.totalorder %s164, %s167
      %p176 = scmp.eq.s32.totalorder %s19, 7
      %p177 = por %p175, %p176
      %p178 = scmp.ne.s32.totalorder %s167, %s168
      %p179 = scmp.eq.s32.totalorder %s19, 0
      %p180 = por %p178, %p179
      %p181 = scmp.ne.s32.totalorder %s167, %s168
      %p182 = scmp.eq.s32.totalorder %s20, 7
      %p183 = por %p181, %p182
      %p185 = scmp.ne.s32.totalorder %s168, %s184
      %p186 = scmp.eq.s32.totalorder %s20, 0
      %p187 = por %p185, %p186
      %s188 = ssub.s32 %s21, %s47
      %s189 = ssub.s32 %s22, %s43
      %s190 = sor.u32 %s188, %s189
      %s191 = ssub.s32 %s23, %s39
      %s192 = sor.u32 %s190, %s191
      %p193 = scmp.eq.s32.totalorder %s192, 0
      %s195 = sadd.s32 %s194, 1
      %s196 = scalar_select %p193, %s194, %s195
      %p199 = pneg %p193
      %p200 = scmp.eq.s32.totalorder %s14, 7
      %p201 = por %p199, %p200
      %p202 = scmp.ne.s32.totalorder %s194, %s197
      %p203 = scmp.eq.s32.totalorder %s14, 0
      %p204 = por %p202, %p203
      %p205 = scmp.ne.s32.totalorder %s194, %s197
      %p206 = scmp.eq.s32.totalorder %s19, 7
      %p207 = por %p205, %p206
      %p208 = scmp.ne.s32.totalorder %s197, %s198
      %p209 = scmp.eq.s32.totalorder %s19, 0
      %p210 = por %p208, %p209
      %p211 = scmp.ne.s32.totalorder %s197, %s198
      %p212 = scmp.eq.s32.totalorder %s20, 7
      %p213 = por %p211, %p212
      %p215 = scmp.ne.s32.totalorder %s198, %s214
      %p216 = scmp.eq.s32.totalorder %s20, 0
      %p217 = por %p215, %p216
      %p218 = scmp.le.s32.totalorder 1, %s14
      %p219 = scmp.lt.s32.totalorder %s14, 9
      %p220 = pnand %p218, %p219
      %p221 = pneg %p220
      // Predicated region
      $region9: #{attention_forward_pallas.4} parent=5 // pred_check
        _
      $region10: #{attention_forward_pallas.4} parent=5 // pred_check_branch
        %223 = sbr.rel (%p220) target = $region12
      $region11: #{attention_forward_pallas.4} parent=5 // pred_region
        %s224 = ssub.s32 %s14, 1
      $region12: #{attention_forward_pallas.4} parent=5 // pred_fallthru
        _
      %p225 = scmp.lt.s32.totalorder %s14, 8
      // Predicated region
      $region13: #{attention_forward_pallas.4} parent=5 // pred_check
        %p226 = pneg %p225
      $region14: #{attention_forward_pallas.4} parent=5 // pred_check_branch
        %228 = sbr.rel (%p226) target = $region16
      $region15: #{attention_forward_pallas.4} parent=5 // pred_region
        // Predicated region
        $region17: #{attention_forward_pallas.4} parent=15 // pred_check
          %p229 = pneg %p64
        $region18: #{attention_forward_pallas.4} parent=15 // pred_check_branch
          %231 = sbr.rel (%p229) target = $region20
        $region19: #{attention_forward_pallas.4} parent=15 // pred_region
          %p232 = scmp.lt.s32.totalorder %s21, 1
          %s233 = scalar_select %p232, %s21, 1
          %p234 = scmp.lt.s32.totalorder %s22, 0
          %s235 = scalar_select %p234, %s22, 0
          %p236 = scmp.lt.s32.totalorder %s24, 1
          %s237 = scalar_select %p236, %s24, 1
          %s238 = smul.addr %s235, 2
          %s239 = sadd.s32 %s237, %s238
          %s240 = smul.addr %s233, 2
          %s241 = sadd.s32 %s239, %s240
          %s242 = smul.addr %s241, 8
          %s243 = scalar_lea.vmem %s0, %s242
        $region20: #{attention_forward_pallas.4} parent=15 // pred_fallthru
          _
        // Predicated region
        $region21: #{attention_forward_pallas.4} parent=15 // pred_check
          %p244 = pneg %p92
        $region22: #{attention_forward_pallas.4} parent=15 // pred_check_branch
          %246 = sbr.rel (%p244) target = $region24
        $region23: #{attention_forward_pallas.4} parent=15 // pred_region
          %s247 = sand.u32 %s82, 1
          %s248 = sand.u32 %s82, 1
          %s249 = smul.addr %s248, 256
          %s250 = scalar_lea.vmem [#allocation3], %s249
          %s251 = smul.u32 16, %s24
          %s252 = smul.u32 2, %s23
          %s253 = smul.addr %s251, 4
          %s254 = sadd.s32 %s252, %s253
          %s255 = smul.addr %s254, 8
          %s256 = scalar_lea.vmem %s1, %s255
          // Predicated region
          $region25: #{attention_forward_pallas.4} parent=23 // pred_check
            _
          $region26: #{attention_forward_pallas.4} parent=23 // pred_check_branch
            %258 = sbr.rel (0) target = $region28
          $region27: #{attention_forward_pallas.4} parent=23 // pred_region
            // Predicated region
            $region29: #{attention_forward_pallas.4} parent=27 // pred_check
              _
            $region30: #{attention_forward_pallas.4} parent=27 // pred_check_branch
              %260 = sbr.rel (0) target = $region32
            $region31: #{attention_forward_pallas.4} parent=27 // pred_region
              loop: start=0, step=1, limit=1
              $region33: #{attention_forward_pallas.4} parent=31 // loop_pre_header
                _
              $region34: #{attention_forward_pallas.4} parent=31 // loop_header
                %s262 = sphi 0, %s266
                %p263 = scmp.ge.s32.totalorder %s262, 1
                %s267 = sphi %s256, %s256
                %s268 = sphi %s250, %s250
              $region35: #{attention_forward_pallas.4} parent=31 // loop_header_branch
                %265 = sbr.rel (%p263) target = $region39
              $region36: #{attention_forward_pallas.4} parent=31 // loop_body
                %v269 = vld [vmem:[%s267] sm:$0xff]
                %270 = vst [vmem:[%s268] sm:$0xff] %v269
                %v271 = vld [vmem:[%s267 + $0x8] sm:$0xff]
                %272 = vst [vmem:[%s268 + $0x8] sm:$0xff] %v271
                %v273 = vld [vmem:[%s267 + $0x20] sm:$0xff]
                %274 = vst [vmem:[%s268 + $0x10] sm:$0xff] %v273
                %v275 = vld [vmem:[%s267 + $0x28] sm:$0xff]
                %276 = vst [vmem:[%s268 + $0x18] sm:$0xff] %v275
                %v277 = vld [vmem:[%s267 + $0x40] sm:$0xff]
                %278 = vst [vmem:[%s268 + $0x20] sm:$0xff] %v277
                %v279 = vld [vmem:[%s267 + $0x48] sm:$0xff]
                %280 = vst [vmem:[%s268 + $0x28] sm:$0xff] %v279
                %v281 = vld [vmem:[%s267 + $0x60] sm:$0xff]
                %282 = vst [vmem:[%s268 + $0x30] sm:$0xff] %v281
                %v283 = vld [vmem:[%s267 + $0x68] sm:$0xff]
                %284 = vst [vmem:[%s268 + $0x38] sm:$0xff] %v283
                %v285 = vld [vmem:[%s267 + $0x80] sm:$0xff]
                %286 = vst [vmem:[%s268 + $0x40] sm:$0xff] %v285
                %v287 = vld [vmem:[%s267 + $0x88] sm:$0xff]
                %288 = vst [vmem:[%s268 + $0x48] sm:$0xff] %v287
                %v289 = vld [vmem:[%s267 + $0xa0] sm:$0xff]
                %290 = vst [vmem:[%s268 + $0x50] sm:$0xff] %v289
                %v291 = vld [vmem:[%s267 + $0xa8] sm:$0xff]
                %292 = vst [vmem:[%s268 + $0x58] sm:$0xff] %v291
                %v293 = vld [vmem:[%s267 + $0xc0] sm:$0xff]
                %294 = vst [vmem:[%s268 + $0x60] sm:$0xff] %v293
                %v295 = vld [vmem:[%s267 + $0xc8] sm:$0xff]
                %296 = vst [vmem:[%s268 + $0x68] sm:$0xff] %v295
                %v297 = vld [vmem:[%s267 + $0xe0] sm:$0xff]
                %298 = vst [vmem:[%s268 + $0x70] sm:$0xff] %v297
                %v299 = vld [vmem:[%s267 + $0xe8] sm:$0xff]
                %300 = vst [vmem:[%s268 + $0x78] sm:$0xff] %v299
                %v301 = vld [vmem:[%s267 + $0x100] sm:$0xff]
                %302 = vst [vmem:[%s268 + $0x80] sm:$0xff] %v301
                %v303 = vld [vmem:[%s267 + $0x108] sm:$0xff]
                %304 = vst [vmem:[%s268 + $0x88] sm:$0xff] %v303
                %v305 = vld [vmem:[%s267 + $0x120] sm:$0xff]
                %306 = vst [vmem:[%s268 + $0x90] sm:$0xff] %v305
                %v307 = vld [vmem:[%s267 + $0x128] sm:$0xff]
                %308 = vst [vmem:[%s268 + $0x98] sm:$0xff] %v307
                %v309 = vld [vmem:[%s267 + $0x140] sm:$0xff]
                %310 = vst [vmem:[%s268 + $0xa0] sm:$0xff] %v309
                %v311 = vld [vmem:[%s267 + $0x148] sm:$0xff]
                %312 = vst [vmem:[%s268 + $0xa8] sm:$0xff] %v311
                %v313 = vld [vmem:[%s267 + $0x160] sm:$0xff]
                %314 = vst [vmem:[%s268 + $0xb0] sm:$0xff] %v313
                %v315 = vld [vmem:[%s267 + $0x168] sm:$0xff]
                %316 = vst [vmem:[%s268 + $0xb8] sm:$0xff] %v315
                %v317 = vld [vmem:[%s267 + $0x180] sm:$0xff]
                %318 = vst [vmem:[%s268 + $0xc0] sm:$0xff] %v317
                %v319 = vld [vmem:[%s267 + $0x188] sm:$0xff]
                %320 = vst [vmem:[%s268 + $0xc8] sm:$0xff] %v319
                %v321 = vld [vmem:[%s267 + $0x1a0] sm:$0xff]
                %322 = vst [vmem:[%s268 + $0xd0] sm:$0xff] %v321
                %v323 = vld [vmem:[%s267 + $0x1a8] sm:$0xff]
                %324 = vst [vmem:[%s268 + $0xd8] sm:$0xff] %v323
                %v325 = vld [vmem:[%s267 + $0x1c0] sm:$0xff]
                %326 = vst [vmem:[%s268 + $0xe0] sm:$0xff] %v325
                %v327 = vld [vmem:[%s267 + $0x1c8] sm:$0xff]
                %328 = vst [vmem:[%s268 + $0xe8] sm:$0xff] %v327
                %v329 = vld [vmem:[%s267 + $0x1e0] sm:$0xff]
                %330 = vst [vmem:[%s268 + $0xf0] sm:$0xff] %v329
                %v331 = vld [vmem:[%s267 + $0x1e8] sm:$0xff]
                %332 = vst [vmem:[%s268 + $0xf8] sm:$0xff] %v331
              $region37: #{attention_forward_pallas.4} parent=31 // loop_footer
                %s266 = sadd.s32 1, %s262
              $region38: #{attention_forward_pallas.4} parent=31 // loop_footer_branch
                %261 = sbr.rel target = $region34
              $region39: #{attention_forward_pallas.4} parent=31 // loop_exit
                _
            $region32: #{attention_forward_pallas.4} parent=27 // pred_fallthru
              _
            // Predicated region
            $region40: #{attention_forward_pallas.4} parent=27 // pred_check
              _
            $region41: #{attention_forward_pallas.4} parent=27 // pred_check_branch
              %334 = sbr.rel target = $region43
            $region42: #{attention_forward_pallas.4} parent=27 // pred_region
              _
            $region43: #{attention_forward_pallas.4} parent=27 // pred_fallthru
              _
          $region28: #{attention_forward_pallas.4} parent=23 // pred_fallthru
            _
          %335 = vnop
        $region24: #{attention_forward_pallas.4} parent=15 // pred_fallthru
          _
        // Predicated region
        $region44: #{attention_forward_pallas.4} parent=15 // pred_check
          %p336 = pneg %p120
        $region45: #{attention_forward_pallas.4} parent=15 // pred_check_branch
          %338 = sbr.rel (%p336) target = $region47
        $region46: #{attention_forward_pallas.4} parent=15 // pred_region
          %s339 = smul.u32 2, %s23
          %p340 = scmp.lt.s32.totalorder %s22, 0
          %s341 = scalar_select %p340, %s22, 0
          %p342 = scmp.lt.s32.totalorder %s339, 3
          %s343 = scalar_select %p342, %s339, 3
          %s344 = smul.addr %s341, 4
          %s345 = sadd.s32 %s343, %s344
          %s346 = smul.addr %s345, 8
          %s347 = scalar_lea.vmem %s2, %s346
          %s348 = smul.u32 2, %s23
        $region47: #{attention_forward_pallas.4} parent=15 // pred_fallthru
          _
        // Predicated region
        $region48: #{attention_forward_pallas.4} parent=15 // pred_check
          %p349 = pneg %p148
        $region49: #{attention_forward_pallas.4} parent=15 // pred_check_branch
          %351 = sbr.rel (%p349) target = $region51
        $region50: #{attention_forward_pallas.4} parent=15 // pred_region
          %s352 = smul.u32 2, %s23
          %p353 = scmp.lt.s32.totalorder %s22, 0
          %s354 = scalar_select %p353, %s22, 0
          %p355 = scmp.lt.s32.totalorder %s352, 3
          %s356 = scalar_select %p355, %s352, 3
          %s357 = smul.addr %s354, 4
          %s358 = sadd.s32 %s356, %s357
          %s359 = smul.addr %s358, 8
          %s360 = scalar_lea.vmem %s3, %s359
          %s361 = smul.u32 2, %s23
        $region51: #{attention_forward_pallas.4} parent=15 // pred_fallthru
          _
        // Predicated region
        $region52: #{attention_forward_pallas.4} parent=15 // pred_check
          %p362 = pneg %p174
        $region53: #{attention_forward_pallas.4} parent=15 // pred_check_branch
          %364 = sbr.rel (%p362) target = $region55
        $region54: #{attention_forward_pallas.4} parent=15 // pred_region
          %s365 = sand.u32 %s164, 1
          %s366 = scalar_lea.sflag [#allocation5], %s365
          %s367 = sand.u32 %s164, 1
          %s368 = smul.addr %s367, 512
          %s369 = scalar_lea.vmem [#allocation4], %s368
          %s371 = ssub.s32 8192, 8192
          %372 = vsyncadd %s366, %s371
          %s373 = smul.addr %s23, 64
          %s374 = smul.addr %s373, 128
          %s375 = scalar_lea.hbm %s4, %s374
          %s376 = sshll.u32 %s369, 4
          %s377 = int_to_ptr.vmem [resolvable:$true] %s376
          %382 = dma.hbm_to_vmem [thread:$0]  %s375, 8192, %s377, %s366, 256, 256, 16
        $region55: #{attention_forward_pallas.4} parent=15 // pred_fallthru
          _
      $region16: #{attention_forward_pallas.4} parent=5 // pred_fallthru
        _
      %p383 = scmp.le.s32.totalorder 1, %s14
      %p384 = scmp.lt.s32.totalorder %s14, 9
      %p385 = pnand %p383, %p384
      %p386 = pneg %p385
      // Predicated region
      $region56: #{attention_forward_pallas.4} parent=5 // pred_check
        _
      $region57: #{attention_forward_pallas.4} parent=5 // pred_check_branch
        %388 = sbr.rel (%p385) target = $region59
      $region58: #{attention_forward_pallas.4} parent=5 // pred_region
        %s389 = ssub.s32 %s14, 1
        %s390 = sand.u32 %s85, 1
        %s391 = sand.u32 %s85, 1
        %s392 = smul.addr %s391, 256
        %s393 = scalar_lea.vmem [#allocation3], %s392
        // Predicated region
        $region60: #{attention_forward_pallas.4} parent=58 // pred_check
          %p394 = pneg %p98
        $region61: #{attention_forward_pallas.4} parent=58 // pred_check_branch
          %396 = sbr.rel (%p394) target = $region63
        $region62: #{attention_forward_pallas.4} parent=58 // pred_region
          _
        $region63: #{attention_forward_pallas.4} parent=58 // pred_fallthru
          _
        %s397 = sand.u32 %s167, 1
        %s398 = scalar_lea.sflag [#allocation5], %s397
        %s399 = sand.u32 %s167, 1
        %s400 = smul.addr %s399, 512
        %s401 = scalar_lea.vmem [#allocation4], %s400
        // Predicated region
        $region64: #{attention_forward_pallas.4} parent=58 // pred_check
          %p402 = pneg %p180
        $region65: #{attention_forward_pallas.4} parent=58 // pred_check_branch
          %404 = sbr.rel (%p402) target = $region67
        $region66: #{attention_forward_pallas.4} parent=58 // pred_region
          %405 = dma.done %s398, 8192
        $region67: #{attention_forward_pallas.4} parent=58 // pred_fallthru
          _
        %p406 = scmp.lt.s32.totalorder %s25, 1
        %s407 = scalar_select %p406, %s25, 1
        %p408 = scmp.lt.s32.totalorder %s26, 0
        %s409 = scalar_select %p408, %s26, 0
        %p410 = scmp.lt.s32.totalorder %s28, 1
        %s411 = scalar_select %p410, %s28, 1
        %s412 = smul.addr %s409, 2
        %s413 = sadd.s32 %s411, %s412
        %s414 = smul.addr %s407, 2
        %s415 = sadd.s32 %s413, %s414
        %s416 = smul.addr %s415, 8
        %s417 = scalar_lea.vmem %s0, %s416
        %p418 = pneg %p70
        %p419 = pneg %p67
        %s420 = sand.u32 %s85, 1
        %s421 = sand.u32 %s85, 1
        %s422 = smul.addr %s421, 256
        %s423 = scalar_lea.vmem [#allocation3], %s422
        %p424 = pneg %p98
        %p425 = pneg %p95
        %s426 = smul.u32 2, %s27
        %p427 = scmp.lt.s32.totalorder %s26, 0
        %s428 = scalar_select %p427, %s26, 0
        %p429 = scmp.lt.s32.totalorder %s426, 3
        %s430 = scalar_select %p429, %s426, 3
        %s431 = smul.addr %s428, 4
        %s432 = sadd.s32 %s430, %s431
        %s433 = smul.addr %s432, 8
        %s434 = scalar_lea.vmem %s2, %s433
        %p435 = pneg %p126
        %p436 = pneg %p123
        %s437 = smul.u32 2, %s27
        %p438 = scmp.lt.s32.totalorder %s26, 0
        %s439 = scalar_select %p438, %s26, 0
        %p440 = scmp.lt.s32.totalorder %s437, 3
        %s441 = scalar_select %p440, %s437, 3
        %s442 = smul.addr %s439, 4
        %s443 = sadd.s32 %s441, %s442
        %s444 = smul.addr %s443, 8
        %s445 = scalar_lea.vmem %s3, %s444
        %p446 = pneg %p154
        %p447 = pneg %p151
        %s448 = sand.u32 %s167, 1
        %s449 = scalar_lea.sflag [#allocation5], %s448
        %s450 = sand.u32 %s167, 1
        %s451 = smul.addr %s450, 512
        %s452 = scalar_lea.vmem [#allocation4], %s451
        %p453 = pneg %p180
        %p454 = pneg %p177
        %p455 = pneg %p210
        %p456 = pneg %p207
        %s457 = smul.u32 2, %s27
        %p458 = scmp.lt.s32.totalorder %s25, 1
        %s459 = scalar_select %p458, %s25, 1
        %p460 = scmp.lt.s32.totalorder %s26, 0
        %s461 = scalar_select %p460, %s26, 0
        %p462 = scmp.lt.s32.totalorder %s457, 3
        %s463 = scalar_select %p462, %s457, 3
        %s464 = smul.addr %s461, 4
        %s465 = sadd.s32 %s463, %s464
        %s466 = smul.addr %s459, 4
        %s467 = sadd.s32 %s465, %s466
        %s468 = smul.addr %s467, 8
        %s469 = scalar_lea.vmem %s5, %s468
        %p470 = scmp.lt.s32.totalorder %s25, 1
        %s471 = scalar_select %p470, %s25, 1
        %p472 = scmp.lt.s32.totalorder %s26, 0
        %s473 = scalar_select %p472, %s26, 0
        %p474 = scmp.lt.s32.totalorder %s28, 1
        %s475 = scalar_select %p474, %s28, 1
        %s476 = smul.addr %s473, 2
        %s477 = sadd.s32 %s475, %s476
        %s478 = smul.addr %s471, 2
        %s479 = sadd.s32 %s477, %s478
        %s480 = smul.addr %s479, 8
        %s481 = scalar_lea.vmem %s0, %s480
        %s482 = smul.u32 16, %s28
        %s483 = smul.u32 2, %s27
        %s484 = smul.u32 2, %s27
        %p485 = scmp.lt.s32.totalorder %s26, 0
        %s486 = scalar_select %p485, %s26, 0
        %p487 = scmp.lt.s32.totalorder %s484, 3
        %s488 = scalar_select %p487, %s484, 3
        %s489 = smul.addr %s486, 4
        %s490 = sadd.s32 %s488, %s489
        %s491 = smul.addr %s490, 8
        %s492 = scalar_lea.vmem %s2, %s491
        %s493 = smul.u32 2, %s27
        %s494 = smul.u32 2, %s27
        %p495 = scmp.lt.s32.totalorder %s26, 0
        %s496 = scalar_select %p495, %s26, 0
        %p497 = scmp.lt.s32.totalorder %s494, 3
        %s498 = scalar_select %p497, %s494, 3
        %s499 = smul.addr %s496, 4
        %s500 = sadd.s32 %s498, %s499
        %s501 = smul.addr %s500, 8
        %s502 = scalar_lea.vmem %s3, %s501
        %s503 = smul.u32 2, %s27
        %s504 = smul.u32 2, %s27
        %p505 = scmp.lt.s32.totalorder %s25, 1
        %s506 = scalar_select %p505, %s25, 1
        %p507 = scmp.lt.s32.totalorder %s26, 0
        %s508 = scalar_select %p507, %s26, 0
        %p509 = scmp.lt.s32.totalorder %s504, 3
        %s510 = scalar_select %p509, %s504, 3
        %s511 = smul.addr %s508, 4
        %s512 = sadd.s32 %s510, %s511
        %s513 = smul.addr %s506, 4
        %s514 = sadd.s32 %s512, %s513
        %s515 = smul.addr %s514, 8
        %s516 = scalar_lea.vmem %s5, %s515
        %s517 = smul.u32 2, %s27
        %p518 = scmp.eq.s32.totalorder %s28, 0
        // Predicated region
        $region68: #{attention_forward_pallas.4} parent=58 // pred_check
          %p519 = pneg %p518
        $region69: #{attention_forward_pallas.4} parent=58 // pred_check_branch
          %521 = sbr.rel (%p519) target = $region71
        $region70: #{attention_forward_pallas.4} parent=58 // pred_region
          %522 = vst [vmem:[#allocation2] sm:$0xff] 0.0
          %523 = vst [vmem:[#allocation2 + $0x8] sm:$0xff] 0.0
        $region71: #{attention_forward_pallas.4} parent=58 // pred_fallthru
          _
        %v524 = vld [vmem:[#allocation2] sm:$0xff]
        %v525 = vld [vmem:[#allocation2 + $0x8] sm:$0xff]
        %v526 = vld [vmem:[%s481] sm:$0xff]
        %v527 = vld [vmem:[%s393] sm:$0xff]
        %v528 = vld [vmem:[%s393 + $0x8] sm:$0xff]
        %v529 = vld [vmem:[%s393 + $0x10] sm:$0xff]
        %v530 = vld [vmem:[%s393 + $0x18] sm:$0xff]
        %v531 = vld [vmem:[%s393 + $0x20] sm:$0xff]
        %v532 = vld [vmem:[%s393 + $0x28] sm:$0xff]
        %v533 = vld [vmem:[%s393 + $0x30] sm:$0xff]
        %v534 = vld [vmem:[%s393 + $0x38] sm:$0xff]
        %v535 = vld [vmem:[%s393 + $0x40] sm:$0xff]
        %v536 = vld [vmem:[%s393 + $0x48] sm:$0xff]
        %v537 = vld [vmem:[%s393 + $0x50] sm:$0xff]
        %v538 = vld [vmem:[%s393 + $0x58] sm:$0xff]
        %v539 = vld [vmem:[%s393 + $0x60] sm:$0xff]
        %v540 = vld [vmem:[%s393 + $0x68] sm:$0xff]
        %v541 = vld [vmem:[%s393 + $0x70] sm:$0xff]
        %v542 = vld [vmem:[%s393 + $0x78] sm:$0xff]
        %v543 = vld [vmem:[%s393 + $0x80] sm:$0xff]
        %v544 = vld [vmem:[%s393 + $0x88] sm:$0xff]
        %v545 = vld [vmem:[%s393 + $0x90] sm:$0xff]
        %v546 = vld [vmem:[%s393 + $0x98] sm:$0xff]
        %v547 = vld [vmem:[%s393 + $0xa0] sm:$0xff]
        %v548 = vld [vmem:[%s393 + $0xa8] sm:$0xff]
        %v549 = vld [vmem:[%s393 + $0xb0] sm:$0xff]
        %v550 = vld [vmem:[%s393 + $0xb8] sm:$0xff]
        %v551 = vld [vmem:[%s393 + $0xc0] sm:$0xff]
        %v552 = vld [vmem:[%s393 + $0xc8] sm:$0xff]
        %v553 = vld [vmem:[%s393 + $0xd0] sm:$0xff]
        %v554 = vld [vmem:[%s393 + $0xd8] sm:$0xff]
        %v555 = vld [vmem:[%s393 + $0xe0] sm:$0xff]
        %v556 = vld [vmem:[%s393 + $0xe8] sm:$0xff]
        %v557 = vld [vmem:[%s393 + $0xf0] sm:$0xff]
        %v558 = vld [vmem:[%s393 + $0xf8] sm:$0xff]
        %559 = vmatprep.subr.mxu0 %v528
        %560 = vmatpush1.msra.mxu0 %v527
        %561 = vmatprep.subr.mxu0 %v530
        %562 = vmatpush1.msra.mxu0 %v529
        %563 = vmatprep.subr.mxu0 %v532
        %564 = vmatpush1.msra.mxu0 %v531
        %565 = vmatprep.subr.mxu0 %v534
        %566 = vmatpush1.msra.mxu0 %v533
        %567 = vmatprep.subr.mxu0 %v536
        %568 = vmatpush1.msra.mxu0 %v535
        %569 = vmatprep.subr.mxu0 %v538
        %570 = vmatpush1.msra.mxu0 %v537
        %571 = vmatprep.subr.mxu0 %v540
        %572 = vmatpush1.msra.mxu0 %v539
        %573 = vmatprep.subr.mxu0 %v542
        %574 = vmatpush1.msra.mxu0 %v541
        %575 = vmatprep.subr.mxu0 %v544
        %576 = vmatpush1.msra.mxu0 %v543
        %577 = vmatprep.subr.mxu0 %v546
        %578 = vmatpush1.msra.mxu0 %v545
        %579 = vmatprep.subr.mxu0 %v548
        %580 = vmatpush1.msra.mxu0 %v547
        %581 = vmatprep.subr.mxu0 %v550
        %582 = vmatpush1.msra.mxu0 %v549
        %583 = vmatprep.subr.mxu0 %v552
        %584 = vmatpush1.msra.mxu0 %v551
        %585 = vmatprep.subr.mxu0 %v554
        %586 = vmatpush1.msra.mxu0 %v553
        %587 = vmatprep.subr.mxu0 %v556
        %588 = vmatpush1.msra.mxu0 %v555
        %589 = vmatprep.subr.mxu0 %v558
        %590 = vmatpush1.msra.mxu0 %v557
        %591 = vmatprep.subr.mxu0 0.0
        %592 = vmatpush1.msra.mxu0 0.0
        %593 = vmatprep.subr.mxu0 0.0
        %594 = vmatpush1.msra.mxu0 0.0
        %595 = vmatprep.subr.mxu0 0.0
        %596 = vmatpush1.msra.mxu0 0.0
        %597 = vmatprep.subr.mxu0 0.0
        %598 = vmatpush1.msra.mxu0 0.0
        %599 = vmatprep.subr.mxu0 0.0
        %600 = vmatpush1.msra.mxu0 0.0
        %601 = vmatprep.subr.mxu0 0.0
        %602 = vmatpush1.msra.mxu0 0.0
        %603 = vmatprep.subr.mxu0 0.0
        %604 = vmatpush1.msra.mxu0 0.0
        %605 = vmatprep.subr.mxu0 0.0
        %606 = vmatpush1.msra.mxu0 0.0
        %607 = vmatprep.subr.mxu0 0.0
        %608 = vmatpush1.msra.mxu0 0.0
        %609 = vmatprep.subr.mxu0 0.0
        %610 = vmatpush1.msra.mxu0 0.0
        %611 = vmatprep.subr.mxu0 0.0
        %612 = vmatpush1.msra.mxu0 0.0
        %613 = vmatprep.subr.mxu0 0.0
        %614 = vmatpush1.msra.mxu0 0.0
        %615 = vmatprep.subr.mxu0 0.0
        %616 = vmatpush1.msra.mxu0 0.0
        %617 = vmatprep.subr.mxu0 0.0
        %618 = vmatpush1.msra.mxu0 0.0
        %619 = vmatprep.subr.mxu0 0.0
        %620 = vmatpush1.msra.mxu0 0.0
        %621 = vmatprep.subr.mxu0 0.0
        %622 = vmatpush1.msra.mxu0 0.0
        %623 = vmatprep.mubr.f32.mxu0 0.0
        %624 = vmatmul.mubr.f32.gmra.mrb[0].mxu0 %v526
        %v625 = vpop.f32.mrb[0].mxu0
        %v626 = vadd.f32 0.0, %v625
        %v627 = vpop.f32.mrb[0].mxu0
        %v628 = vadd.f32 0.0, %v627
        %629 = vdwg.mxu0
        %v630 = vadd.f32 %v524, %v626
        %v631 = vadd.f32 %v525, %v628
        %632 = vst [vmem:[#allocation2] sm:$0xff] %v630
        %633 = vst [vmem:[#allocation2 + $0x8] sm:$0xff] %v631
        %p634 = scmp.eq.s32.totalorder %s28, 1
        // Predicated region
        $region72: #{attention_forward_pallas.4} parent=58 // pred_check
          %p635 = pneg %p634
        $region73: #{attention_forward_pallas.4} parent=58 // pred_check_branch
          %637 = sbr.rel (%p635) target = $region75
        $region74: #{attention_forward_pallas.4} parent=58 // pred_region
          %v638 = vld [vmem:[#allocation2] sm:$0xff]
          %v639 = vld [vmem:[#allocation2 + $0x8] sm:$0xff]
          %v640 = vld [vmem:[%s401] sm:$0xff]
          %v641 = vld [vmem:[%s401 + $0x8] sm:$0xff]
          %v642 = vld [vmem:[%s401 + $0x10] sm:$0xff]
          %v643 = vld [vmem:[%s401 + $0x18] sm:$0xff]
          %v644 = vld [vmem:[%s401 + $0x20] sm:$0xff]
          %v645 = vld [vmem:[%s401 + $0x28] sm:$0xff]
          %v646 = vld [vmem:[%s401 + $0x30] sm:$0xff]
          %v647 = vld [vmem:[%s401 + $0x38] sm:$0xff]
          %v648 = vld [vmem:[%s401 + $0x40] sm:$0xff]
          %v649 = vld [vmem:[%s401 + $0x48] sm:$0xff]
          %v650 = vld [vmem:[%s401 + $0x50] sm:$0xff]
          %v651 = vld [vmem:[%s401 + $0x58] sm:$0xff]
          %v652 = vld [vmem:[%s401 + $0x60] sm:$0xff]
          %v653 = vld [vmem:[%s401 + $0x68] sm:$0xff]
          %v654 = vld [vmem:[%s401 + $0x70] sm:$0xff]
          %v655 = vld [vmem:[%s401 + $0x78] sm:$0xff]
          %v656 = vld [vmem:[%s401 + $0x80] sm:$0xff]
          %v657 = vld [vmem:[%s401 + $0x88] sm:$0xff]
          %v658 = vld [vmem:[%s401 + $0x90] sm:$0xff]
          %v659 = vld [vmem:[%s401 + $0x98] sm:$0xff]
          %v660 = vld [vmem:[%s401 + $0xa0] sm:$0xff]
          %v661 = vld [vmem:[%s401 + $0xa8] sm:$0xff]
          %v662 = vld [vmem:[%s401 + $0xb0] sm:$0xff]
          %v663 = vld [vmem:[%s401 + $0xb8] sm:$0xff]
          %v664 = vld [vmem:[%s401 + $0xc0] sm:$0xff]
          %v665 = vld [vmem:[%s401 + $0xc8] sm:$0xff]
          %v666 = vld [vmem:[%s401 + $0xd0] sm:$0xff]
          %v667 = vld [vmem:[%s401 + $0xd8] sm:$0xff]
          %v668 = vld [vmem:[%s401 + $0xe0] sm:$0xff]
          %v669 = vld [vmem:[%s401 + $0xe8] sm:$0xff]
          %v670 = vld [vmem:[%s401 + $0xf0] sm:$0xff]
          %v671 = vld [vmem:[%s401 + $0xf8] sm:$0xff]
          %v672 = vld [vmem:[%s401 + $0x100] sm:$0xff]
          %v673 = vld [vmem:[%s401 + $0x108] sm:$0xff]
          %v674 = vld [vmem:[%s401 + $0x110] sm:$0xff]
          %v675 = vld [vmem:[%s401 + $0x118] sm:$0xff]
          %v676 = vld [vmem:[%s401 + $0x120] sm:$0xff]
          %v677 = vld [vmem:[%s401 + $0x128] sm:$0xff]
          %v678 = vld [vmem:[%s401 + $0x130] sm:$0xff]
          %v679 = vld [vmem:[%s401 + $0x138] sm:$0xff]
          %v680 = vld [vmem:[%s401 + $0x140] sm:$0xff]
          %v681 = vld [vmem:[%s401 + $0x148] sm:$0xff]
          %v682 = vld [vmem:[%s401 + $0x150] sm:$0xff]
          %v683 = vld [vmem:[%s401 + $0x158] sm:$0xff]
          %v684 = vld [vmem:[%s401 + $0x160] sm:$0xff]
          %v685 = vld [vmem:[%s401 + $0x168] sm:$0xff]
          %v686 = vld [vmem:[%s401 + $0x170] sm:$0xff]
          %v687 = vld [vmem:[%s401 + $0x178] sm:$0xff]
          %v688 = vld [vmem:[%s401 + $0x180] sm:$0xff]
          %v689 = vld [vmem:[%s401 + $0x188] sm:$0xff]
          %v690 = vld [vmem:[%s401 + $0x190] sm:$0xff]
          %v691 = vld [vmem:[%s401 + $0x198] sm:$0xff]
          %v692 = vld [vmem:[%s401 + $0x1a0] sm:$0xff]
          %v693 = vld [vmem:[%s401 + $0x1a8] sm:$0xff]
          %v694 = vld [vmem:[%s401 + $0x1b0] sm:$0xff]
          %v695 = vld [vmem:[%s401 + $0x1b8] sm:$0xff]
          %v696 = vld [vmem:[%s401 + $0x1c0] sm:$0xff]
          %v697 = vld [vmem:[%s401 + $0x1c8] sm:$0xff]
          %v698 = vld [vmem:[%s401 + $0x1d0] sm:$0xff]
          %v699 = vld [vmem:[%s401 + $0x1d8] sm:$0xff]
          %v700 = vld [vmem:[%s401 + $0x1e0] sm:$0xff]
          %v701 = vld [vmem:[%s401 + $0x1e8] sm:$0xff]
          %v702 = vld [vmem:[%s401 + $0x1f0] sm:$0xff]
          %v703 = vld [vmem:[%s401 + $0x1f8] sm:$0xff]
          %704 = vmatprep.subr.mxu0 %v641
          %705 = vmatpush1.msra.mxu0 %v640
          %706 = vmatprep.subr.mxu0 %v643
          %707 = vmatpush1.msra.mxu0 %v642
          %708 = vmatprep.subr.mxu0 %v645
          %709 = vmatpush1.msra.mxu0 %v644
          %710 = vmatprep.subr.mxu0 %v647
          %711 = vmatpush1.msra.mxu0 %v646
          %712 = vmatprep.subr.mxu0 %v649
          %713 = vmatpush1.msra.mxu0 %v648
          %714 = vmatprep.subr.mxu0 %v651
          %715 = vmatpush1.msra.mxu0 %v650
          %716 = vmatprep.subr.mxu0 %v653
          %717 = vmatpush1.msra.mxu0 %v652
          %718 = vmatprep.subr.mxu0 %v655
          %719 = vmatpush1.msra.mxu0 %v654
          %720 = vmatprep.subr.mxu0 %v657
          %721 = vmatpush1.msra.mxu0 %v656
          %722 = vmatprep.subr.mxu0 %v659
          %723 = vmatpush1.msra.mxu0 %v658
          %724 = vmatprep.subr.mxu0 %v661
          %725 = vmatpush1.msra.mxu0 %v660
          %726 = vmatprep.subr.mxu0 %v663
          %727 = vmatpush1.msra.mxu0 %v662
          %728 = vmatprep.subr.mxu0 %v665
          %729 = vmatpush1.msra.mxu0 %v664
          %730 = vmatprep.subr.mxu0 %v667
          %731 = vmatpush1.msra.mxu0 %v666
          %732 = vmatprep.subr.mxu0 %v669
          %733 = vmatpush1.msra.mxu0 %v668
          %734 = vmatprep.subr.mxu0 %v671
          %735 = vmatpush1.msra.mxu0 %v670
          %736 = vmatprep.subr.mxu0 %v673
          %737 = vmatpush1.msra.mxu0 %v672
          %738 = vmatprep.subr.mxu0 %v675
          %739 = vmatpush1.msra.mxu0 %v674
          %740 = vmatprep.subr.mxu0 %v677
          %741 = vmatpush1.msra.mxu0 %v676
          %742 = vmatprep.subr.mxu0 %v679
          %743 = vmatpush1.msra.mxu0 %v678
          %744 = vmatprep.subr.mxu0 %v681
          %745 = vmatpush1.msra.mxu0 %v680
          %746 = vmatprep.subr.mxu0 %v683
          %747 = vmatpush1.msra.mxu0 %v682
          %748 = vmatprep.subr.mxu0 %v685
          %749 = vmatpush1.msra.mxu0 %v684
          %750 = vmatprep.subr.mxu0 %v687
          %751 = vmatpush1.msra.mxu0 %v686
          %752 = vmatprep.subr.mxu0 %v689
          %753 = vmatpush1.msra.mxu0 %v688
          %754 = vmatprep.subr.mxu0 %v691
          %755 = vmatpush1.msra.mxu0 %v690
          %756 = vmatprep.subr.mxu0 %v693
          %757 = vmatpush1.msra.mxu0 %v692
          %758 = vmatprep.subr.mxu0 %v695
          %759 = vmatpush1.msra.mxu0 %v694
          %760 = vmatprep.subr.mxu0 %v697
          %761 = vmatpush1.msra.mxu0 %v696
          %762 = vmatprep.subr.mxu0 %v699
          %763 = vmatpush1.msra.mxu0 %v698
          %764 = vmatprep.subr.mxu0 %v701
          %765 = vmatpush1.msra.mxu0 %v700
          %766 = vmatprep.subr.mxu0 %v703
          %767 = vmatpush1.msra.mxu0 %v702
          %768 = vmatprep.mubr.f32.mxu0 %v639
          %769 = vmatmul.mubr.f32.gmra.mrb[0].mxu0 %v638
          %v770 = vpop.f32.mrb[0].mxu0
          %v771 = vadd.f32 0.0, %v770
          %v772 = vpop.f32.mrb[0].mxu0
          %v773 = vadd.f32 0.0, %v772
          %774 = vdwg.mxu0
          %v775 = vld [vmem:[%s492] sm:$0xff]
          %v776 = vld [vmem:[%s492 + $0x8] sm:$0xff]
          %v777 = vmul.f32 %v638, %v775
          %v778 = vmul.f32 %v639, %v776
          %v779 = vld [vmem:[%s502] sm:$0xff]
          %v780 = vld [vmem:[%s502 + $0x8] sm:$0xff]
          %v781 = vmul.f32 %v771, %v779
          %v782 = vmul.f32 %v773, %v780
          %v783 = vadd.f32 %v777, %v781
          %v784 = vadd.f32 %v778, %v782
          %785 = vst [vmem:[%s516] sm:$0xff] %v783
          %786 = vst [vmem:[%s516 + $0x8] sm:$0xff] %v784
        $region75: #{attention_forward_pallas.4} parent=58 // pred_fallthru
          _
        %s787 = smul.u32 2, %s27
        %p788 = scmp.lt.s32.totalorder %s25, 1
        %s789 = scalar_select %p788, %s25, 1
        %p790 = scmp.lt.s32.totalorder %s26, 0
        %s791 = scalar_select %p790, %s26, 0
        %p792 = scmp.lt.s32.totalorder %s787, 3
        %s793 = scalar_select %p792, %s787, 3
        %s794 = smul.addr %s791, 4
        %s795 = sadd.s32 %s793, %s794
        %s796 = smul.addr %s789, 4
        %s797 = sadd.s32 %s795, %s796
        %s798 = smul.addr %s797, 8
        %s799 = scalar_lea.vmem %s5, %s798
        // Predicated region
        $region76: #{attention_forward_pallas.4} parent=58 // pred_check
          %p800 = pneg %p207
        $region77: #{attention_forward_pallas.4} parent=58 // pred_check_branch
          %802 = sbr.rel (%p800) target = $region79
        $region78: #{attention_forward_pallas.4} parent=58 // pred_region
          %s803 = smul.u32 2, %s27
        $region79: #{attention_forward_pallas.4} parent=58 // pred_fallthru
          _
      $region59: #{attention_forward_pallas.4} parent=5 // pred_fallthru
        _
      %p804 = scmp.le.s32.totalorder 2, %s14
      // Predicated region
      $region80: #{attention_forward_pallas.4} parent=5 // pred_check
        %p805 = pneg %p804
      $region81: #{attention_forward_pallas.4} parent=5 // pred_check_branch
        %807 = sbr.rel (%p805) target = $region83
      $region82: #{attention_forward_pallas.4} parent=5 // pred_region
        %s808 = ssub.s32 %s14, 2
        // Predicated region
        $region84: #{attention_forward_pallas.4} parent=82 // pred_check
          %p809 = pneg %p213
        $region85: #{attention_forward_pallas.4} parent=82 // pred_check_branch
          %811 = sbr.rel (%p809) target = $region87
        $region86: #{attention_forward_pallas.4} parent=82 // pred_region
          %s812 = smul.u32 2, %s31
          %p813 = scmp.lt.s32.totalorder %s29, 1
          %s814 = scalar_select %p813, %s29, 1
          %p815 = scmp.lt.s32.totalorder %s30, 0
          %s816 = scalar_select %p815, %s30, 0
          %p817 = scmp.lt.s32.totalorder %s812, 3
          %s818 = scalar_select %p817, %s812, 3
          %s819 = smul.addr %s816, 4
          %s820 = sadd.s32 %s818, %s819
          %s821 = smul.addr %s814, 4
          %s822 = sadd.s32 %s820, %s821
          %s823 = smul.addr %s822, 8
          %s824 = scalar_lea.vmem %s5, %s823
        $region87: #{attention_forward_pallas.4} parent=82 // pred_fallthru
          _
      $region83: #{attention_forward_pallas.4} parent=5 // pred_fallthru
        _
    $region6: #{attention_forward_pallas.4} parent=1 // loop_footer
      %s18 = sadd.s32 1, %s14
    $region7: #{attention_forward_pallas.4} parent=1 // loop_footer_branch
      %13 = sbr.rel target = $region3
    $region8: #{attention_forward_pallas.4} parent=1 // loop_exit
      _
    %825 = vsyncpa [#allocation5], 1
    %s826 = scalar_lea.sflag [#allocation5], 1
    %827 = vsyncpa %s826, 1

// kernel: attention_forward_pallas.6
$region0: #{attention_forward_pallas.6}
  #allocation0 [shape = 'u32[]', space=smem, size = 0x4, offset = 0x4, fixed_abs, tag = 'smem constant byte address 0x4 - core index']
  #allocation1 [shape = 'u32[144,128]{1,0:T(1,128)}', space=vmem, size = 0x12000, scoped, tag = 'internal scratch']
  #allocation2 [shape = 'f32[4,8,1]{2,1,0:T(8,128)}', space=vmem, size = 0x4000, scoped, tag = 'scratch operand']
  #allocation3 [shape = 'f32[4,8,1]{2,1,0:T(8,128)}', space=vmem, size = 0x4000, scoped, tag = 'scratch operand']
  #allocation4 [shape = 'f32[4,8,64]{2,1,0:T(8,128)}', space=vmem, size = 0x4000, scoped, tag = 'scratch operand']
  %s0 = inlined_call_operand.vmem [shape: f32[2,8,512], index: 0, kind: input, shape index: {}]
  %s1 = inlined_call_operand.vmem [shape: f32[2,16,128], index: 1, kind: input, shape index: {}]
  %s2 = inlined_call_operand.vmem [shape: f32[2,16,128], index: 2, kind: input, shape index: {}]
  %s3 = inlined_call_operand.vmem [shape: f32[2,8,256], index: 3, kind: output, shape index: {}]
  %s4 = sld [smem:[#allocation0]]
  $region53: #{attention_forward_pallas.6} parent=0
    _
  %s6 = ssub.s32 1, %s4
  %s7 = scalar_select 0, %s6, %s4
  loop: start=0, step=1, limit=6
  $region2: #{attention_forward_pallas.6} parent=0 // loop_pre_header
    _
  $region3: #{attention_forward_pallas.6} parent=0 // loop_header
    %s9 = sphi 0, %s13
    %p10 = scmp.ge.s32.totalorder %s9, 6
    %s16 = sphi 0, %s35
    %s17 = sphi 0, %s31
    %s18 = sphi 0, %s27
    %s19 = sphi 0, %s16
    %s20 = sphi 0, %s17
    %s21 = sphi 0, %s18
    %s22 = sphi 0, %s19
    %s23 = sphi 0, %s20
    %s24 = sphi 0, %s21
    %s40 = sphi 0, %s42
    %s43 = sphi 0, %s40
    %s44 = sphi 0, %s43
    %s60 = sphi 0, %s44
    %s68 = sphi 0, %s70
    %s71 = sphi 0, %s68
    %s72 = sphi 0, %s71
    %s88 = sphi 0, %s72
    %s96 = sphi 0, %s98
    %s99 = sphi 0, %s96
    %s100 = sphi 0, %s99
    %s116 = sphi 0, %s100
    %s124 = sphi 0, %s126
    %s127 = sphi 0, %s124
    %s128 = sphi 0, %s127
    %s144 = sphi 0, %s128
  $region4: #{attention_forward_pallas.6} parent=0 // loop_header_branch
    %12 = sbr.rel (%p10) target = $region8
  $region5: #{attention_forward_pallas.6} parent=0 // loop_body
    %s14 = ssub.s32 %s9, 1
    %s15 = ssub.s32 %s9, 2
    %s25 = sadd.s32 1, %s18
    %p26 = scmp.ge.s32.totalorder %s25, 2
    %s27 = scalar_select %p26, 0, %s25
    %s28 = sadd.s32 1, %s17
    %s29 = scalar_select %p26, %s28, %s17
    %p30 = scmp.ge.s32.totalorder %s29, 1
    %s31 = scalar_select %p30, 0, %s29
    %s32 = sadd.s32 1, %s16
    %s33 = scalar_select %p30, %s32, %s16
    %p34 = scmp.ge.s32.totalorder %s33, 2
    %s35 = scalar_select %p34, 0, %s33
    %s36 = ssub.s32 %s16, %s35
    %s37 = ssub.s32 %s17, %s31
    %s38 = sor.u32 %s36, %s37
    %p39 = scmp.eq.s32.totalorder %s38, 0
    %s41 = sadd.s32 %s40, 1
    %s42 = scalar_select %p39, %s40, %s41
    %p45 = pneg %p39
    %p46 = scmp.eq.s32.totalorder %s9, 3
    %p47 = por %p45, %p46
    %p48 = scmp.ne.s32.totalorder %s40, %s43
    %p49 = scmp.eq.s32.totalorder %s9, 0
    %p50 = por %p48, %p49
    %p51 = scmp.ne.s32.totalorder %s40, %s43
    %p52 = scmp.eq.s32.totalorder %s14, 3
    %p53 = por %p51, %p52
    %p54 = scmp.ne.s32.totalorder %s43, %s44
    %p55 = scmp.eq.s32.totalorder %s14, 0
    %p56 = por %p54, %p55
    %p57 = scmp.ne.s32.totalorder %s43, %s44
    %p58 = scmp.eq.s32.totalorder %s15, 3
    %p59 = por %p57, %p58
    %p61 = scmp.ne.s32.totalorder %s44, %s60
    %p62 = scmp.eq.s32.totalorder %s15, 0
    %p63 = por %p61, %p62
    %s64 = ssub.s32 %s16, %s35
    %s65 = ssub.s32 %s18, %s27
    %s66 = sor.u32 %s64, %s65
    %p67 = scmp.eq.s32.totalorder %s66, 0
    %s69 = sadd.s32 %s68, 1
    %s70 = scalar_select %p67, %s68, %s69
    %p73 = pneg %p67
    %p74 = scmp.eq.s32.totalorder %s9, 3
    %p75 = por %p73, %p74
    %p76 = scmp.ne.s32.totalorder %s68, %s71
    %p77 = scmp.eq.s32.totalorder %s9, 0
    %p78 = por %p76, %p77
    %p79 = scmp.ne.s32.totalorder %s68, %s71
    %p80 = scmp.eq.s32.totalorder %s14, 3
    %p81 = por %p79, %p80
    %p82 = scmp.ne.s32.totalorder %s71, %s72
    %p83 = scmp.eq.s32.totalorder %s14, 0
    %p84 = por %p82, %p83
    %p85 = scmp.ne.s32.totalorder %s71, %s72
    %p86 = scmp.eq.s32.totalorder %s15, 3
    %p87 = por %p85, %p86
    %p89 = scmp.ne.s32.totalorder %s72, %s88
    %p90 = scmp.eq.s32.totalorder %s15, 0
    %p91 = por %p89, %p90
    %s92 = ssub.s32 %s16, %s35
    %s93 = ssub.s32 %s18, %s27
    %s94 = sor.u32 %s92, %s93
    %p95 = scmp.eq.s32.totalorder %s94, 0
    %s97 = sadd.s32 %s96, 1
    %s98 = scalar_select %p95, %s96, %s97
    %p101 = pneg %p95
    %p102 = scmp.eq.s32.totalorder %s9, 3
    %p103 = por %p101, %p102
    %p104 = scmp.ne.s32.totalorder %s96, %s99
    %p105 = scmp.eq.s32.totalorder %s9, 0
    %p106 = por %p104, %p105
    %p107 = scmp.ne.s32.totalorder %s96, %s99
    %p108 = scmp.eq.s32.totalorder %s14, 3
    %p109 = por %p107, %p108
    %p110 = scmp.ne.s32.totalorder %s99, %s100
    %p111 = scmp.eq.s32.totalorder %s14, 0
    %p112 = por %p110, %p111
    %p113 = scmp.ne.s32.totalorder %s99, %s100
    %p114 = scmp.eq.s32.totalorder %s15, 3
    %p115 = por %p113, %p114
    %p117 = scmp.ne.s32.totalorder %s100, %s116
    %p118 = scmp.eq.s32.totalorder %s15, 0
    %p119 = por %p117, %p118
    %s120 = ssub.s32 %s16, %s35
    %s121 = ssub.s32 %s17, %s31
    %s122 = sor.u32 %s120, %s121
    %p123 = scmp.eq.s32.totalorder %s122, 0
    %s125 = sadd.s32 %s124, 1
    %s126 = scalar_select %p123, %s124, %s125
    %p129 = pneg %p123
    %p130 = scmp.eq.s32.totalorder %s9, 3
    %p131 = por %p129, %p130
    %p132 = scmp.ne.s32.totalorder %s124, %s127
    %p133 = scmp.eq.s32.totalorder %s9, 0
    %p134 = por %p132, %p133
    %p135 = scmp.ne.s32.totalorder %s124, %s127
    %p136 = scmp.eq.s32.totalorder %s14, 3
    %p137 = por %p135, %p136
    %p138 = scmp.ne.s32.totalorder %s127, %s128
    %p139 = scmp.eq.s32.totalorder %s14, 0
    %p140 = por %p138, %p139
    %p141 = scmp.ne.s32.totalorder %s127, %s128
    %p142 = scmp.eq.s32.totalorder %s15, 3
    %p143 = por %p141, %p142
    %p145 = scmp.ne.s32.totalorder %s128, %s144
    %p146 = scmp.eq.s32.totalorder %s15, 0
    %p147 = por %p145, %p146
    %p148 = scmp.le.s32.totalorder 1, %s9
    %p149 = scmp.lt.s32.totalorder %s9, 5
    %p150 = pnand %p148, %p149
    %p151 = pneg %p150
    // Predicated region
    $region9: #{attention_forward_pallas.6} parent=5 // pred_check
      _
    $region10: #{attention_forward_pallas.6} parent=5 // pred_check_branch
      %153 = sbr.rel (%p150) target = $region12
    $region11: #{attention_forward_pallas.6} parent=5 // pred_region
      %s154 = ssub.s32 %s9, 1
    $region12: #{attention_forward_pallas.6} parent=5 // pred_fallthru
      _
    %p155 = scmp.lt.s32.totalorder %s9, 4
    // Predicated region
    $region13: #{attention_forward_pallas.6} parent=5 // pred_check
      %p156 = pneg %p155
    $region14: #{attention_forward_pallas.6} parent=5 // pred_check_branch
      %158 = sbr.rel (%p156) target = $region16
    $region15: #{attention_forward_pallas.6} parent=5 // pred_region
      // Predicated region
      $region17: #{attention_forward_pallas.6} parent=15 // pred_check
        %p159 = pneg %p50
      $region18: #{attention_forward_pallas.6} parent=15 // pred_check_branch
        %161 = sbr.rel (%p159) target = $region20
      $region19: #{attention_forward_pallas.6} parent=15 // pred_region
        %p162 = scmp.lt.s32.totalorder %s16, 1
        %s163 = scalar_select %p162, %s16, 1
        %p164 = scmp.lt.s32.totalorder %s17, 0
        %s165 = scalar_select %p164, %s17, 0
        %s166 = smul.addr %s165, 4
        %s167 = smul.addr %s163, 4
        %s168 = sadd.s32 %s166, %s167
        %s169 = smul.addr %s168, 8
        %s170 = scalar_lea.vmem %s0, %s169
      $region20: #{attention_forward_pallas.6} parent=15 // pred_fallthru
        _
      // Predicated region
      $region21: #{attention_forward_pallas.6} parent=15 // pred_check
        %p171 = pneg %p78
      $region22: #{attention_forward_pallas.6} parent=15 // pred_check_branch
        %173 = sbr.rel (%p171) target = $region24
      $region23: #{attention_forward_pallas.6} parent=15 // pred_region
        %p174 = scmp.lt.s32.totalorder %s16, 1
        %s175 = scalar_select %p174, %s16, 1
        %p176 = scmp.lt.s32.totalorder %s18, 1
        %s177 = scalar_select %p176, %s18, 1
        %s178 = smul.addr %s175, 2
        %s179 = sadd.s32 %s177, %s178
        %s180 = smul.addr %s179, 8
        %s181 = scalar_lea.vmem %s1, %s180
      $region24: #{attention_forward_pallas.6} parent=15 // pred_fallthru
        _
      // Predicated region
      $region25: #{attention_forward_pallas.6} parent=15 // pred_check
        %p182 = pneg %p106
      $region26: #{attention_forward_pallas.6} parent=15 // pred_check_branch
        %184 = sbr.rel (%p182) target = $region28
      $region27: #{attention_forward_pallas.6} parent=15 // pred_region
        %p185 = scmp.lt.s32.totalorder %s16, 1
        %s186 = scalar_select %p185, %s16, 1
        %p187 = scmp.lt.s32.totalorder %s18, 1
        %s188 = scalar_select %p187, %s18, 1
        %s189 = smul.addr %s186, 2
        %s190 = sadd.s32 %s188, %s189
        %s191 = smul.addr %s190, 8
        %s192 = scalar_lea.vmem %s2, %s191
      $region28: #{attention_forward_pallas.6} parent=15 // pred_fallthru
        _
    $region16: #{attention_forward_pallas.6} parent=5 // pred_fallthru
      _
    %p193 = scmp.le.s32.totalorder 1, %s9
    %p194 = scmp.lt.s32.totalorder %s9, 5
    %p195 = pnand %p193, %p194
    %p196 = pneg %p195
    // Predicated region
    $region29: #{attention_forward_pallas.6} parent=5 // pred_check
      _
    $region30: #{attention_forward_pallas.6} parent=5 // pred_check_branch
      %198 = sbr.rel (%p195) target = $region32
    $region31: #{attention_forward_pallas.6} parent=5 // pred_region
      %s199 = ssub.s32 %s9, 1
      %p200 = scmp.lt.s32.totalorder %s19, 1
      %s201 = scalar_select %p200, %s19, 1
      %p202 = scmp.lt.s32.totalorder %s20, 0
      %s203 = scalar_select %p202, %s20, 0
      %s204 = smul.addr %s203, 4
      %s205 = smul.addr %s201, 4
      %s206 = sadd.s32 %s204, %s205
      %s207 = smul.addr %s206, 8
      %s208 = scalar_lea.vmem %s0, %s207
      %p209 = pneg %p56
      %p210 = pneg %p53
      %p211 = scmp.lt.s32.totalorder %s19, 1
      %s212 = scalar_select %p211, %s19, 1
      %p213 = scmp.lt.s32.totalorder %s21, 1
      %s214 = scalar_select %p213, %s21, 1
      %s215 = smul.addr %s212, 2
      %s216 = sadd.s32 %s214, %s215
      %s217 = smul.addr %s216, 8
      %s218 = scalar_lea.vmem %s1, %s217
      %p219 = pneg %p84
      %p220 = pneg %p81
      %p221 = scmp.lt.s32.totalorder %s19, 1
      %s222 = scalar_select %p221, %s19, 1
      %p223 = scmp.lt.s32.totalorder %s21, 1
      %s224 = scalar_select %p223, %s21, 1
      %s225 = smul.addr %s222, 2
      %s226 = sadd.s32 %s224, %s225
      %s227 = smul.addr %s226, 8
      %s228 = scalar_lea.vmem %s2, %s227
      %p229 = pneg %p112
      %p230 = pneg %p109
      %p231 = pneg %p140
      %p232 = pneg %p137
      %p233 = scmp.lt.s32.totalorder %s19, 1
      %s234 = scalar_select %p233, %s19, 1
      %p235 = scmp.lt.s32.totalorder %s20, 0
      %s236 = scalar_select %p235, %s20, 0
      %s237 = smul.addr %s236, 2
      %s238 = smul.addr %s234, 2
      %s239 = sadd.s32 %s237, %s238
      %s240 = smul.addr %s239, 8
      %s241 = scalar_lea.vmem %s3, %s240
      %p242 = scmp.lt.s32.totalorder %s19, 1
      %s243 = scalar_select %p242, %s19, 1
      %p244 = scmp.lt.s32.totalorder %s20, 0
      %s245 = scalar_select %p244, %s20, 0
      %s246 = smul.addr %s245, 4
      %s247 = smul.addr %s243, 4
      %s248 = sadd.s32 %s246, %s247
      %s249 = smul.addr %s248, 8
      %s250 = scalar_lea.vmem %s0, %s249
      %p251 = scmp.lt.s32.totalorder %s19, 1
      %s252 = scalar_select %p251, %s19, 1
      %p253 = scmp.lt.s32.totalorder %s21, 1
      %s254 = scalar_select %p253, %s21, 1
      %s255 = smul.addr %s252, 2
      %s256 = sadd.s32 %s254, %s255
      %s257 = smul.addr %s256, 8
      %s258 = scalar_lea.vmem %s1, %s257
      %p259 = scmp.lt.s32.totalorder %s19, 1
      %s260 = scalar_select %p259, %s19, 1
      %p261 = scmp.lt.s32.totalorder %s21, 1
      %s262 = scalar_select %p261, %s21, 1
      %s263 = smul.addr %s260, 2
      %s264 = sadd.s32 %s262, %s263
      %s265 = smul.addr %s264, 8
      %s266 = scalar_lea.vmem %s2, %s265
      %p267 = scmp.lt.s32.totalorder %s19, 1
      %s268 = scalar_select %p267, %s19, 1
      %p269 = scmp.lt.s32.totalorder %s20, 0
      %s270 = scalar_select %p269, %s20, 0
      %s271 = smul.addr %s270, 2
      %s272 = smul.addr %s268, 2
      %s273 = sadd.s32 %s271, %s272
      %s274 = smul.addr %s273, 8
      %s275 = scalar_lea.vmem %s3, %s274
      %p276 = scmp.eq.s32.totalorder %s21, 0
      // Predicated region
      $region33: #{attention_forward_pallas.6} parent=31 // pred_check
        %p277 = pneg %p276
      $region34: #{attention_forward_pallas.6} parent=31 // pred_check_branch
        %279 = sbr.rel (%p277) target = $region36
      $region35: #{attention_forward_pallas.6} parent=31 // pred_region
        %vm280 = vcmask 7168
        %281 = vst.msk [vmem:[#allocation2] sm:$0xff] %vm280, -1e+30
        %282 = vst.msk [vmem:[#allocation2 + $0x8] sm:$0xff] %vm280, -1e+30
        %283 = vst.msk [vmem:[#allocation2 + $0x10] sm:$0xff] %vm280, -1e+30
        %284 = vst.msk [vmem:[#allocation2 + $0x18] sm:$0xff] %vm280, -1e+30
        %285 = vst.msk [vmem:[#allocation3] sm:$0xff] %vm280, 0.0
        %286 = vst.msk [vmem:[#allocation3 + $0x8] sm:$0xff] %vm280, 0.0
        %287 = vst.msk [vmem:[#allocation3 + $0x10] sm:$0xff] %vm280, 0.0
        %288 = vst.msk [vmem:[#allocation3 + $0x18] sm:$0xff] %vm280, 0.0
        %vm289 = vcmask 523264
        %290 = vst.msk [vmem:[#allocation4] sm:$0xff] %vm289, 0.0
        %291 = vst.msk [vmem:[#allocation4 + $0x8] sm:$0xff] %vm289, 0.0
        %292 = vst.msk [vmem:[#allocation4 + $0x10] sm:$0xff] %vm289, 0.0
        %293 = vst.msk [vmem:[#allocation4 + $0x18] sm:$0xff] %vm289, 0.0
      $region36: #{attention_forward_pallas.6} parent=31 // pred_fallthru
        _
      %v294 = vld [vmem:[%s250] sm:$0xff]
      %v295 = vld [vmem:[%s250 + $0x8] sm:$0xff]
      %v296 = vld [vmem:[%s258] sm:$0xff]
      %v297 = vld [vmem:[%s266] sm:$0xff]
      %s298 = smul.u32 %s20, 8
      %s299 = sadd.s32 %s298, 4
      %v300 = vlaneseq
      %v301 = vshrl.u32 %v300, 7
      %v302 = vstv %s299
      %v303 = vadd.s32 %v302, %v301
      %s304 = smul.u32 %s21, 8
      %v305 = vlaneseq
      %v306 = vand.u32 %v305, 127
      %v307 = vstv %s304
      %v308 = vadd.s32 %v307, %v306
      %vm309 = vcmp.le.s32.totalorder %v308, %v303
      %vm310 = vcmask 523264
      %v312 = vsel %vm310, %v294, 0
      %v315 = vsel %vm310, %v296, 0
      %317 = vmatprep.subr.mxu0 0.0
      %318 = vmatpush1.xpose.msra.mxu0 %v315
      %319 = vmatprep.subr.mxu0 0.0
      %320 = vmatpush1.xpose.msra.mxu0 0.0
      %321 = vmatprep.subr.mxu0 0.0
      %322 = vmatpush1.xpose.msra.mxu0 0.0
      %323 = vmatprep.subr.mxu0 0.0
      %324 = vmatpush1.xpose.msra.mxu0 0.0
      %325 = vmatprep.subr.mxu0 0.0
      %326 = vmatpush1.xpose.msra.mxu0 0.0
      %327 = vmatprep.subr.mxu0 0.0
      %328 = vmatpush1.xpose.msra.mxu0 0.0
      %329 = vmatprep.subr.mxu0 0.0
      %330 = vmatpush1.xpose.msra.mxu0 0.0
      %331 = vmatprep.subr.mxu0 0.0
      %332 = vmatpush1.xpose.msra.mxu0 0.0
      %333 = vmatprep.subr.mxu0 0.0
      %334 = vmatpush1.xpose.msra.mxu0 0.0
      %335 = vmatprep.subr.mxu0 0.0
      %336 = vmatpush1.xpose.msra.mxu0 0.0
      %337 = vmatprep.subr.mxu0 0.0
      %338 = vmatpush1.xpose.msra.mxu0 0.0
      %339 = vmatprep.subr.mxu0 0.0
      %340 = vmatpush1.xpose.msra.mxu0 0.0
      %341 = vmatprep.subr.mxu0 0.0
      %342 = vmatpush1.xpose.msra.mxu0 0.0
      %343 = vmatprep.subr.mxu0 0.0
      %344 = vmatpush1.xpose.msra.mxu0 0.0
      %345 = vmatprep.subr.mxu0 0.0
      %346 = vmatpush1.xpose.msra.mxu0 0.0
      %347 = vmatprep.subr.mxu0 0.0
      %348 = vmatpush1.xpose.msra.mxu0 0.0
      %349 = vmatprep.subr.mxu0 0.0
      %350 = vmatpush1.xpose.msra.mxu0 0.0
      %351 = vmatprep.subr.mxu0 0.0
      %352 = vmatpush1.xpose.msra.mxu0 0.0
      %353 = vmatprep.subr.mxu0 0.0
      %354 = vmatpush1.xpose.msra.mxu0 0.0
      %355 = vmatprep.subr.mxu0 0.0
      %356 = vmatpush1.xpose.msra.mxu0 0.0
      %357 = vmatprep.subr.mxu0 0.0
      %358 = vmatpush1.xpose.msra.mxu0 0.0
      %359 = vmatprep.subr.mxu0 0.0
      %360 = vmatpush1.xpose.msra.mxu0 0.0
      %361 = vmatprep.subr.mxu0 0.0
      %362 = vmatpush1.xpose.msra.mxu0 0.0
      %363 = vmatprep.subr.mxu0 0.0
      %364 = vmatpush1.xpose.msra.mxu0 0.0
      %365 = vmatprep.subr.mxu0 0.0
      %366 = vmatpush1.xpose.msra.mxu0 0.0
      %367 = vmatprep.subr.mxu0 0.0
      %368 = vmatpush1.xpose.msra.mxu0 0.0
      %369 = vmatprep.subr.mxu0 0.0
      %370 = vmatpush1.xpose.msra.mxu0 0.0
      %371 = vmatprep.subr.mxu0 0.0
      %372 = vmatpush1.xpose.msra.mxu0 0.0
      %373 = vmatprep.subr.mxu0 0.0
      %374 = vmatpush1.xpose.msra.mxu0 0.0
      %375 = vmatprep.subr.mxu0 0.0
      %376 = vmatpush1.xpose.msra.mxu0 0.0
      %377 = vmatprep.subr.mxu0 0.0
      %378 = vmatpush1.xpose.msra.mxu0 0.0
      %379 = vmatprep.subr.mxu0 0.0
      %380 = vmatpush1.xpose.msra.mxu0 0.0
      %381 = vmatprep.mubr.f32.mxu0 0.0
      %382 = vmatmul.mubr.f32.gmra.mrb[0].mxu0 %v312
      %v383 = vpop.f32.mrb[0].mxu0
      %v384 = vadd.f32 0.0, %v383
      %v385 = vpop.f32.mrb[0].mxu0
      %386 = vdwg.mxu0
      %v387 = vsel %vm309, %v384, -1e+30
      %v388 = vld [vmem:[#allocation2] sm:$0xff]
      %v389 = vld [vmem:[#allocation3] sm:$0xff]
      %vm390 = vcmask 64512
      %v391 = vsel %vm390, %v387, -inf
      %392 = vmax.xlane.f32.xlu0 %v391
      %v393 = vpop.xlane.xlu0 %392
      %v394 = vmax.f32 %v388, %v393
      %v395 = vsub.f32 %v388, %v394
      %v396 = vmul.f32 %v395, 1.442695
      %v397 = vpow.pop %v396
      %399 = vset.pattern.permute.xlu0 0
      %400 = vperm.xlu0 %399, %v394
      %v401 = vpop.permute.xlu0 %400
      %v403 = vsub.f32 %v387, %v401
      %v404 = vmul.f32 %v403, 1.442695
      %v405 = vpow.pop %v404
      %v406 = vmul.f32 %v397, %v389
      %v407 = vsel %vm390, %v405, 0.0
      %408 = vadd.xlane.f32.xlu0 %v407
      %v409 = vpop.xlane.xlu0 %408
      %v410 = vadd.f32 %v406, %v409
      %vm411 = vcmask 7168
      %412 = vst.msk [vmem:[#allocation3] sm:$0xff] %vm411, %v410
      %413 = vst.msk [vmem:[#allocation2] sm:$0xff] %vm411, %v394
      %v414 = vld [vmem:[#allocation4] sm:$0xff]
      %416 = vset.pattern.permute.xlu0 0
      %417 = vperm.xlu0 %416, %v397
      %v418 = vpop.permute.xlu0 %417
      %v420 = vmul.f32 %v418, %v414
      %v422 = vsel %vm390, %v405, 0
      %424 = vmatprep.subr.mxu0 0.0
      %425 = vmatpush1.msra.mxu0 %v297
      %426 = vmatprep.subr.mxu0 0.0
      %427 = vmatpush1.msra.mxu0 0.0
      %428 = vmatprep.subr.mxu0 0.0
      %429 = vmatpush1.msra.mxu0 0.0
      %430 = vmatprep.subr.mxu0 0.0
      %431 = vmatpush1.msra.mxu0 0.0
      %432 = vmatprep.subr.mxu0 0.0
      %433 = vmatpush1.msra.mxu0 0.0
      %434 = vmatprep.subr.mxu0 0.0
      %435 = vmatpush1.msra.mxu0 0.0
      %436 = vmatprep.subr.mxu0 0.0
      %437 = vmatpush1.msra.mxu0 0.0
      %438 = vmatprep.subr.mxu0 0.0
      %439 = vmatpush1.msra.mxu0 0.0
      %440 = vmatprep.subr.mxu0 0.0
      %441 = vmatpush1.msra.mxu0 0.0
      %442 = vmatprep.subr.mxu0 0.0
      %443 = vmatpush1.msra.mxu0 0.0
      %444 = vmatprep.subr.mxu0 0.0
      %445 = vmatpush1.msra.mxu0 0.0
      %446 = vmatprep.subr.mxu0 0.0
      %447 = vmatpush1.msra.mxu0 0.0
      %448 = vmatprep.subr.mxu0 0.0
      %449 = vmatpush1.msra.mxu0 0.0
      %450 = vmatprep.subr.mxu0 0.0
      %451 = vmatpush1.msra.mxu0 0.0
      %452 = vmatprep.subr.mxu0 0.0
      %453 = vmatpush1.msra.mxu0 0.0
      %454 = vmatprep.subr.mxu0 0.0
      %455 = vmatpush1.msra.mxu0 0.0
      %456 = vmatprep.subr.mxu0 0.0
      %457 = vmatpush1.msra.mxu0 0.0
      %458 = vmatprep.subr.mxu0 0.0
      %459 = vmatpush1.msra.mxu0 0.0
      %460 = vmatprep.subr.mxu0 0.0
      %461 = vmatpush1.msra.mxu0 0.0
      %462 = vmatprep.subr.mxu0 0.0
      %463 = vmatpush1.msra.mxu0 0.0
      %464 = vmatprep.subr.mxu0 0.0
      %465 = vmatpush1.msra.mxu0 0.0
      %466 = vmatprep.subr.mxu0 0.0
      %467 = vmatpush1.msra.mxu0 0.0
      %468 = vmatprep.subr.mxu0 0.0
      %469 = vmatpush1.msra.mxu0 0.0
      %470 = vmatprep.subr.mxu0 0.0
      %471 = vmatpush1.msra.mxu0 0.0
      %472 = vmatprep.subr.mxu0 0.0
      %473 = vmatpush1.msra.mxu0 0.0
      %474 = vmatprep.subr.mxu0 0.0
      %475 = vmatpush1.msra.mxu0 0.0
      %476 = vmatprep.subr.mxu0 0.0
      %477 = vmatpush1.msra.mxu0 0.0
      %478 = vmatprep.subr.mxu0 0.0
      %479 = vmatpush1.msra.mxu0 0.0
      %480 = vmatprep.subr.mxu0 0.0
      %481 = vmatpush1.msra.mxu0 0.0
      %482 = vmatprep.subr.mxu0 0.0
      %483 = vmatpush1.msra.mxu0 0.0
      %484 = vmatprep.subr.mxu0 0.0
      %485 = vmatpush1.msra.mxu0 0.0
      %486 = vmatprep.subr.mxu0 0.0
      %487 = vmatpush1.msra.mxu0 0.0
      %488 = vmatprep.mubr.f32.mxu0 0.0
      %489 = vmatmul.mubr.f32.gmra.mrb[0].mxu0 %v422
      %v490 = vpop.f32.mrb[0].mxu0
      %v491 = vadd.f32 0.0, %v490
      %v492 = vpop.f32.mrb[0].mxu0
      %493 = vdwg.mxu0
      %v494 = vadd.f32 %v420, %v491
      %495 = vst.msk [vmem:[#allocation4] sm:$0xff] %vm310, %v494
      %496 = vrot.lane.b32.xlu0 %v294, 64
      %v497 = vpop.permute.xlu0 %496
      %v498 = vsel %vm310, %v497, 0
      %500 = vmatprep.subr.mxu0 0.0
      %501 = vmatpush1.xpose.msra.mxu0 %v315
      %502 = vmatprep.subr.mxu0 0.0
      %503 = vmatpush1.xpose.msra.mxu0 0.0
      %504 = vmatprep.subr.mxu0 0.0
      %505 = vmatpush1.xpose.msra.mxu0 0.0
      %506 = vmatprep.subr.mxu0 0.0
      %507 = vmatpush1.xpose.msra.mxu0 0.0
      %508 = vmatprep.subr.mxu0 0.0
      %509 = vmatpush1.xpose.msra.mxu0 0.0
      %510 = vmatprep.subr.mxu0 0.0
      %511 = vmatpush1.xpose.msra.mxu0 0.0
      %512 = vmatprep.subr.mxu0 0.0
      %513 = vmatpush1.xpose.msra.mxu0 0.0
      %514 = vmatprep.subr.mxu0 0.0
      %515 = vmatpush1.xpose.msra.mxu0 0.0
      %516 = vmatprep.subr.mxu0 0.0
      %517 = vmatpush1.xpose.msra.mxu0 0.0
      %518 = vmatprep.subr.mxu0 0.0
      %519 = vmatpush1.xpose.msra.mxu0 0.0
      %520 = vmatprep.subr.mxu0 0.0
      %521 = vmatpush1.xpose.msra.mxu0 0.0
      %522 = vmatprep.subr.mxu0 0.0
      %523 = vmatpush1.xpose.msra.mxu0 0.0
      %524 = vmatprep.subr.mxu0 0.0
      %525 = vmatpush1.xpose.msra.mxu0 0.0
      %526 = vmatprep.subr.mxu0 0.0
      %527 = vmatpush1.xpose.msra.mxu0 0.0
      %528 = vmatprep.subr.mxu0 0.0
      %529 = vmatpush1.xpose.msra.mxu0 0.0
      %530 = vmatprep.subr.mxu0 0.0
      %531 = vmatpush1.xpose.msra.mxu0 0.0
      %532 = vmatprep.subr.mxu0 0.0
      %533 = vmatpush1.xpose.msra.mxu0 0.0
      %534 = vmatprep.subr.mxu0 0.0
      %535 = vmatpush1.xpose.msra.mxu0 0.0
      %536 = vmatprep.subr.mxu0 0.0
      %537 = vmatpush1.xpose.msra.mxu0 0.0
      %538 = vmatprep.subr.mxu0 0.0
      %539 = vmatpush1.xpose.msra.mxu0 0.0
      %540 = vmatprep.subr.mxu0 0.0
      %541 = vmatpush1.xpose.msra.mxu0 0.0
      %542 = vmatprep.subr.mxu0 0.0
      %543 = vmatpush1.xpose.msra.mxu0 0.0
      %544 = vmatprep.subr.mxu0 0.0
      %545 = vmatpush1.xpose.msra.mxu0 0.0
      %546 = vmatprep.subr.mxu0 0.0
      %547 = vmatpush1.xpose.msra.mxu0 0.0
      %548 = vmatprep.subr.mxu0 0.0
      %549 = vmatpush1.xpose.msra.mxu0 0.0
      %550 = vmatprep.subr.mxu0 0.0
      %551 = vmatpush1.xpose.msra.mxu0 0.0
      %552 = vmatprep.subr.mxu0 0.0
      %553 = vmatpush1.xpose.msra.mxu0 0.0
      %554 = vmatprep.subr.mxu0 0.0
      %555 = vmatpush1.xpose.msra.mxu0 0.0
      %556 = vmatprep.subr.mxu0 0.0
      %557 = vmatpush1.xpose.msra.mxu0 0.0
      %558 = vmatprep.subr.mxu0 0.0
      %559 = vmatpush1.xpose.msra.mxu0 0.0
      %560 = vmatprep.subr.mxu0 0.0
      %561 = vmatpush1.xpose.msra.mxu0 0.0
      %562 = vmatprep.subr.mxu0 0.0
      %563 = vmatpush1.xpose.msra.mxu0 0.0
      %564 = vmatprep.mubr.f32.mxu0 0.0
      %565 = vmatmul.mubr.f32.gmra.mrb[0].mxu0 %v498
      %v566 = vpop.f32.mrb[0].mxu0
      %v567 = vadd.f32 0.0, %v566
      %v568 = vpop.f32.mrb[0].mxu0
      %569 = vdwg.mxu0
      %v570 = vsel %vm309, %v567, -1e+30
      %s571 = scalar_lea.vmem [#allocation2], 8
      %v572 = vld [vmem:[%s571] sm:$0xff]
      %s573 = scalar_lea.vmem [#allocation3], 8
      %v574 = vld [vmem:[%s573] sm:$0xff]
      %v575 = vsel %vm390, %v570, -inf
      %576 = vmax.xlane.f32.xlu0 %v575
      %v577 = vpop.xlane.xlu0 %576
      %v578 = vmax.f32 %v572, %v577
      %v579 = vsub.f32 %v572, %v578
      %v580 = vmul.f32 %v579, 1.442695
      %v581 = vpow.pop %v580
      %583 = vset.pattern.permute.xlu0 0
      %584 = vperm.xlu0 %583, %v578
      %v585 = vpop.permute.xlu0 %584
      %v587 = vsub.f32 %v570, %v585
      %v588 = vmul.f32 %v587, 1.442695
      %v589 = vpow.pop %v588
      %v590 = vmul.f32 %v581, %v574
      %v591 = vsel %vm390, %v589, 0.0
      %592 = vadd.xlane.f32.xlu0 %v591
      %v593 = vpop.xlane.xlu0 %592
      %v594 = vadd.f32 %v590, %v593
      %595 = vst.msk [vmem:[%s573] sm:$0xff] %vm411, %v594
      %596 = vst.msk [vmem:[%s571] sm:$0xff] %vm411, %v578
      %s597 = scalar_lea.vmem [#allocation4], 8
      %v598 = vld [vmem:[%s597] sm:$0xff]
      %600 = vset.pattern.permute.xlu0 0
      %601 = vperm.xlu0 %600, %v581
      %v602 = vpop.permute.xlu0 %601
      %v604 = vmul.f32 %v602, %v598
      %v606 = vsel %vm390, %v589, 0
      %608 = vmatprep.subr.mxu0 0.0
      %609 = vmatpush1.msra.mxu0 %v297
      %610 = vmatprep.subr.mxu0 0.0
      %611 = vmatpush1.msra.mxu0 0.0
      %612 = vmatprep.subr.mxu0 0.0
      %613 = vmatpush1.msra.mxu0 0.0
      %614 = vmatprep.subr.mxu0 0.0
      %615 = vmatpush1.msra.mxu0 0.0
      %616 = vmatprep.subr.mxu0 0.0
      %617 = vmatpush1.msra.mxu0 0.0
      %618 = vmatprep.subr.mxu0 0.0
      %619 = vmatpush1.msra.mxu0 0.0
      %620 = vmatprep.subr.mxu0 0.0
      %621 = vmatpush1.msra.mxu0 0.0
      %622 = vmatprep.subr.mxu0 0.0
      %623 = vmatpush1.msra.mxu0 0.0
      %624 = vmatprep.subr.mxu0 0.0
      %625 = vmatpush1.msra.mxu0 0.0
      %626 = vmatprep.subr.mxu0 0.0
      %627 = vmatpush1.msra.mxu0 0.0
      %628 = vmatprep.subr.mxu0 0.0
      %629 = vmatpush1.msra.mxu0 0.0
      %630 = vmatprep.subr.mxu0 0.0
      %631 = vmatpush1.msra.mxu0 0.0
      %632 = vmatprep.subr.mxu0 0.0
      %633 = vmatpush1.msra.mxu0 0.0
      %634 = vmatprep.subr.mxu0 0.0
      %635 = vmatpush1.msra.mxu0 0.0
      %636 = vmatprep.subr.mxu0 0.0
      %637 = vmatpush1.msra.mxu0 0.0
      %638 = vmatprep.subr.mxu0 0.0
      %639 = vmatpush1.msra.mxu0 0.0
      %640 = vmatprep.subr.mxu0 0.0
      %641 = vmatpush1.msra.mxu0 0.0
      %642 = vmatprep.subr.mxu0 0.0
      %643 = vmatpush1.msra.mxu0 0.0
      %644 = vmatprep.subr.mxu0 0.0
      %645 = vmatpush1.msra.mxu0 0.0
      %646 = vmatprep.subr.mxu0 0.0
      %647 = vmatpush1.msra.mxu0 0.0
      %648 = vmatprep.subr.mxu0 0.0
      %649 = vmatpush1.msra.mxu0 0.0
      %650 = vmatprep.subr.mxu0 0.0
      %651 = vmatpush1.msra.mxu0 0.0
      %652 = vmatprep.subr.mxu0 0.0
      %653 = vmatpush1.msra.mxu0 0.0
      %654 = vmatprep.subr.mxu0 0.0
      %655 = vmatpush1.msra.mxu0 0.0
      %656 = vmatprep.subr.mxu0 0.0
      %657 = vmatpush1.msra.mxu0 0.0
      %658 = vmatprep.subr.mxu0 0.0
      %659 = vmatpush1.msra.mxu0 0.0
      %660 = vmatprep.subr.mxu0 0.0
      %661 = vmatpush1.msra.mxu0 0.0
      %662 = vmatprep.subr.mxu0 0.0
      %663 = vmatpush1.msra.mxu0 0.0
      %664 = vmatprep.subr.mxu0 0.0
      %665 = vmatpush1.msra.mxu0 0.0
      %666 = vmatprep.subr.mxu0 0.0
      %667 = vmatpush1.msra.mxu0 0.0
      %668 = vmatprep.subr.mxu0 0.0
      %669 = vmatpush1.msra.mxu0 0.0
      %670 = vmatprep.subr.mxu0 0.0
      %671 = vmatpush1.msra.mxu0 0.0
      %672 = vmatprep.mubr.f32.mxu0 0.0
      %673 = vmatmul.mubr.f32.gmra.mrb[0].mxu0 %v606
      %v674 = vpop.f32.mrb[0].mxu0
      %v675 = vadd.f32 0.0, %v674
      %v676 = vpop.f32.mrb[0].mxu0
      %677 = vdwg.mxu0
      %v678 = vadd.f32 %v604, %v675
      %679 = vst.msk [vmem:[%s597] sm:$0xff] %vm310, %v678
      %680 = vrot.lane.b32.xlu0 %v296, 64
      %v681 = vpop.permute.xlu0 %680
      %v683 = vsel %vm310, %v295, 0
      %v685 = vsel %vm310, %v681, 0
      %687 = vmatprep.subr.mxu0 0.0
      %688 = vmatpush1.xpose.msra.mxu0 %v685
      %689 = vmatprep.subr.mxu0 0.0
      %690 = vmatpush1.xpose.msra.mxu0 0.0
      %691 = vmatprep.subr.mxu0 0.0
      %692 = vmatpush1.xpose.msra.mxu0 0.0
      %693 = vmatprep.subr.mxu0 0.0
      %694 = vmatpush1.xpose.msra.mxu0 0.0
      %695 = vmatprep.subr.mxu0 0.0
      %696 = vmatpush1.xpose.msra.mxu0 0.0
      %697 = vmatprep.subr.mxu0 0.0
      %698 = vmatpush1.xpose.msra.mxu0 0.0
      %699 = vmatprep.subr.mxu0 0.0
      %700 = vmatpush1.xpose.msra.mxu0 0.0
      %701 = vmatprep.subr.mxu0 0.0
      %702 = vmatpush1.xpose.msra.mxu0 0.0
      %703 = vmatprep.subr.mxu0 0.0
      %704 = vmatpush1.xpose.msra.mxu0 0.0
      %705 = vmatprep.subr.mxu0 0.0
      %706 = vmatpush1.xpose.msra.mxu0 0.0
      %707 = vmatprep.subr.mxu0 0.0
      %708 = vmatpush1.xpose.msra.mxu0 0.0
      %709 = vmatprep.subr.mxu0 0.0
      %710 = vmatpush1.xpose.msra.mxu0 0.0
      %711 = vmatprep.subr.mxu0 0.0
      %712 = vmatpush1.xpose.msra.mxu0 0.0
      %713 = vmatprep.subr.mxu0 0.0
      %714 = vmatpush1.xpose.msra.mxu0 0.0
      %715 = vmatprep.subr.mxu0 0.0
      %716 = vmatpush1.xpose.msra.mxu0 0.0
      %717 = vmatprep.subr.mxu0 0.0
      %718 = vmatpush1.xpose.msra.mxu0 0.0
      %719 = vmatprep.subr.mxu0 0.0
      %720 = vmatpush1.xpose.msra.mxu0 0.0
      %721 = vmatprep.subr.mxu0 0.0
      %722 = vmatpush1.xpose.msra.mxu0 0.0
      %723 = vmatprep.subr.mxu0 0.0
      %724 = vmatpush1.xpose.msra.mxu0 0.0
      %725 = vmatprep.subr.mxu0 0.0
      %726 = vmatpush1.xpose.msra.mxu0 0.0
      %727 = vmatprep.subr.mxu0 0.0
      %728 = vmatpush1.xpose.msra.mxu0 0.0
      %729 = vmatprep.subr.mxu0 0.0
      %730 = vmatpush1.xpose.msra.mxu0 0.0
      %731 = vmatprep.subr.mxu0 0.0
      %732 = vmatpush1.xpose.msra.mxu0 0.0
      %733 = vmatprep.subr.mxu0 0.0
      %734 = vmatpush1.xpose.msra.mxu0 0.0
      %735 = vmatprep.subr.mxu0 0.0
      %736 = vmatpush1.xpose.msra.mxu0 0.0
      %737 = vmatprep.subr.mxu0 0.0
      %738 = vmatpush1.xpose.msra.mxu0 0.0
      %739 = vmatprep.subr.mxu0 0.0
      %740 = vmatpush1.xpose.msra.mxu0 0.0
      %741 = vmatprep.subr.mxu0 0.0
      %742 = vmatpush1.xpose.msra.mxu0 0.0
      %743 = vmatprep.subr.mxu0 0.0
      %744 = vmatpush1.xpose.msra.mxu0 0.0
      %745 = vmatprep.subr.mxu0 0.0
      %746 = vmatpush1.xpose.msra.mxu0 0.0
      %747 = vmatprep.subr.mxu0 0.0
      %748 = vmatpush1.xpose.msra.mxu0 0.0
      %749 = vmatprep.subr.mxu0 0.0
      %750 = vmatpush1.xpose.msra.mxu0 0.0
      %751 = vmatprep.mubr.f32.mxu0 0.0
      %752 = vmatmul.mubr.f32.gmra.mrb[0].mxu0 %v683
      %v753 = vpop.f32.mrb[0].mxu0
      %v754 = vadd.f32 0.0, %v753
      %v755 = vpop.f32.mrb[0].mxu0
      %756 = vdwg.mxu0
      %v757 = vsel %vm309, %v754, -1e+30
      %s758 = scalar_lea.vmem [#allocation2], 16
      %v759 = vld [vmem:[%s758] sm:$0xff]
      %s760 = scalar_lea.vmem [#allocation3], 16
      %v761 = vld [vmem:[%s760] sm:$0xff]
      %v762 = vsel %vm390, %v757, -inf
      %763 = vmax.xlane.f32.xlu0 %v762
      %v764 = vpop.xlane.xlu0 %763
      %v765 = vmax.f32 %v759, %v764
      %v766 = vsub.f32 %v759, %v765
      %v767 = vmul.f32 %v766, 1.442695
      %v768 = vpow.pop %v767
      %770 = vset.pattern.permute.xlu0 0
      %771 = vperm.xlu0 %770, %v765
      %v772 = vpop.permute.xlu0 %771
      %v774 = vsub.f32 %v757, %v772
      %v775 = vmul.f32 %v774, 1.442695
      %v776 = vpow.pop %v775
      %v777 = vmul.f32 %v768, %v761
      %v778 = vsel %vm390, %v776, 0.0
      %779 = vadd.xlane.f32.xlu0 %v778
      %v780 = vpop.xlane.xlu0 %779
      %v781 = vadd.f32 %v777, %v780
      %782 = vst.msk [vmem:[%s760] sm:$0xff] %vm411, %v781
      %783 = vst.msk [vmem:[%s758] sm:$0xff] %vm411, %v765
      %s784 = scalar_lea.vmem [#allocation4], 16
      %v785 = vld [vmem:[%s784] sm:$0xff]
      %787 = vset.pattern.permute.xlu0 0
      %788 = vperm.xlu0 %787, %v768
      %v789 = vpop.permute.xlu0 %788
      %v791 = vmul.f32 %v789, %v785
      %793 = vrot.lane.b32.xlu0 %v297, 64
      %v794 = vpop.permute.xlu0 %793
      %v797 = vsel %vm390, %v776, 0
      %799 = vmatprep.subr.mxu0 0.0
      %800 = vmatpush1.msra.mxu0 %v794
      %801 = vmatprep.subr.mxu0 0.0
      %802 = vmatpush1.msra.mxu0 0.0
      %803 = vmatprep.subr.mxu0 0.0
      %804 = vmatpush1.msra.mxu0 0.0
      %805 = vmatprep.subr.mxu0 0.0
      %806 = vmatpush1.msra.mxu0 0.0
      %807 = vmatprep.subr.mxu0 0.0
      %808 = vmatpush1.msra.mxu0 0.0
      %809 = vmatprep.subr.mxu0 0.0
      %810 = vmatpush1.msra.mxu0 0.0
      %811 = vmatprep.subr.mxu0 0.0
      %812 = vmatpush1.msra.mxu0 0.0
      %813 = vmatprep.subr.mxu0 0.0
      %814 = vmatpush1.msra.mxu0 0.0
      %815 = vmatprep.subr.mxu0 0.0
      %816 = vmatpush1.msra.mxu0 0.0
      %817 = vmatprep.subr.mxu0 0.0
      %818 = vmatpush1.msra.mxu0 0.0
      %819 = vmatprep.subr.mxu0 0.0
      %820 = vmatpush1.msra.mxu0 0.0
      %821 = vmatprep.subr.mxu0 0.0
      %822 = vmatpush1.msra.mxu0 0.0
      %823 = vmatprep.subr.mxu0 0.0
      %824 = vmatpush1.msra.mxu0 0.0
      %825 = vmatprep.subr.mxu0 0.0
      %826 = vmatpush1.msra.mxu0 0.0
      %827 = vmatprep.subr.mxu0 0.0
      %828 = vmatpush1.msra.mxu0 0.0
      %829 = vmatprep.subr.mxu0 0.0
      %830 = vmatpush1.msra.mxu0 0.0
      %831 = vmatprep.subr.mxu0 0.0
      %832 = vmatpush1.msra.mxu0 0.0
      %833 = vmatprep.subr.mxu0 0.0
      %834 = vmatpush1.msra.mxu0 0.0
      %835 = vmatprep.subr.mxu0 0.0
      %836 = vmatpush1.msra.mxu0 0.0
      %837 = vmatprep.subr.mxu0 0.0
      %838 = vmatpush1.msra.mxu0 0.0
      %839 = vmatprep.subr.mxu0 0.0
      %840 = vmatpush1.msra.mxu0 0.0
      %841 = vmatprep.subr.mxu0 0.0
      %842 = vmatpush1.msra.mxu0 0.0
      %843 = vmatprep.subr.mxu0 0.0
      %844 = vmatpush1.msra.mxu0 0.0
      %845 = vmatprep.subr.mxu0 0.0
      %846 = vmatpush1.msra.mxu0 0.0
      %847 = vmatprep.subr.mxu0 0.0
      %848 = vmatpush1.msra.mxu0 0.0
      %849 = vmatprep.subr.mxu0 0.0
      %850 = vmatpush1.msra.mxu0 0.0
      %851 = vmatprep.subr.mxu0 0.0
      %852 = vmatpush1.msra.mxu0 0.0
      %853 = vmatprep.subr.mxu0 0.0
      %854 = vmatpush1.msra.mxu0 0.0
      %855 = vmatprep.subr.mxu0 0.0
      %856 = vmatpush1.msra.mxu0 0.0
      %857 = vmatprep.subr.mxu0 0.0
      %858 = vmatpush1.msra.mxu0 0.0
      %859 = vmatprep.subr.mxu0 0.0
      %860 = vmatpush1.msra.mxu0 0.0
      %861 = vmatprep.subr.mxu0 0.0
      %862 = vmatpush1.msra.mxu0 0.0
      %863 = vmatprep.mubr.f32.mxu0 0.0
      %864 = vmatmul.mubr.f32.gmra.mrb[0].mxu0 %v797
      %v865 = vpop.f32.mrb[0].mxu0
      %v866 = vadd.f32 0.0, %v865
      %v867 = vpop.f32.mrb[0].mxu0
      %868 = vdwg.mxu0
      %v869 = vadd.f32 %v791, %v866
      %870 = vst.msk [vmem:[%s784] sm:$0xff] %vm310, %v869
      %871 = vrot.lane.b32.xlu0 %v295, 64
      %v872 = vpop.permute.xlu0 %871
      %v873 = vsel %vm310, %v872, 0
      %875 = vmatprep.subr.mxu0 0.0
      %876 = vmatpush1.xpose.msra.mxu0 %v685
      %877 = vmatprep.subr.mxu0 0.0
      %878 = vmatpush1.xpose.msra.mxu0 0.0
      %879 = vmatprep.subr.mxu0 0.0
      %880 = vmatpush1.xpose.msra.mxu0 0.0
      %881 = vmatprep.subr.mxu0 0.0
      %882 = vmatpush1.xpose.msra.mxu0 0.0
      %883 = vmatprep.subr.mxu0 0.0
      %884 = vmatpush1.xpose.msra.mxu0 0.0
      %885 = vmatprep.subr.mxu0 0.0
      %886 = vmatpush1.xpose.msra.mxu0 0.0
      %887 = vmatprep.subr.mxu0 0.0
      %888 = vmatpush1.xpose.msra.mxu0 0.0
      %889 = vmatprep.subr.mxu0 0.0
      %890 = vmatpush1.xpose.msra.mxu0 0.0
      %891 = vmatprep.subr.mxu0 0.0
      %892 = vmatpush1.xpose.msra.mxu0 0.0
      %893 = vmatprep.subr.mxu0 0.0
      %894 = vmatpush1.xpose.msra.mxu0 0.0
      %895 = vmatprep.subr.mxu0 0.0
      %896 = vmatpush1.xpose.msra.mxu0 0.0
      %897 = vmatprep.subr.mxu0 0.0
      %898 = vmatpush1.xpose.msra.mxu0 0.0
      %899 = vmatprep.subr.mxu0 0.0
      %900 = vmatpush1.xpose.msra.mxu0 0.0
      %901 = vmatprep.subr.mxu0 0.0
      %902 = vmatpush1.xpose.msra.mxu0 0.0
      %903 = vmatprep.subr.mxu0 0.0
      %904 = vmatpush1.xpose.msra.mxu0 0.0
      %905 = vmatprep.subr.mxu0 0.0
      %906 = vmatpush1.xpose.msra.mxu0 0.0
      %907 = vmatprep.subr.mxu0 0.0
      %908 = vmatpush1.xpose.msra.mxu0 0.0
      %909 = vmatprep.subr.mxu0 0.0
      %910 = vmatpush1.xpose.msra.mxu0 0.0
      %911 = vmatprep.subr.mxu0 0.0
      %912 = vmatpush1.xpose.msra.mxu0 0.0
      %913 = vmatprep.subr.mxu0 0.0
      %914 = vmatpush1.xpose.msra.mxu0 0.0
      %915 = vmatprep.subr.mxu0 0.0
      %916 = vmatpush1.xpose.msra.mxu0 0.0
      %917 = vmatprep.subr.mxu0 0.0
      %918 = vmatpush1.xpose.msra.mxu0 0.0
      %919 = vmatprep.subr.mxu0 0.0
      %920 = vmatpush1.xpose.msra.mxu0 0.0
      %921 = vmatprep.subr.mxu0 0.0
      %922 = vmatpush1.xpose.msra.mxu0 0.0
      %923 = vmatprep.subr.mxu0 0.0
      %924 = vmatpush1.xpose.msra.mxu0 0.0
      %925 = vmatprep.subr.mxu0 0.0
      %926 = vmatpush1.xpose.msra.mxu0 0.0
      %927 = vmatprep.subr.mxu0 0.0
      %928 = vmatpush1.xpose.msra.mxu0 0.0
      %929 = vmatprep.subr.mxu0 0.0
      %930 = vmatpush1.xpose.msra.mxu0 0.0
      %931 = vmatprep.subr.mxu0 0.0
      %932 = vmatpush1.xpose.msra.mxu0 0.0
      %933 = vmatprep.subr.mxu0 0.0
      %934 = vmatpush1.xpose.msra.mxu0 0.0
      %935 = vmatprep.subr.mxu0 0.0
      %936 = vmatpush1.xpose.msra.mxu0 0.0
      %937 = vmatprep.subr.mxu0 0.0
      %938 = vmatpush1.xpose.msra.mxu0 0.0
      %939 = vmatprep.mubr.f32.mxu0 0.0
      %940 = vmatmul.mubr.f32.gmra.mrb[0].mxu0 %v873
      %v941 = vpop.f32.mrb[0].mxu0
      %v942 = vadd.f32 0.0, %v941
      %v943 = vpop.f32.mrb[0].mxu0
      %944 = vdwg.mxu0
      %v945 = vsel %vm309, %v942, -1e+30
      %s946 = scalar_lea.vmem [#allocation2], 24
      %v947 = vld [vmem:[%s946] sm:$0xff]
      %s948 = scalar_lea.vmem [#allocation3], 24
      %v949 = vld [vmem:[%s948] sm:$0xff]
      %v950 = vsel %vm390, %v945, -inf
      %951 = vmax.xlane.f32.xlu0 %v950
      %v952 = vpop.xlane.xlu0 %951
      %v953 = vmax.f32 %v947, %v952
      %v954 = vsub.f32 %v947, %v953
      %v955 = vmul.f32 %v954, 1.442695
      %v956 = vpow.pop %v955
      %958 = vset.pattern.permute.xlu0 0
      %959 = vperm.xlu0 %958, %v953
      %v960 = vpop.permute.xlu0 %959
      %v962 = vsub.f32 %v945, %v960
      %v963 = vmul.f32 %v962, 1.442695
      %v964 = vpow.pop %v963
      %v965 = vmul.f32 %v956, %v949
      %v966 = vsel %vm390, %v964, 0.0
      %967 = vadd.xlane.f32.xlu0 %v966
      %v968 = vpop.xlane.xlu0 %967
      %v969 = vadd.f32 %v965, %v968
      %970 = vst.msk [vmem:[%s948] sm:$0xff] %vm411, %v969
      %971 = vst.msk [vmem:[%s946] sm:$0xff] %vm411, %v953
      %s972 = scalar_lea.vmem [#allocation4], 24
      %v973 = vld [vmem:[%s972] sm:$0xff]
      %975 = vset.pattern.permute.xlu0 0
      %976 = vperm.xlu0 %975, %v956
      %v977 = vpop.permute.xlu0 %976
      %v979 = vmul.f32 %v977, %v973
      %v981 = vsel %vm390, %v964, 0
      %983 = vmatprep.subr.mxu0 0.0
      %984 = vmatpush1.msra.mxu0 %v794
      %985 = vmatprep.subr.mxu0 0.0
      %986 = vmatpush1.msra.mxu0 0.0
      %987 = vmatprep.subr.mxu0 0.0
      %988 = vmatpush1.msra.mxu0 0.0
      %989 = vmatprep.subr.mxu0 0.0
      %990 = vmatpush1.msra.mxu0 0.0
      %991 = vmatprep.subr.mxu0 0.0
      %992 = vmatpush1.msra.mxu0 0.0
      %993 = vmatprep.subr.mxu0 0.0
      %994 = vmatpush1.msra.mxu0 0.0
      %995 = vmatprep.subr.mxu0 0.0
      %996 = vmatpush1.msra.mxu0 0.0
      %997 = vmatprep.subr.mxu0 0.0
      %998 = vmatpush1.msra.mxu0 0.0
      %999 = vmatprep.subr.mxu0 0.0
      %1000 = vmatpush1.msra.mxu0 0.0
      %1001 = vmatprep.subr.mxu0 0.0
      %1002 = vmatpush1.msra.mxu0 0.0
      %1003 = vmatprep.subr.mxu0 0.0
      %1004 = vmatpush1.msra.mxu0 0.0
      %1005 = vmatprep.subr.mxu0 0.0
      %1006 = vmatpush1.msra.mxu0 0.0
      %1007 = vmatprep.subr.mxu0 0.0
      %1008 = vmatpush1.msra.mxu0 0.0
      %1009 = vmatprep.subr.mxu0 0.0
      %1010 = vmatpush1.msra.mxu0 0.0
      %1011 = vmatprep.subr.mxu0 0.0
      %1012 = vmatpush1.msra.mxu0 0.0
      %1013 = vmatprep.subr.mxu0 0.0
      %1014 = vmatpush1.msra.mxu0 0.0
      %1015 = vmatprep.subr.mxu0 0.0
      %1016 = vmatpush1.msra.mxu0 0.0
      %1017 = vmatprep.subr.mxu0 0.0
      %1018 = vmatpush1.msra.mxu0 0.0
      %1019 = vmatprep.subr.mxu0 0.0
      %1020 = vmatpush1.msra.mxu0 0.0
      %1021 = vmatprep.subr.mxu0 0.0
      %1022 = vmatpush1.msra.mxu0 0.0
      %1023 = vmatprep.subr.mxu0 0.0
      %1024 = vmatpush1.msra.mxu0 0.0
      %1025 = vmatprep.subr.mxu0 0.0
      %1026 = vmatpush1.msra.mxu0 0.0
      %1027 = vmatprep.subr.mxu0 0.0
      %1028 = vmatpush1.msra.mxu0 0.0
      %1029 = vmatprep.subr.mxu0 0.0
      %1030 = vmatpush1.msra.mxu0 0.0
      %1031 = vmatprep.subr.mxu0 0.0
      %1032 = vmatpush1.msra.mxu0 0.0
      %1033 = vmatprep.subr.mxu0 0.0
      %1034 = vmatpush1.msra.mxu0 0.0
      %1035 = vmatprep.subr.mxu0 0.0
      %1036 = vmatpush1.msra.mxu0 0.0
      %1037 = vmatprep.subr.mxu0 0.0
      %1038 = vmatpush1.msra.mxu0 0.0
      %1039 = vmatprep.subr.mxu0 0.0
      %1040 = vmatpush1.msra.mxu0 0.0
      %1041 = vmatprep.subr.mxu0 0.0
      %1042 = vmatpush1.msra.mxu0 0.0
      %1043 = vmatprep.subr.mxu0 0.0
      %1044 = vmatpush1.msra.mxu0 0.0
      %1045 = vmatprep.subr.mxu0 0.0
      %1046 = vmatpush1.msra.mxu0 0.0
      %1047 = vmatprep.mubr.f32.mxu0 0.0
      %1048 = vmatmul.mubr.f32.gmra.mrb[0].mxu0 %v981
      %v1049 = vpop.f32.mrb[0].mxu0
      %v1050 = vadd.f32 0.0, %v1049
      %v1051 = vpop.f32.mrb[0].mxu0
      %1052 = vdwg.mxu0
      %v1053 = vadd.f32 %v979, %v1050
      %1054 = vst.msk [vmem:[%s972] sm:$0xff] %vm310, %v1053
      %p1055 = scmp.eq.s32.totalorder %s21, 1
      // Predicated region
      $region37: #{attention_forward_pallas.6} parent=31 // pred_check
        %p1056 = pneg %p1055
      $region38: #{attention_forward_pallas.6} parent=31 // pred_check_branch
        %1058 = sbr.rel (%p1056) target = $region40
      $region39: #{attention_forward_pallas.6} parent=31 // pred_region
        %v1059 = vld [vmem:[#allocation3] sm:$0xff]
        %v1060 = vrcp.pop %v1059
        %v1061 = vld [vmem:[#allocation4] sm:$0xff]
        %1063 = vset.pattern.permute.xlu0 0
        %1064 = vperm.xlu0 %1063, %v1060
        %v1065 = vpop.permute.xlu0 %1064
        %v1067 = vmul.f32 %v1061, %v1065
        %v1068 = vld [vmem:[%s573] sm:$0xff]
        %v1069 = vrcp.pop %v1068
        %v1070 = vld [vmem:[%s597] sm:$0xff]
        %1072 = vset.pattern.permute.xlu0 0
        %1073 = vperm.xlu0 %1072, %v1069
        %v1074 = vpop.permute.xlu0 %1073
        %v1076 = vmul.f32 %v1070, %v1074
        %v1077 = vld [vmem:[%s760] sm:$0xff]
        %v1078 = vrcp.pop %v1077
        %v1079 = vld [vmem:[%s784] sm:$0xff]
        %1081 = vset.pattern.permute.xlu0 0
        %1082 = vperm.xlu0 %1081, %v1078
        %v1083 = vpop.permute.xlu0 %1082
        %v1085 = vmul.f32 %v1079, %v1083
        %v1086 = vld [vmem:[%s948] sm:$0xff]
        %v1087 = vrcp.pop %v1086
        %v1088 = vld [vmem:[%s972] sm:$0xff]
        %1090 = vset.pattern.permute.xlu0 0
        %1091 = vperm.xlu0 %1090, %v1087
        %v1092 = vpop.permute.xlu0 %1091
        %v1094 = vmul.f32 %v1088, %v1092
        %1096 = vrot.lane.b32.xlu0 %v1076, 64
        %v1097 = vpop.permute.xlu0 %1096
        %1100 = vrot.lane.b32.xlu0 %v1094, 64
        %v1101 = vpop.permute.xlu0 %1100
        %v1103 = vsel %vm310, %v1067, %v1097
        %v1104 = vsel %vm310, %v1085, %v1101
        %1105 = vst [vmem:[%s275] sm:$0xff] %v1103
        %1106 = vst [vmem:[%s275 + $0x8] sm:$0xff] %v1104
      $region40: #{attention_forward_pallas.6} parent=31 // pred_fallthru
        _
      %p1107 = scmp.lt.s32.totalorder %s19, 1
      %s1108 = scalar_select %p1107, %s19, 1
      %p1109 = scmp.lt.s32.totalorder %s20, 0
      %s1110 = scalar_select %p1109, %s20, 0
      %s1111 = smul.addr %s1110, 2
      %s1112 = smul.addr %s1108, 2
      %s1113 = sadd.s32 %s1111, %s1112
      %s1114 = smul.addr %s1113, 8
      %s1115 = scalar_lea.vmem %s3, %s1114
      // Predicated region
      $region41: #{attention_forward_pallas.6} parent=31 // pred_check
        %p1116 = pneg %p137
      $region42: #{attention_forward_pallas.6} parent=31 // pred_check_branch
        %1118 = sbr.rel (%p1116) target = $region44
      $region43: #{attention_forward_pallas.6} parent=31 // pred_region
        _
      $region44: #{attention_forward_pallas.6} parent=31 // pred_fallthru
        _
    $region32: #{attention_forward_pallas.6} parent=5 // pred_fallthru
      _
    %p1119 = scmp.le.s32.totalorder 2, %s9
    // Predicated region
    $region45: #{attention_forward_pallas.6} parent=5 // pred_check
      %p1120 = pneg %p1119
    $region46: #{attention_forward_pallas.6} parent=5 // pred_check_branch
      %1122 = sbr.rel (%p1120) target = $region48
    $region47: #{attention_forward_pallas.6} parent=5 // pred_region
      %s1123 = ssub.s32 %s9, 2
      // Predicated region
      $region49: #{attention_forward_pallas.6} parent=47 // pred_check
        %p1124 = pneg %p143
      $region50: #{attention_forward_pallas.6} parent=47 // pred_check_branch
        %1126 = sbr.rel (%p1124) target = $region52
      $region51: #{attention_forward_pallas.6} parent=47 // pred_region
        %p1127 = scmp.lt.s32.totalorder %s22, 1
        %s1128 = scalar_select %p1127, %s22, 1
        %p1129 = scmp.lt.s32.totalorder %s23, 0
        %s1130 = scalar_select %p1129, %s23, 0
        %s1131 = smul.addr %s1130, 2
        %s1132 = smul.addr %s1128, 2
        %s1133 = sadd.s32 %s1131, %s1132
        %s1134 = smul.addr %s1133, 8
        %s1135 = scalar_lea.vmem %s3, %s1134
      $region52: #{attention_forward_pallas.6} parent=47 // pred_fallthru
        _
    $region48: #{attention_forward_pallas.6} parent=5 // pred_fallthru
      _
  $region6: #{attention_forward_pallas.6} parent=0 // loop_footer
    %s13 = sadd.s32 1, %s9
  $region7: #{attention_forward_pallas.6} parent=0 // loop_footer_branch
    %8 = sbr.rel target = $region3
  $region8: #{attention_forward_pallas.6} parent=0 // loop_exit
    _

</llo_original>
